<compile_context>
chip_gen: v7x
topology: tpu7x:2x2x1
jax: 0.10.0
libtpu: 0.0.40
codegen_flags: <defaults>
</compile_context>

<pallas_src>
import jax
import jax.numpy as jnp
from jax.experimental import pallas as pl
from jax.experimental.pallas import tpu as pltpu

LATENT_DIMS = 32
HIDDEN = 512
OUT = 784  # 28*28


def _round_up(x, m):
    return ((x + m - 1) // m) * m


def decoder_kernel(z_ref, w1_ref, b1_ref, w2_ref, b2_ref, o_ref):
    # z_ref:  (TB, L)   f32      w1_ref: (L, H)    bf16
    # b1_ref: (1, H)    f32      w2_ref: (H, OUT)  bf16
    # b2_ref: (1, OUT)  f32      o_ref:  (TB, OUT) bf16
    z = z_ref[...].astype(jnp.bfloat16)
    # Linear1 + ReLU (bf16 operands, f32 MXU accumulation).
    h = jnp.dot(z, w1_ref[...], preferred_element_type=jnp.float32) + b1_ref[...]
    h = jnp.maximum(h, 0.0)
    # Linear2 (bf16 operands, f32 accumulation).
    y = jnp.dot(h.astype(jnp.bfloat16), w2_ref[...],
                preferred_element_type=jnp.float32) + b2_ref[...]
    # Sigmoid via EUP exp + approximate reciprocal (keeps the VALU free).
    sig = pl.reciprocal(1.0 + jnp.exp(-y), approx=True)
    o_ref[...] = sig.astype(o_ref.dtype)


def prepare_params(w1, b1, w2, b2):
    """One-time param prep (hoisted out of the per-call path): bf16 matmul
    operands, f32 2-D biases."""
    return (jnp.asarray(w1, jnp.bfloat16),
            jnp.asarray(b1, jnp.float32).reshape(1, -1),
            jnp.asarray(w2, jnp.bfloat16),
            jnp.asarray(b2, jnp.float32).reshape(1, -1))


def decoder_forward(z, params, *, tile_b=256, out_dtype=jnp.bfloat16):
    """z: (B, latent) f32; params: output of prepare_params."""
    w1, b1, w2, b2 = params
    B, L = z.shape
    assert L == w1.shape[0]
    H = w1.shape[1]
    O = w2.shape[1]

    # Batch tile: honor the sublane constraint (multiple of 8), don't exceed
    # the (padded) batch.
    tb = min(tile_b, _round_up(B, 8))
    tb = _round_up(tb, 8)
    B_pad = _round_up(B, tb)
    z_p = z if B_pad == B else jnp.pad(z, ((0, B_pad - B), (0, 0)))
    grid = (B_pad // tb,)

    def run(single_buffer_weights):
        if single_buffer_weights:
            def resident(shape):
                return pl.BlockSpec(shape, lambda *_: (0,) * len(shape),
                                    pipeline_mode=pl.Buffered(1))
        else:
            def resident(shape):
                return pl.BlockSpec(shape, lambda *_: (0,) * len(shape))

        return pl.pallas_call(
            decoder_kernel,
            out_shape=jax.ShapeDtypeStruct((B_pad, O), out_dtype),
            grid_spec=pltpu.PrefetchScalarGridSpec(
                num_scalar_prefetch=0,
                grid=grid,
                in_specs=[
                    pl.BlockSpec((tb, L), lambda i: (i, 0)),  # z tile (streamed)
                    resident((L, H)),                         # W1 (VMEM-resident)
                    resident((1, H)),                         # b1
                    resident((H, O)),                         # W2
                    resident((1, O)),                         # b2
                ],
                # Full-extent 784-wide output block: no lane padding, no
                # post-kernel slice copy.
                out_specs=pl.BlockSpec((tb, O), lambda i: (i, 0)),
            ),
            compiler_params=pltpu.CompilerParams(
                dimension_semantics=("parallel",),
            ),
        )(z_p, w1, b1, w2, b2)

    try:
        out = run(True)          # single-buffered resident weights
    except Exception:
        out = run(False)         # fallback if Buffered(1) is unsupported

    if B_pad != B:
        out = out[:B]            # only needed for non-tile-aligned batches
    # Match torch: z.reshape((-1, 1, 28, 28)).  Metadata-only when B_pad == B.
    return out.reshape(-1, 1, 28, 28)


def init_params(key, latent_dims):
    # Deterministic synthetic init (PyTorch-style uniform(-1/sqrt(fan_in), ...)).
    k1, k2, k3, k4 = jax.random.split(key, 4)
    bound1 = 1.0 / jnp.sqrt(latent_dims)
    bound2 = 1.0 / jnp.sqrt(HIDDEN)
    # Stored as (in_features, out_features) == W.T of the PyTorch parameter.
    w1 = jax.random.uniform(k1, (latent_dims, HIDDEN), jnp.float32, -bound1, bound1)
    b1 = jax.random.uniform(k2, (HIDDEN,), jnp.float32, -bound1, bound1)
    w2 = jax.random.uniform(k3, (HIDDEN, OUT), jnp.float32, -bound2, bound2)
    b2 = jax.random.uniform(k4, (OUT,), jnp.float32, -bound2, bound2)
    return w1, b1, w2, b2


def reference_forward(z, w1, b1, w2, b2):
    h = jnp.maximum(z @ w1 + b1, 0.0)
    y = jax.nn.sigmoid(h @ w2 + b2)
    return y.reshape(-1, 1, 28, 28)


if __name__ == "__main__":
    key = jax.random.PRNGKey(0)
    kz, kp = jax.random.split(key)

    # Small shapes: batch=64 with tile_b=32 -> grid of 2 steps (exercises the
    # streaming pipeline / megacore split) while staying tiny.
    batch = 64
    z = jax.random.normal(kz, (batch, LATENT_DIMS), jnp.float32)
    w1, b1, w2, b2 = init_params(kp, LATENT_DIMS)

    # Hoisted, one-time bf16 cast of the weights (not in the per-call path).
    params = jax.block_until_ready(prepare_params(w1, b1, w2, b2))

    out = decoder_forward(z, params, tile_b=32)
    out = jax.block_until_ready(out)

    # Sanity check vs pure-f32 JAX reference (kernel uses bf16 matmul operands,
    # bf16 output, approx reciprocal -> relaxed tolerance).
    ref = reference_forward(z, w1, b1, w2, b2)
    assert out.shape == (batch, 1, 28, 28), out.shape
    err = jnp.max(jnp.abs(out.astype(jnp.float32) - ref))
    assert err < 3e-2, f"mismatch vs reference: max err {err}"

    print("KERNEL_OK")
</pallas_src>

<mosaic_0001>
module attributes {stable_mosaic.version = 11 : i64} {
  func.func @decoder_kernel(%arg0: i32, %arg1: memref<32x32xf32, #tpu.memory_space<vmem>>, %arg2: memref<32x512xbf16, #tpu.memory_space<vmem>>, %arg3: memref<1x512xf32, #tpu.memory_space<vmem>>, %arg4: memref<512x784xbf16, #tpu.memory_space<vmem>>, %arg5: memref<1x784xf32, #tpu.memory_space<vmem>>, %arg6: memref<32x784xbf16, #tpu.memory_space<vmem>>) attributes {dimension_semantics = [#tpu.dimension_semantics<parallel>], iteration_bounds = array<i64: 2>, scalar_prefetch = 0 : i64, scratch_operands = 0 : i64, tpu.core_type = #tpu.core_type<tc>, window_params = [{transform_indices = @transform_0, window_bounds = array<i64: 32, 32>}, {pipeline_mode = #tpu.pipeline_mode<synchronous>, transform_indices = @transform_1, window_bounds = array<i64: 32, 512>}, {pipeline_mode = #tpu.pipeline_mode<synchronous>, transform_indices = @transform_2, window_bounds = array<i64: 1, 512>}, {pipeline_mode = #tpu.pipeline_mode<synchronous>, transform_indices = @transform_3, window_bounds = array<i64: 512, 784>}, {pipeline_mode = #tpu.pipeline_mode<synchronous>, transform_indices = @transform_4, window_bounds = array<i64: 1, 784>}, {transform_indices = @transform_5, window_bounds = array<i64: 32, 784>}]} {
    %c0 = arith.constant 0 : index
    %c0_0 = arith.constant 0 : index
    %0 = vector.load %arg1[%c0, %c0_0] : memref<32x32xf32, #tpu.memory_space<vmem>>, vector<32x32xf32>
    %1 = arith.truncf %0 : vector<32x32xf32> to vector<32x32xbf16>
    %c0_1 = arith.constant 0 : index
    %c0_2 = arith.constant 0 : index
    %2 = vector.load %arg2[%c0_1, %c0_2] : memref<32x512xbf16, #tpu.memory_space<vmem>>, vector<32x512xbf16>
    %cst = arith.constant dense<0.000000e+00> : vector<32x512xf32>
    %3 = tpu.matmul %1, %2, %cst {dimension_numbers = #tpu.dot_dimension_numbers<[1], [0], [0], [1], [0, 0, 1, 1], [], []>} : vector<32x32xbf16>, vector<32x512xbf16>, vector<32x512xf32> -> vector<32x512xf32>
    %c0_3 = arith.constant 0 : index
    %c0_4 = arith.constant 0 : index
    %4 = vector.load %arg3[%c0_3, %c0_4] : memref<1x512xf32, #tpu.memory_space<vmem>>, vector<1x512xf32>
    %5 = vector.broadcast %4 : vector<1x512xf32> to vector<32x512xf32>
    %6 = arith.addf %3, %5 : vector<32x512xf32>
    %cst_5 = arith.constant 0.000000e+00 : f32
    %7 = vector.broadcast %cst_5 : f32 to vector<32x512xf32>
    %8 = arith.maximumf %6, %7 : vector<32x512xf32>
    %9 = arith.truncf %8 : vector<32x512xf32> to vector<32x512xbf16>
    %c0_6 = arith.constant 0 : index
    %c0_7 = arith.constant 0 : index
    %10 = vector.load %arg4[%c0_6, %c0_7] : memref<512x784xbf16, #tpu.memory_space<vmem>>, vector<512x784xbf16>
    %cst_8 = arith.constant dense<0.000000e+00> : vector<32x784xf32>
    %11 = tpu.matmul %9, %10, %cst_8 {dimension_numbers = #tpu.dot_dimension_numbers<[1], [0], [0], [1], [0, 0, 1, 1], [], []>} : vector<32x512xbf16>, vector<512x784xbf16>, vector<32x784xf32> -> vector<32x784xf32>
    %c0_9 = arith.constant 0 : index
    %c0_10 = arith.constant 0 : index
    %12 = vector.load %arg5[%c0_9, %c0_10] : memref<1x784xf32, #tpu.memory_space<vmem>>, vector<1x784xf32>
    %13 = vector.broadcast %12 : vector<1x784xf32> to vector<32x784xf32>
    %14 = arith.addf %11, %13 : vector<32x784xf32>
    %cst_11 = arith.constant 0.000000e+00 : f32
    %15 = vector.broadcast %cst_11 : f32 to vector<32x784xf32>
    %16 = arith.subf %15, %14 : vector<32x784xf32>
    %17 = math.exp %16 : vector<32x784xf32>
    %cst_12 = arith.constant 1.000000e+00 : f32
    %18 = vector.broadcast %cst_12 : f32 to vector<32x784xf32>
    %19 = arith.addf %18, %17 : vector<32x784xf32>
    %20 = tpu.reciprocal %19 {approx = true} : vector<32x784xf32> -> vector<32x784xf32>
    %21 = arith.truncf %20 : vector<32x784xf32> to vector<32x784xbf16>
    %c0_13 = arith.constant 0 : index
    %c0_14 = arith.constant 0 : index
    %22 = vector.load %arg6[%c0_13, %c0_14] : memref<32x784xbf16, #tpu.memory_space<vmem>>, vector<32x784xbf16>
    tpu.vector_store %arg6[%c0_13, %c0_14], %21 {strides = array<i32>} : memref<32x784xbf16, #tpu.memory_space<vmem>>, vector<32x784xbf16>,
    return
  }
  func.func @transform_0(%arg0: i32) -> (i32, i32) {
    %c0_i32 = arith.constant 0 : i32
    %c0_i32_0 = arith.constant 0 : i32
    return %arg0, %c0_i32 : i32, i32
  }
  func.func @transform_1(%arg0: i32) -> (i32, i32) {
    %c0_i32 = arith.constant 0 : i32
    %c0_i32_0 = arith.constant 0 : i32
    %c0_i32_1 = arith.constant 0 : i32
    return %c0_i32, %c0_i32_0 : i32, i32
  }
  func.func @transform_2(%arg0: i32) -> (i32, i32) {
    %c0_i32 = arith.constant 0 : i32
    %c0_i32_0 = arith.constant 0 : i32
    %c0_i32_1 = arith.constant 0 : i32
    return %c0_i32, %c0_i32_0 : i32, i32
  }
  func.func @transform_3(%arg0: i32) -> (i32, i32) {
    %c0_i32 = arith.constant 0 : i32
    %c0_i32_0 = arith.constant 0 : i32
    %c0_i32_1 = arith.constant 0 : i32
    return %c0_i32, %c0_i32_0 : i32, i32
  }
  func.func @transform_4(%arg0: i32) -> (i32, i32) {
    %c0_i32 = arith.constant 0 : i32
    %c0_i32_0 = arith.constant 0 : i32
    %c0_i32_1 = arith.constant 0 : i32
    return %c0_i32, %c0_i32_0 : i32, i32
  }
  func.func @transform_5(%arg0: i32) -> (i32, i32) {
    %c0_i32 = arith.constant 0 : i32
    %c0_i32_0 = arith.constant 0 : i32
    return %arg0, %c0_i32 : i32, i32
  }
}

module attributes {stable_mosaic.version = 11 : i64} {
  func.func @decoder_kernel(%arg0: i32, %arg1: memref<32x32xf32, #tpu.memory_space<vmem>>, %arg2: memref<32x512xbf16, #tpu.memory_space<vmem>>, %arg3: memref<1x512xf32, #tpu.memory_space<vmem>>, %arg4: memref<512x784xbf16, #tpu.memory_space<vmem>>, %arg5: memref<1x784xf32, #tpu.memory_space<vmem>>, %arg6: memref<32x784xbf16, #tpu.memory_space<vmem>>) attributes {dimension_semantics = [#tpu.dimension_semantics<parallel>], iteration_bounds = array<i64: 2>, scalar_prefetch = 0 : i64, scratch_operands = 0 : i64, tpu.core_type = #tpu.core_type<tc>, window_params = [{transform_indices = @transform_0, window_bounds = array<i64: 32, 32>}, {pipeline_mode = #tpu.pipeline_mode<synchronous>, transform_indices = @transform_1, window_bounds = array<i64: 32, 512>}, {pipeline_mode = #tpu.pipeline_mode<synchronous>, transform_indices = @transform_2, window_bounds = array<i64: 1, 512>}, {pipeline_mode = #tpu.pipeline_mode<synchronous>, transform_indices = @transform_3, window_bounds = array<i64: 512, 784>}, {pipeline_mode = #tpu.pipeline_mode<synchronous>, transform_indices = @transform_4, window_bounds = array<i64: 1, 784>}, {transform_indices = @transform_5, window_bounds = array<i64: 32, 784>}]} {
    %c0 = arith.constant 0 : index
    %c0_0 = arith.constant 0 : index
    %0 = vector.load %arg1[%c0, %c0_0] : memref<32x32xf32, #tpu.memory_space<vmem>>, vector<32x32xf32>
    %1 = arith.truncf %0 : vector<32x32xf32> to vector<32x32xbf16>
    %c0_1 = arith.constant 0 : index
    %c0_2 = arith.constant 0 : index
    %2 = vector.load %arg2[%c0_1, %c0_2] : memref<32x512xbf16, #tpu.memory_space<vmem>>, vector<32x512xbf16>
    %cst = arith.constant dense<0.000000e+00> : vector<32x512xf32>
    %3 = tpu.matmul %1, %2, %cst {dimension_numbers = #tpu.dot_dimension_numbers<[1], [0], [0], [1], [0, 0, 1, 1], [], []>} : vector<32x32xbf16>, vector<32x512xbf16>, vector<32x512xf32> -> vector<32x512xf32>
    %c0_3 = arith.constant 0 : index
    %c0_4 = arith.constant 0 : index
    %4 = vector.load %arg3[%c0_3, %c0_4] : memref<1x512xf32, #tpu.memory_space<vmem>>, vector<1x512xf32>
    %5 = vector.broadcast %4 : vector<1x512xf32> to vector<32x512xf32>
    %6 = arith.addf %3, %5 : vector<32x512xf32>
    %cst_5 = arith.constant 0.000000e+00 : f32
    %7 = vector.broadcast %cst_5 : f32 to vector<32x512xf32>
    %8 = arith.maximumf %6, %7 : vector<32x512xf32>
    %9 = arith.truncf %8 : vector<32x512xf32> to vector<32x512xbf16>
    %c0_6 = arith.constant 0 : index
    %c0_7 = arith.constant 0 : index
    %10 = vector.load %arg4[%c0_6, %c0_7] : memref<512x784xbf16, #tpu.memory_space<vmem>>, vector<512x784xbf16>
    %cst_8 = arith.constant dense<0.000000e+00> : vector<32x784xf32>
    %11 = tpu.matmul %9, %10, %cst_8 {dimension_numbers = #tpu.dot_dimension_numbers<[1], [0], [0], [1], [0, 0, 1, 1], [], []>} : vector<32x512xbf16>, vector<512x784xbf16>, vector<32x784xf32> -> vector<32x784xf32>
    %c0_9 = arith.constant 0 : index
    %c0_10 = arith.constant 0 : index
    %12 = vector.load %arg5[%c0_9, %c0_10] : memref<1x784xf32, #tpu.memory_space<vmem>>, vector<1x784xf32>
    %13 = vector.broadcast %12 : vector<1x784xf32> to vector<32x784xf32>
    %14 = arith.addf %11, %13 : vector<32x784xf32>
    %cst_11 = arith.constant 0.000000e+00 : f32
    %15 = vector.broadcast %cst_11 : f32 to vector<32x784xf32>
    %16 = arith.subf %15, %14 : vector<32x784xf32>
    %17 = math.exp %16 : vector<32x784xf32>
    %cst_12 = arith.constant 1.000000e+00 : f32
    %18 = vector.broadcast %cst_12 : f32 to vector<32x784xf32>
    %19 = arith.addf %18, %17 : vector<32x784xf32>
    %20 = tpu.reciprocal %19 {approx = true} : vector<32x784xf32> -> vector<32x784xf32>
    %21 = arith.truncf %20 : vector<32x784xf32> to vector<32x784xbf16>
    %c0_13 = arith.constant 0 : index
    %c0_14 = arith.constant 0 : index
    %22 = vector.load %arg6[%c0_13, %c0_14] : memref<32x784xbf16, #tpu.memory_space<vmem>>, vector<32x784xbf16>
    tpu.vector_store %arg6[%c0_13, %c0_14], %21 {strides = array<i32>} : memref<32x784xbf16, #tpu.memory_space<vmem>>, vector<32x784xbf16>,
    return
  }
  func.func @transform_0(%arg0: i32) -> (i32, i32) {
    %c0_i32 = arith.constant 0 : i32
    %c0_i32_0 = arith.constant 0 : i32
    return %arg0, %c0_i32 : i32, i32
  }
  func.func @transform_1(%arg0: i32) -> (i32, i32) {
    %c0_i32 = arith.constant 0 : i32
    %c0_i32_0 = arith.constant 0 : i32
    %c0_i32_1 = arith.constant 0 : i32
    return %c0_i32, %c0_i32_0 : i32, i32
  }
  func.func @transform_2(%arg0: i32) -> (i32, i32) {
    %c0_i32 = arith.constant 0 : i32
    %c0_i32_0 = arith.constant 0 : i32
    %c0_i32_1 = arith.constant 0 : i32
    return %c0_i32, %c0_i32_0 : i32, i32
  }
  func.func @transform_3(%arg0: i32) -> (i32, i32) {
    %c0_i32 = arith.constant 0 : i32
    %c0_i32_0 = arith.constant 0 : i32
    %c0_i32_1 = arith.constant 0 : i32
    return %c0_i32, %c0_i32_0 : i32, i32
  }
  func.func @transform_4(%arg0: i32) -> (i32, i32) {
    %c0_i32 = arith.constant 0 : i32
    %c0_i32_0 = arith.constant 0 : i32
    %c0_i32_1 = arith.constant 0 : i32
    return %c0_i32, %c0_i32_0 : i32, i32
  }
  func.func @transform_5(%arg0: i32) -> (i32, i32) {
    %c0_i32 = arith.constant 0 : i32
    %c0_i32_0 = arith.constant 0 : i32
    return %arg0, %c0_i32 : i32, i32
  }
}

</mosaic_0001>

<llo_original>
// kernel: tpu_custom_call.1
$region0: #{tpu_custom_call.1}
  #allocation0 [shape = 'u32[]', space=smem, size = 0x4, offset = 0x4, fixed_abs, tag = 'smem constant byte address 0x4 - core index']
  #allocation1 [shape = 'u32[144,128]{1,0:T(1,128)}', space=vmem, size = 0x12000, scoped, tag = 'internal scratch']
  %s0 = inlined_call_operand.vmem [shape: f32[64,32], index: 0, kind: input, shape index: {}]
  %s1 = inlined_call_operand.vmem [shape: bf16[32,512], index: 1, kind: input, shape index: {}]
  %s2 = inlined_call_operand.vmem [shape: f32[1,512], index: 2, kind: input, shape index: {}]
  %s3 = inlined_call_operand.vmem [shape: bf16[512,784], index: 3, kind: input, shape index: {}]
  %s4 = inlined_call_operand.vmem [shape: f32[1,784], index: 4, kind: input, shape index: {}]
  %s5 = inlined_call_operand.hbm [shape: bf16[64,784], index: 5, kind: output, shape index: {}]
  %s6 = sld [smem:[#allocation0]]
  $region53: #{tpu_custom_call.1} parent=0
    _
  %s8 = ssub.s32 1, %s6
  %s9 = scalar_select 0, %s8, %s6
  $region1: #{tpu_custom_call.1} parent=0
    #allocation2 [shape = 'u8[114688]{0}', space=vmem, size = 0x1c000, scoped, tag = 'output window, operand 0']
    #allocation3 [shape = 's32[2]{0}', space=sflag, size = 0x8, scoped, tag = 'scoped memory for tpu_custom_call.1']
    %10 = vsyncpa [#allocation3], 0
    %s11 = scalar_lea.sflag [#allocation3], 1
    %12 = vsyncpa %s11, 0
    loop: start=0, step=1, limit=4
    $region2: #{tpu_custom_call.1} parent=1 // loop_pre_header
      _
    $region3: #{tpu_custom_call.1} parent=1 // loop_header
      %s14 = sphi 0, %s18
      %p15 = scmp.ge.s32.totalorder %s14, 4
      %s24 = sphi 0, %s26
      %s27 = sphi 0, %s24
      %s28 = sphi 0, %s27
      %s44 = sphi 0, %s28
      %s48 = sphi 0, %s48
      %s50 = sphi 0, %s48
      %s51 = sphi 0, %s50
      %s65 = sphi 0, %s51
      %s69 = sphi 0, %s69
      %s71 = sphi 0, %s69
      %s72 = sphi 0, %s71
      %s86 = sphi 0, %s72
      %s90 = sphi 0, %s90
      %s92 = sphi 0, %s90
      %s93 = sphi 0, %s92
      %s107 = sphi 0, %s93
      %s111 = sphi 0, %s111
      %s113 = sphi 0, %s111
      %s114 = sphi 0, %s113
      %s128 = sphi 0, %s114
      %s134 = sphi 0, %s136
      %s137 = sphi 0, %s134
      %s138 = sphi 0, %s137
      %s154 = sphi 0, %s138
    $region4: #{tpu_custom_call.1} parent=1 // loop_header_branch
      %17 = sbr.rel (%p15) target = $region8
    $region5: #{tpu_custom_call.1} parent=1 // loop_body
      %s19 = ssub.s32 %s14, 1
      %s20 = ssub.s32 %s14, 2
      %s21 = sadd.s32 %s14, 1
      %s22 = ssub.s32 %s14, %s21
      %p23 = scmp.eq.s32.totalorder %s22, 0
      %s25 = sadd.s32 %s24, 1
      %s26 = scalar_select %p23, %s24, %s25
      %p29 = pneg %p23
      %p30 = scmp.eq.s32.totalorder %s14, 1
      %p31 = por %p29, %p30
      %p32 = scmp.ne.s32.totalorder %s24, %s27
      %p33 = scmp.eq.s32.totalorder %s14, 0
      %p34 = por %p32, %p33
      %p35 = scmp.ne.s32.totalorder %s24, %s27
      %p36 = scmp.eq.s32.totalorder %s19, 1
      %p37 = por %p35, %p36
      %p38 = scmp.ne.s32.totalorder %s27, %s28
      %p39 = scmp.eq.s32.totalorder %s19, 0
      %p40 = por %p38, %p39
      %p41 = scmp.ne.s32.totalorder %s27, %s28
      %p42 = scmp.eq.s32.totalorder %s20, 1
      %p43 = por %p41, %p42
      %p45 = scmp.ne.s32.totalorder %s28, %s44
      %p46 = scmp.eq.s32.totalorder %s20, 0
      %p47 = por %p45, %p46
      %s49 = sadd.s32 %s48, 1
      %p52 = scmp.eq.s32.totalorder %s14, 1
      %p53 = scmp.ne.s32.totalorder %s48, %s50
      %p54 = scmp.eq.s32.totalorder %s14, 0
      %p55 = por %p53, %p54
      %p56 = scmp.ne.s32.totalorder %s48, %s50
      %p57 = scmp.eq.s32.totalorder %s19, 1
      %p58 = por %p56, %p57
      %p59 = scmp.ne.s32.totalorder %s50, %s51
      %p60 = scmp.eq.s32.totalorder %s19, 0
      %p61 = por %p59, %p60
      %p62 = scmp.ne.s32.totalorder %s50, %s51
      %p63 = scmp.eq.s32.totalorder %s20, 1
      %p64 = por %p62, %p63
      %p66 = scmp.ne.s32.totalorder %s51, %s65
      %p67 = scmp.eq.s32.totalorder %s20, 0
      %p68 = por %p66, %p67
      %s70 = sadd.s32 %s69, 1
      %p73 = scmp.eq.s32.totalorder %s14, 1
      %p74 = scmp.ne.s32.totalorder %s69, %s71
      %p75 = scmp.eq.s32.totalorder %s14, 0
      %p76 = por %p74, %p75
      %p77 = scmp.ne.s32.totalorder %s69, %s71
      %p78 = scmp.eq.s32.totalorder %s19, 1
      %p79 = por %p77, %p78
      %p80 = scmp.ne.s32.totalorder %s71, %s72
      %p81 = scmp.eq.s32.totalorder %s19, 0
      %p82 = por %p80, %p81
      %p83 = scmp.ne.s32.totalorder %s71, %s72
      %p84 = scmp.eq.s32.totalorder %s20, 1
      %p85 = por %p83, %p84
      %p87 = scmp.ne.s32.totalorder %s72, %s86
      %p88 = scmp.eq.s32.totalorder %s20, 0
      %p89 = por %p87, %p88
      %s91 = sadd.s32 %s90, 1
      %p94 = scmp.eq.s32.totalorder %s14, 1
      %p95 = scmp.ne.s32.totalorder %s90, %s92
      %p96 = scmp.eq.s32.totalorder %s14, 0
      %p97 = por %p95, %p96
      %p98 = scmp.ne.s32.totalorder %s90, %s92
      %p99 = scmp.eq.s32.totalorder %s19, 1
      %p100 = por %p98, %p99
      %p101 = scmp.ne.s32.totalorder %s92, %s93
      %p102 = scmp.eq.s32.totalorder %s19, 0
      %p103 = por %p101, %p102
      %p104 = scmp.ne.s32.totalorder %s92, %s93
      %p105 = scmp.eq.s32.totalorder %s20, 1
      %p106 = por %p104, %p105
      %p108 = scmp.ne.s32.totalorder %s93, %s107
      %p109 = scmp.eq.s32.totalorder %s20, 0
      %p110 = por %p108, %p109
      %s112 = sadd.s32 %s111, 1
      %p115 = scmp.eq.s32.totalorder %s14, 1
      %p116 = scmp.ne.s32.totalorder %s111, %s113
      %p117 = scmp.eq.s32.totalorder %s14, 0
      %p118 = por %p116, %p117
      %p119 = scmp.ne.s32.totalorder %s111, %s113
      %p120 = scmp.eq.s32.totalorder %s19, 1
      %p121 = por %p119, %p120
      %p122 = scmp.ne.s32.totalorder %s113, %s114
      %p123 = scmp.eq.s32.totalorder %s19, 0
      %p124 = por %p122, %p123
      %p125 = scmp.ne.s32.totalorder %s113, %s114
      %p126 = scmp.eq.s32.totalorder %s20, 1
      %p127 = por %p125, %p126
      %p129 = scmp.ne.s32.totalorder %s114, %s128
      %p130 = scmp.eq.s32.totalorder %s20, 0
      %p131 = por %p129, %p130
      %s132 = ssub.s32 %s14, %s21
      %p133 = scmp.eq.s32.totalorder %s132, 0
      %s135 = sadd.s32 %s134, 1
      %s136 = scalar_select %p133, %s134, %s135
      %p139 = pneg %p133
      %p140 = scmp.eq.s32.totalorder %s14, 1
      %p141 = por %p139, %p140
      %p142 = scmp.ne.s32.totalorder %s134, %s137
      %p143 = scmp.eq.s32.totalorder %s14, 0
      %p144 = por %p142, %p143
      %p145 = scmp.ne.s32.totalorder %s134, %s137
      %p146 = scmp.eq.s32.totalorder %s19, 1
      %p147 = por %p145, %p146
      %p148 = scmp.ne.s32.totalorder %s137, %s138
      %p149 = scmp.eq.s32.totalorder %s19, 0
      %p150 = por %p148, %p149
      %p151 = scmp.ne.s32.totalorder %s137, %s138
      %p152 = scmp.eq.s32.totalorder %s20, 1
      %p153 = por %p151, %p152
      %p155 = scmp.ne.s32.totalorder %s138, %s154
      %p156 = scmp.eq.s32.totalorder %s20, 0
      %p157 = por %p155, %p156
      %p158 = scmp.le.s32.totalorder 1, %s14
      %p159 = scmp.lt.s32.totalorder %s14, 3
      %p160 = pnand %p158, %p159
      %p161 = pneg %p160
      // Predicated region
      $region9: #{tpu_custom_call.1} parent=5 // pred_check
        _
      $region10: #{tpu_custom_call.1} parent=5 // pred_check_branch
        %163 = sbr.rel (%p160) target = $region12
      $region11: #{tpu_custom_call.1} parent=5 // pred_region
        %s164 = ssub.s32 %s14, 1
        // Predicated region
        $region13: #{tpu_custom_call.1} parent=11 // pred_check
          %p165 = pneg %p61
        $region14: #{tpu_custom_call.1} parent=11 // pred_check_branch
          %167 = sbr.rel (%p165) target = $region16
        $region15: #{tpu_custom_call.1} parent=11 // pred_region
          _
        $region16: #{tpu_custom_call.1} parent=11 // pred_fallthru
          _
        // Predicated region
        $region17: #{tpu_custom_call.1} parent=11 // pred_check
          %p168 = pneg %p82
        $region18: #{tpu_custom_call.1} parent=11 // pred_check_branch
          %170 = sbr.rel (%p168) target = $region20
        $region19: #{tpu_custom_call.1} parent=11 // pred_region
          _
        $region20: #{tpu_custom_call.1} parent=11 // pred_fallthru
          _
        // Predicated region
        $region21: #{tpu_custom_call.1} parent=11 // pred_check
          %p171 = pneg %p103
        $region22: #{tpu_custom_call.1} parent=11 // pred_check_branch
          %173 = sbr.rel (%p171) target = $region24
        $region23: #{tpu_custom_call.1} parent=11 // pred_region
          _
        $region24: #{tpu_custom_call.1} parent=11 // pred_fallthru
          _
        // Predicated region
        $region25: #{tpu_custom_call.1} parent=11 // pred_check
          %p174 = pneg %p124
        $region26: #{tpu_custom_call.1} parent=11 // pred_check_branch
          %176 = sbr.rel (%p174) target = $region28
        $region27: #{tpu_custom_call.1} parent=11 // pred_region
          _
        $region28: #{tpu_custom_call.1} parent=11 // pred_fallthru
          _
      $region12: #{tpu_custom_call.1} parent=5 // pred_fallthru
        _
      %p177 = scmp.lt.s32.totalorder %s14, 2
      // Predicated region
      $region29: #{tpu_custom_call.1} parent=5 // pred_check
        %p178 = pneg %p177
      $region30: #{tpu_custom_call.1} parent=5 // pred_check_branch
        %180 = sbr.rel (%p178) target = $region32
      $region31: #{tpu_custom_call.1} parent=5 // pred_region
        // Predicated region
        $region33: #{tpu_custom_call.1} parent=31 // pred_check
          %p181 = pneg %p34
        $region34: #{tpu_custom_call.1} parent=31 // pred_check_branch
          %183 = sbr.rel (%p181) target = $region36
        $region35: #{tpu_custom_call.1} parent=31 // pred_region
          %s184 = smul.u32 4, %s14
          %p185 = scmp.lt.s32.totalorder %s184, 7
          %s186 = scalar_select %p185, %s184, 7
          %s187 = smul.addr %s186, 8
          %s188 = scalar_lea.vmem %s0, %s187
          %s189 = smul.u32 4, %s14
        $region36: #{tpu_custom_call.1} parent=31 // pred_fallthru
          _
      $region32: #{tpu_custom_call.1} parent=5 // pred_fallthru
        _
      %p190 = scmp.le.s32.totalorder 1, %s14
      %p191 = scmp.lt.s32.totalorder %s14, 3
      %p192 = pnand %p190, %p191
      %p193 = pneg %p192
      // Predicated region
      $region37: #{tpu_custom_call.1} parent=5 // pred_check
        _
      $region38: #{tpu_custom_call.1} parent=5 // pred_check_branch
        %195 = sbr.rel (%p192) target = $region40
      $region39: #{tpu_custom_call.1} parent=5 // pred_region
        %s196 = ssub.s32 %s14, 1
        %s197 = smul.u32 4, %s19
        %p198 = scmp.lt.s32.totalorder %s197, 7
        %s199 = scalar_select %p198, %s197, 7
        %s200 = smul.addr %s199, 8
        %s201 = scalar_lea.vmem %s0, %s200
        %p202 = pneg %p40
        %p203 = pneg %p37
        %p204 = pneg %p61
        %p205 = pneg %p58
        %p206 = pneg %p82
        %p207 = pneg %p79
        %p208 = pneg %p103
        %p209 = pneg %p100
        %p210 = pneg %p124
        %p211 = pneg %p121
        %p212 = pneg %p150
        %p213 = pneg %p147
        %s214 = sand.u32 %s137, 1
        %s215 = scalar_lea.sflag [#allocation3], %s214
        %s216 = sand.u32 %s137, 1
        %s217 = smul.addr %s216, 112
        %s218 = scalar_lea.vmem [#allocation2], %s217
        %s219 = smul.u32 4, %s19
        %p220 = scmp.lt.s32.totalorder %s219, 7
        %s221 = scalar_select %p220, %s219, 7
        %s222 = smul.addr %s221, 8
        %s223 = scalar_lea.vmem %s0, %s222
        %s224 = smul.u32 4, %s19
        %s225 = smul.u32 4, %s19
        %v227 = vld [vmem:[%s223] sm:$0xff]
        %v228 = vld [vmem:[%s223 + $0x8] sm:$0xff]
        %v229 = vld [vmem:[%s223 + $0x10] sm:$0xff]
        %v230 = vld [vmem:[%s223 + $0x18] sm:$0xff]
        %v231 = vpack.c.bf16 %v228, %v227
        %v232 = vpack.c.bf16 %v230, %v229
        %v233 = vld [vmem:[%s1] sm:$0xff]
        %v234 = vld [vmem:[%s1 + $0x8] sm:$0xff]
        %v235 = vld [vmem:[%s1 + $0x10] sm:$0xff]
        %v236 = vld [vmem:[%s1 + $0x18] sm:$0xff]
        %v237 = vld [vmem:[%s1 + $0x20] sm:$0xff]
        %v238 = vld [vmem:[%s1 + $0x28] sm:$0xff]
        %v239 = vld [vmem:[%s1 + $0x30] sm:$0xff]
        %v240 = vld [vmem:[%s1 + $0x38] sm:$0xff]
        %v241 = vld [vmem:[%s2] sm:$0xf]
        %v243 = vlaneseq
        %v244 = vshrl.u32 %v243, 7
        %v245 = vsub.s32 0, %v244
        %v246 = vrot.slane %v241, %v245
        %v247 = vlaneseq
        %v248 = vshrl.u32 %v247, 7
        %v249 = vsub.s32 1, %v248
        %v250 = vrot.slane %v241, %v249
        %v251 = vlaneseq
        %v252 = vshrl.u32 %v251, 7
        %v253 = vsub.s32 2, %v252
        %v254 = vrot.slane %v241, %v253
        %v255 = vlaneseq
        %v256 = vshrl.u32 %v255, 7
        %v257 = vsub.s32 3, %v256
        %v258 = vrot.slane %v241, %v257
        %v271 = vunpack.c.l.b16 %v233
        %v272 = vunpack.c.h.b16 %v233
        %v273 = vunpack.c.l.b16 %v234
        %v274 = vunpack.c.h.b16 %v234
        %v275 = vunpack.c.l.b16 %v235
        %v276 = vunpack.c.h.b16 %v235
        %v277 = vunpack.c.l.b16 %v236
        %v278 = vunpack.c.h.b16 %v236
        %v279 = vunpack.c.l.b16 %v237
        %v280 = vunpack.c.h.b16 %v237
        %v281 = vunpack.c.l.b16 %v238
        %v282 = vunpack.c.h.b16 %v238
        %v283 = vunpack.c.l.b16 %v239
        %v284 = vunpack.c.h.b16 %v239
        %v285 = vunpack.c.l.b16 %v240
        %v286 = vunpack.c.h.b16 %v240
        %v287 = vpack.c.b16 %v275, %v271
        %v288 = vpack.c.b16 %v276, %v272
        %v289 = vpack.c.b16 %v277, %v273
        %v290 = vpack.c.b16 %v278, %v274
        %v291 = vpack.c.b16 %v283, %v279
        %v292 = vpack.c.b16 %v284, %v280
        %v293 = vpack.c.b16 %v285, %v281
        %v294 = vpack.c.b16 %v286, %v282
        %vm303 = vcmask 261120
        %v305 = vsel %vm303, %v231, 0
        %v308 = vsel %vm303, %v232, 0
        %310 = vmatprep.subr.bf16.mxu0 %v288
        %311 = vmatpush1.bf16.msra.mxu0 %v287
        %312 = vmatprep.subr.bf16.mxu0 %v292
        %313 = vmatpush1.bf16.msra.mxu0 %v291
        %314 = vmatprep.subr.bf16.mxu0 0
        %315 = vmatpush1.bf16.msra.mxu0 0
        %316 = vmatprep.subr.bf16.mxu0 0
        %317 = vmatpush1.bf16.msra.mxu0 0
        %318 = vmatprep.subr.bf16.mxu0 0
        %319 = vmatpush1.bf16.msra.mxu0 0
        %320 = vmatprep.subr.bf16.mxu0 0
        %321 = vmatpush1.bf16.msra.mxu0 0
        %322 = vmatprep.subr.bf16.mxu0 0
        %323 = vmatpush1.bf16.msra.mxu0 0
        %324 = vmatprep.subr.bf16.mxu0 0
        %325 = vmatpush1.bf16.msra.mxu0 0
        %326 = vmatprep.subr.bf16.mxu0 0
        %327 = vmatpush1.bf16.msra.mxu0 0
        %328 = vmatprep.subr.bf16.mxu0 0
        %329 = vmatpush1.bf16.msra.mxu0 0
        %330 = vmatprep.subr.bf16.mxu0 0
        %331 = vmatpush1.bf16.msra.mxu0 0
        %332 = vmatprep.subr.bf16.mxu0 0
        %333 = vmatpush1.bf16.msra.mxu0 0
        %334 = vmatprep.subr.bf16.mxu0 0
        %335 = vmatpush1.bf16.msra.mxu0 0
        %336 = vmatprep.subr.bf16.mxu0 0
        %337 = vmatpush1.bf16.msra.mxu0 0
        %338 = vmatprep.subr.bf16.mxu0 0
        %339 = vmatpush1.bf16.msra.mxu0 0
        %340 = vmatprep.subr.bf16.mxu0 0
        %341 = vmatpush1.bf16.msra.mxu0 0
        %342 = vmatprep.mubr.bf16.mxu0 0
        %343 = vmatmul.mubr.bf16.gmra.mrb[0].mxu0 %v305
        %v344 = vpop.f32.mrb[0].mxu0
        %v345 = vadd.f32 %v246, %v344
        %v346 = vpop.f32.mrb[0].mxu0
        %v347 = vadd.f32 %v250, %v346
        %v348 = vpop.f32.mrb[0].mxu0
        %v349 = vadd.f32 %v246, %v348
        %v350 = vpop.f32.mrb[0].mxu0
        %v351 = vadd.f32 %v250, %v350
        %352 = vmatprep.mubr.bf16.mxu0 0
        %353 = vmatmul.mubr.bf16.gmra.mrb[0].mxu0 %v308
        %v354 = vpop.f32.mrb[0].mxu0
        %v355 = vadd.f32 %v246, %v354
        %v356 = vpop.f32.mrb[0].mxu0
        %v357 = vadd.f32 %v250, %v356
        %v358 = vpop.f32.mrb[0].mxu0
        %v359 = vadd.f32 %v246, %v358
        %v360 = vpop.f32.mrb[0].mxu0
        %v361 = vadd.f32 %v250, %v360
        %362 = vdwg.mxu0
        %363 = vmatprep.subr.bf16.mxu0 %v290
        %364 = vmatpush1.bf16.msra.mxu0 %v289
        %365 = vmatprep.subr.bf16.mxu0 %v294
        %366 = vmatpush1.bf16.msra.mxu0 %v293
        %367 = vmatprep.subr.bf16.mxu0 0
        %368 = vmatpush1.bf16.msra.mxu0 0
        %369 = vmatprep.subr.bf16.mxu0 0
        %370 = vmatpush1.bf16.msra.mxu0 0
        %371 = vmatprep.subr.bf16.mxu0 0
        %372 = vmatpush1.bf16.msra.mxu0 0
        %373 = vmatprep.subr.bf16.mxu0 0
        %374 = vmatpush1.bf16.msra.mxu0 0
        %375 = vmatprep.subr.bf16.mxu0 0
        %376 = vmatpush1.bf16.msra.mxu0 0
        %377 = vmatprep.subr.bf16.mxu0 0
        %378 = vmatpush1.bf16.msra.mxu0 0
        %379 = vmatprep.subr.bf16.mxu0 0
        %380 = vmatpush1.bf16.msra.mxu0 0
        %381 = vmatprep.subr.bf16.mxu0 0
        %382 = vmatpush1.bf16.msra.mxu0 0
        %383 = vmatprep.subr.bf16.mxu0 0
        %384 = vmatpush1.bf16.msra.mxu0 0
        %385 = vmatprep.subr.bf16.mxu0 0
        %386 = vmatpush1.bf16.msra.mxu0 0
        %387 = vmatprep.subr.bf16.mxu0 0
        %388 = vmatpush1.bf16.msra.mxu0 0
        %389 = vmatprep.subr.bf16.mxu0 0
        %390 = vmatpush1.bf16.msra.mxu0 0
        %391 = vmatprep.subr.bf16.mxu0 0
        %392 = vmatpush1.bf16.msra.mxu0 0
        %393 = vmatprep.subr.bf16.mxu0 0
        %394 = vmatpush1.bf16.msra.mxu0 0
        %395 = vmatprep.mubr.bf16.mxu0 0
        %396 = vmatmul.mubr.bf16.gmra.mrb[0].mxu0 %v305
        %v397 = vpop.f32.mrb[0].mxu0
        %v398 = vadd.f32 %v254, %v397
        %v399 = vpop.f32.mrb[0].mxu0
        %v400 = vadd.f32 %v258, %v399
        %v401 = vpop.f32.mrb[0].mxu0
        %v402 = vadd.f32 %v254, %v401
        %v403 = vpop.f32.mrb[0].mxu0
        %v404 = vadd.f32 %v258, %v403
        %405 = vmatprep.mubr.bf16.mxu0 0
        %406 = vmatmul.mubr.bf16.gmra.mrb[0].mxu0 %v308
        %v407 = vpop.f32.mrb[0].mxu0
        %v408 = vadd.f32 %v254, %v407
        %v409 = vpop.f32.mrb[0].mxu0
        %v410 = vadd.f32 %v258, %v409
        %v411 = vpop.f32.mrb[0].mxu0
        %v412 = vadd.f32 %v254, %v411
        %v413 = vpop.f32.mrb[0].mxu0
        %v414 = vadd.f32 %v258, %v413
        %415 = vdwg.mxu0
        %v416 = vmax.f32 %v345, 0.0
        %v417 = vmax.f32 %v347, 0.0
        %v418 = vmax.f32 %v398, 0.0
        %v419 = vmax.f32 %v400, 0.0
        %v420 = vmax.f32 %v349, 0.0
        %v421 = vmax.f32 %v351, 0.0
        %v422 = vmax.f32 %v402, 0.0
        %v423 = vmax.f32 %v404, 0.0
        %v424 = vmax.f32 %v355, 0.0
        %v425 = vmax.f32 %v357, 0.0
        %v426 = vmax.f32 %v408, 0.0
        %v427 = vmax.f32 %v410, 0.0
        %v428 = vmax.f32 %v359, 0.0
        %v429 = vmax.f32 %v361, 0.0
        %v430 = vmax.f32 %v412, 0.0
        %v431 = vmax.f32 %v414, 0.0
        %v432 = vpack.c.bf16 %v420, %v416
        %v433 = vpack.c.bf16 %v421, %v417
        %v434 = vpack.c.bf16 %v422, %v418
        %v435 = vpack.c.bf16 %v423, %v419
        %v436 = vpack.c.bf16 %v428, %v424
        %v437 = vpack.c.bf16 %v429, %v425
        %v438 = vpack.c.bf16 %v430, %v426
        %v439 = vpack.c.bf16 %v431, %v427
        %v440 = vld [vmem:[%s3] sm:$0xff]
        %v441 = vld [vmem:[%s3 + $0x8] sm:$0xff]
        %v442 = vld [vmem:[%s3 + $0x10] sm:$0xff]
        %v443 = vld [vmem:[%s3 + $0x18] sm:$0xf]
        %v444 = vld [vmem:[%s3 + $0x1c] sm:$0xff]
        %v445 = vld [vmem:[%s3 + $0x24] sm:$0xff]
        %v446 = vld [vmem:[%s3 + $0x2c] sm:$0xff]
        %v447 = vld [vmem:[%s3 + $0x34] sm:$0xf]
        %v448 = vld [vmem:[%s3 + $0x38] sm:$0xff]
        %v449 = vld [vmem:[%s3 + $0x40] sm:$0xff]
        %v450 = vld [vmem:[%s3 + $0x48] sm:$0xff]
        %v451 = vld [vmem:[%s3 + $0x50] sm:$0xf]
        %v452 = vld [vmem:[%s3 + $0x54] sm:$0xff]
        %v453 = vld [vmem:[%s3 + $0x5c] sm:$0xff]
        %v454 = vld [vmem:[%s3 + $0x64] sm:$0xff]
        %v455 = vld [vmem:[%s3 + $0x6c] sm:$0xf]
        %v456 = vld [vmem:[%s3 + $0x70] sm:$0xff]
        %v457 = vld [vmem:[%s3 + $0x78] sm:$0xff]
        %v458 = vld [vmem:[%s3 + $0x80] sm:$0xff]
        %v459 = vld [vmem:[%s3 + $0x88] sm:$0xf]
        %v460 = vld [vmem:[%s3 + $0x8c] sm:$0xff]
        %v461 = vld [vmem:[%s3 + $0x94] sm:$0xff]
        %v462 = vld [vmem:[%s3 + $0x9c] sm:$0xff]
        %v463 = vld [vmem:[%s3 + $0xa4] sm:$0xf]
        %v464 = vld [vmem:[%s3 + $0xa8] sm:$0xff]
        %v465 = vld [vmem:[%s3 + $0xb0] sm:$0xff]
        %v466 = vld [vmem:[%s3 + $0xb8] sm:$0xff]
        %v467 = vld [vmem:[%s3 + $0xc0] sm:$0xf]
        %v468 = vld [vmem:[%s3 + $0xc4] sm:$0xff]
        %v469 = vld [vmem:[%s3 + $0xcc] sm:$0xff]
        %v470 = vld [vmem:[%s3 + $0xd4] sm:$0xff]
        %v471 = vld [vmem:[%s3 + $0xdc] sm:$0xf]
        %v472 = vld [vmem:[%s3 + $0xe0] sm:$0xff]
        %v473 = vld [vmem:[%s3 + $0xe8] sm:$0xff]
        %v474 = vld [vmem:[%s3 + $0xf0] sm:$0xff]
        %v475 = vld [vmem:[%s3 + $0xf8] sm:$0xf]
        %v476 = vld [vmem:[%s3 + $0xfc] sm:$0xff]
        %v477 = vld [vmem:[%s3 + $0x104] sm:$0xff]
        %v478 = vld [vmem:[%s3 + $0x10c] sm:$0xff]
        %v479 = vld [vmem:[%s3 + $0x114] sm:$0xf]
        %v480 = vld [vmem:[%s3 + $0x118] sm:$0xff]
        %v481 = vld [vmem:[%s3 + $0x120] sm:$0xff]
        %v482 = vld [vmem:[%s3 + $0x128] sm:$0xff]
        %v483 = vld [vmem:[%s3 + $0x130] sm:$0xf]
        %v484 = vld [vmem:[%s3 + $0x134] sm:$0xff]
        %v485 = vld [vmem:[%s3 + $0x13c] sm:$0xff]
        %v486 = vld [vmem:[%s3 + $0x144] sm:$0xff]
        %v487 = vld [vmem:[%s3 + $0x14c] sm:$0xf]
        %v488 = vld [vmem:[%s3 + $0x150] sm:$0xff]
        %v489 = vld [vmem:[%s3 + $0x158] sm:$0xff]
        %v490 = vld [vmem:[%s3 + $0x160] sm:$0xff]
        %v491 = vld [vmem:[%s3 + $0x168] sm:$0xf]
        %v492 = vld [vmem:[%s3 + $0x16c] sm:$0xff]
        %v493 = vld [vmem:[%s3 + $0x174] sm:$0xff]
        %v494 = vld [vmem:[%s3 + $0x17c] sm:$0xff]
        %v495 = vld [vmem:[%s3 + $0x184] sm:$0xf]
        %v496 = vld [vmem:[%s3 + $0x188] sm:$0xff]
        %v497 = vld [vmem:[%s3 + $0x190] sm:$0xff]
        %v498 = vld [vmem:[%s3 + $0x198] sm:$0xff]
        %v499 = vld [vmem:[%s3 + $0x1a0] sm:$0xf]
        %v500 = vld [vmem:[%s3 + $0x1a4] sm:$0xff]
        %v501 = vld [vmem:[%s3 + $0x1ac] sm:$0xff]
        %v502 = vld [vmem:[%s3 + $0x1b4] sm:$0xff]
        %v503 = vld [vmem:[%s3 + $0x1bc] sm:$0xf]
        %v504 = vld [vmem:[%s3 + $0x1c0] sm:$0xff]
        %v505 = vld [vmem:[%s3 + $0x1c8] sm:$0xff]
        %v506 = vld [vmem:[%s3 + $0x1d0] sm:$0xff]
        %v507 = vld [vmem:[%s3 + $0x1d8] sm:$0xf]
        %v508 = vld [vmem:[%s3 + $0x1dc] sm:$0xff]
        %v509 = vld [vmem:[%s3 + $0x1e4] sm:$0xff]
        %v510 = vld [vmem:[%s3 + $0x1ec] sm:$0xff]
        %v511 = vld [vmem:[%s3 + $0x1f4] sm:$0xf]
        %v512 = vld [vmem:[%s3 + $0x1f8] sm:$0xff]
        %v513 = vld [vmem:[%s3 + $0x200] sm:$0xff]
        %v514 = vld [vmem:[%s3 + $0x208] sm:$0xff]
        %v515 = vld [vmem:[%s3 + $0x210] sm:$0xf]
        %v516 = vld [vmem:[%s3 + $0x214] sm:$0xff]
        %v517 = vld [vmem:[%s3 + $0x21c] sm:$0xff]
        %v518 = vld [vmem:[%s3 + $0x224] sm:$0xff]
        %v519 = vld [vmem:[%s3 + $0x22c] sm:$0xf]
        %v520 = vld [vmem:[%s3 + $0x230] sm:$0xff]
        %v521 = vld [vmem:[%s3 + $0x238] sm:$0xff]
        %v522 = vld [vmem:[%s3 + $0x240] sm:$0xff]
        %v523 = vld [vmem:[%s3 + $0x248] sm:$0xf]
        %v524 = vld [vmem:[%s3 + $0x24c] sm:$0xff]
        %v525 = vld [vmem:[%s3 + $0x254] sm:$0xff]
        %v526 = vld [vmem:[%s3 + $0x25c] sm:$0xff]
        %v527 = vld [vmem:[%s3 + $0x264] sm:$0xf]
        %v528 = vld [vmem:[%s3 + $0x268] sm:$0xff]
        %v529 = vld [vmem:[%s3 + $0x270] sm:$0xff]
        %v530 = vld [vmem:[%s3 + $0x278] sm:$0xff]
        %v531 = vld [vmem:[%s3 + $0x280] sm:$0xf]
        %v532 = vld [vmem:[%s3 + $0x284] sm:$0xff]
        %v533 = vld [vmem:[%s3 + $0x28c] sm:$0xff]
        %v534 = vld [vmem:[%s3 + $0x294] sm:$0xff]
        %v535 = vld [vmem:[%s3 + $0x29c] sm:$0xf]
        %v536 = vld [vmem:[%s3 + $0x2a0] sm:$0xff]
        %v537 = vld [vmem:[%s3 + $0x2a8] sm:$0xff]
        %v538 = vld [vmem:[%s3 + $0x2b0] sm:$0xff]
        %v539 = vld [vmem:[%s3 + $0x2b8] sm:$0xf]
        %v540 = vld [vmem:[%s3 + $0x2bc] sm:$0xff]
        %v541 = vld [vmem:[%s3 + $0x2c4] sm:$0xff]
        %v542 = vld [vmem:[%s3 + $0x2cc] sm:$0xff]
        %v543 = vld [vmem:[%s3 + $0x2d4] sm:$0xf]
        %v544 = vld [vmem:[%s3 + $0x2d8] sm:$0xff]
        %v545 = vld [vmem:[%s3 + $0x2e0] sm:$0xff]
        %v546 = vld [vmem:[%s3 + $0x2e8] sm:$0xff]
        %v547 = vld [vmem:[%s3 + $0x2f0] sm:$0xf]
        %v548 = vld [vmem:[%s3 + $0x2f4] sm:$0xff]
        %v549 = vld [vmem:[%s3 + $0x2fc] sm:$0xff]
        %v550 = vld [vmem:[%s3 + $0x304] sm:$0xff]
        %v551 = vld [vmem:[%s3 + $0x30c] sm:$0xf]
        %v552 = vld [vmem:[%s3 + $0x310] sm:$0xff]
        %v553 = vld [vmem:[%s3 + $0x318] sm:$0xff]
        %v554 = vld [vmem:[%s3 + $0x320] sm:$0xff]
        %v555 = vld [vmem:[%s3 + $0x328] sm:$0xf]
        %v556 = vld [vmem:[%s3 + $0x32c] sm:$0xff]
        %v557 = vld [vmem:[%s3 + $0x334] sm:$0xff]
        %v558 = vld [vmem:[%s3 + $0x33c] sm:$0xff]
        %v559 = vld [vmem:[%s3 + $0x344] sm:$0xf]
        %v560 = vld [vmem:[%s3 + $0x348] sm:$0xff]
        %v561 = vld [vmem:[%s3 + $0x350] sm:$0xff]
        %v562 = vld [vmem:[%s3 + $0x358] sm:$0xff]
        %v563 = vld [vmem:[%s3 + $0x360] sm:$0xf]
        %v564 = vld [vmem:[%s3 + $0x364] sm:$0xff]
        %v565 = vld [vmem:[%s3 + $0x36c] sm:$0xff]
        %v566 = vld [vmem:[%s3 + $0x374] sm:$0xff]
        %v567 = vld [vmem:[%s3 + $0x37c] sm:$0xf]
        %v568 = vld [vmem:[%s3 + $0x380] sm:$0xff]
        %v569 = vld [vmem:[%s3 + $0x388] sm:$0xff]
        %v570 = vld [vmem:[%s3 + $0x390] sm:$0xff]
        %v571 = vld [vmem:[%s3 + $0x398] sm:$0xf]
        %v572 = vld [vmem:[%s3 + $0x39c] sm:$0xff]
        %v573 = vld [vmem:[%s3 + $0x3a4] sm:$0xff]
        %v574 = vld [vmem:[%s3 + $0x3ac] sm:$0xff]
        %v575 = vld [vmem:[%s3 + $0x3b4] sm:$0xf]
        %v576 = vld [vmem:[%s3 + $0x3b8] sm:$0xff]
        %v577 = vld [vmem:[%s3 + $0x3c0] sm:$0xff]
        %v578 = vld [vmem:[%s3 + $0x3c8] sm:$0xff]
        %v579 = vld [vmem:[%s3 + $0x3d0] sm:$0xf]
        %v580 = vld [vmem:[%s3 + $0x3d4] sm:$0xff]
        %v581 = vld [vmem:[%s3 + $0x3dc] sm:$0xff]
        %v582 = vld [vmem:[%s3 + $0x3e4] sm:$0xff]
        %v583 = vld [vmem:[%s3 + $0x3ec] sm:$0xf]
        %v584 = vld [vmem:[%s3 + $0x3f0] sm:$0xff]
        %v585 = vld [vmem:[%s3 + $0x3f8] sm:$0xff]
        %v586 = vld [vmem:[%s3 + $0x400] sm:$0xff]
        %v587 = vld [vmem:[%s3 + $0x408] sm:$0xf]
        %v588 = vld [vmem:[%s3 + $0x40c] sm:$0xff]
        %v589 = vld [vmem:[%s3 + $0x414] sm:$0xff]
        %v590 = vld [vmem:[%s3 + $0x41c] sm:$0xff]
        %v591 = vld [vmem:[%s3 + $0x424] sm:$0xf]
        %v592 = vld [vmem:[%s3 + $0x428] sm:$0xff]
        %v593 = vld [vmem:[%s3 + $0x430] sm:$0xff]
        %v594 = vld [vmem:[%s3 + $0x438] sm:$0xff]
        %v595 = vld [vmem:[%s3 + $0x440] sm:$0xf]
        %v596 = vld [vmem:[%s3 + $0x444] sm:$0xff]
        %v597 = vld [vmem:[%s3 + $0x44c] sm:$0xff]
        %v598 = vld [vmem:[%s3 + $0x454] sm:$0xff]
        %v599 = vld [vmem:[%s3 + $0x45c] sm:$0xf]
        %v600 = vld [vmem:[%s3 + $0x460] sm:$0xff]
        %v601 = vld [vmem:[%s3 + $0x468] sm:$0xff]
        %v602 = vld [vmem:[%s3 + $0x470] sm:$0xff]
        %v603 = vld [vmem:[%s3 + $0x478] sm:$0xf]
        %v604 = vld [vmem:[%s3 + $0x47c] sm:$0xff]
        %v605 = vld [vmem:[%s3 + $0x484] sm:$0xff]
        %v606 = vld [vmem:[%s3 + $0x48c] sm:$0xff]
        %v607 = vld [vmem:[%s3 + $0x494] sm:$0xf]
        %v608 = vld [vmem:[%s3 + $0x498] sm:$0xff]
        %v609 = vld [vmem:[%s3 + $0x4a0] sm:$0xff]
        %v610 = vld [vmem:[%s3 + $0x4a8] sm:$0xff]
        %v611 = vld [vmem:[%s3 + $0x4b0] sm:$0xf]
        %v612 = vld [vmem:[%s3 + $0x4b4] sm:$0xff]
        %v613 = vld [vmem:[%s3 + $0x4bc] sm:$0xff]
        %v614 = vld [vmem:[%s3 + $0x4c4] sm:$0xff]
        %v615 = vld [vmem:[%s3 + $0x4cc] sm:$0xf]
        %v616 = vld [vmem:[%s3 + $0x4d0] sm:$0xff]
        %v617 = vld [vmem:[%s3 + $0x4d8] sm:$0xff]
        %v618 = vld [vmem:[%s3 + $0x4e0] sm:$0xff]
        %v619 = vld [vmem:[%s3 + $0x4e8] sm:$0xf]
        %v620 = vld [vmem:[%s3 + $0x4ec] sm:$0xff]
        %v621 = vld [vmem:[%s3 + $0x4f4] sm:$0xff]
        %v622 = vld [vmem:[%s3 + $0x4fc] sm:$0xff]
        %v623 = vld [vmem:[%s3 + $0x504] sm:$0xf]
        %v624 = vld [vmem:[%s3 + $0x508] sm:$0xff]
        %v625 = vld [vmem:[%s3 + $0x510] sm:$0xff]
        %v626 = vld [vmem:[%s3 + $0x518] sm:$0xff]
        %v627 = vld [vmem:[%s3 + $0x520] sm:$0xf]
        %v628 = vld [vmem:[%s3 + $0x524] sm:$0xff]
        %v629 = vld [vmem:[%s3 + $0x52c] sm:$0xff]
        %v630 = vld [vmem:[%s3 + $0x534] sm:$0xff]
        %v631 = vld [vmem:[%s3 + $0x53c] sm:$0xf]
        %v632 = vld [vmem:[%s3 + $0x540] sm:$0xff]
        %v633 = vld [vmem:[%s3 + $0x548] sm:$0xff]
        %v634 = vld [vmem:[%s3 + $0x550] sm:$0xff]
        %v635 = vld [vmem:[%s3 + $0x558] sm:$0xf]
        %v636 = vld [vmem:[%s3 + $0x55c] sm:$0xff]
        %v637 = vld [vmem:[%s3 + $0x564] sm:$0xff]
        %v638 = vld [vmem:[%s3 + $0x56c] sm:$0xff]
        %v639 = vld [vmem:[%s3 + $0x574] sm:$0xf]
        %v640 = vld [vmem:[%s3 + $0x578] sm:$0xff]
        %v641 = vld [vmem:[%s3 + $0x580] sm:$0xff]
        %v642 = vld [vmem:[%s3 + $0x588] sm:$0xff]
        %v643 = vld [vmem:[%s3 + $0x590] sm:$0xf]
        %v644 = vld [vmem:[%s3 + $0x594] sm:$0xff]
        %v645 = vld [vmem:[%s3 + $0x59c] sm:$0xff]
        %v646 = vld [vmem:[%s3 + $0x5a4] sm:$0xff]
        %v647 = vld [vmem:[%s3 + $0x5ac] sm:$0xf]
        %v648 = vld [vmem:[%s3 + $0x5b0] sm:$0xff]
        %v649 = vld [vmem:[%s3 + $0x5b8] sm:$0xff]
        %v650 = vld [vmem:[%s3 + $0x5c0] sm:$0xff]
        %v651 = vld [vmem:[%s3 + $0x5c8] sm:$0xf]
        %v652 = vld [vmem:[%s3 + $0x5cc] sm:$0xff]
        %v653 = vld [vmem:[%s3 + $0x5d4] sm:$0xff]
        %v654 = vld [vmem:[%s3 + $0x5dc] sm:$0xff]
        %v655 = vld [vmem:[%s3 + $0x5e4] sm:$0xf]
        %v656 = vld [vmem:[%s3 + $0x5e8] sm:$0xff]
        %v657 = vld [vmem:[%s3 + $0x5f0] sm:$0xff]
        %v658 = vld [vmem:[%s3 + $0x5f8] sm:$0xff]
        %v659 = vld [vmem:[%s3 + $0x600] sm:$0xf]
        %v660 = vld [vmem:[%s3 + $0x604] sm:$0xff]
        %v661 = vld [vmem:[%s3 + $0x60c] sm:$0xff]
        %v662 = vld [vmem:[%s3 + $0x614] sm:$0xff]
        %v663 = vld [vmem:[%s3 + $0x61c] sm:$0xf]
        %v664 = vld [vmem:[%s3 + $0x620] sm:$0xff]
        %v665 = vld [vmem:[%s3 + $0x628] sm:$0xff]
        %v666 = vld [vmem:[%s3 + $0x630] sm:$0xff]
        %v667 = vld [vmem:[%s3 + $0x638] sm:$0xf]
        %v668 = vld [vmem:[%s3 + $0x63c] sm:$0xff]
        %v669 = vld [vmem:[%s3 + $0x644] sm:$0xff]
        %v670 = vld [vmem:[%s3 + $0x64c] sm:$0xff]
        %v671 = vld [vmem:[%s3 + $0x654] sm:$0xf]
        %v672 = vld [vmem:[%s3 + $0x658] sm:$0xff]
        %v673 = vld [vmem:[%s3 + $0x660] sm:$0xff]
        %v674 = vld [vmem:[%s3 + $0x668] sm:$0xff]
        %v675 = vld [vmem:[%s3 + $0x670] sm:$0xf]
        %v676 = vld [vmem:[%s3 + $0x674] sm:$0xff]
        %v677 = vld [vmem:[%s3 + $0x67c] sm:$0xff]
        %v678 = vld [vmem:[%s3 + $0x684] sm:$0xff]
        %v679 = vld [vmem:[%s3 + $0x68c] sm:$0xf]
        %v680 = vld [vmem:[%s3 + $0x690] sm:$0xff]
        %v681 = vld [vmem:[%s3 + $0x698] sm:$0xff]
        %v682 = vld [vmem:[%s3 + $0x6a0] sm:$0xff]
        %v683 = vld [vmem:[%s3 + $0x6a8] sm:$0xf]
        %v684 = vld [vmem:[%s3 + $0x6ac] sm:$0xff]
        %v685 = vld [vmem:[%s3 + $0x6b4] sm:$0xff]
        %v686 = vld [vmem:[%s3 + $0x6bc] sm:$0xff]
        %v687 = vld [vmem:[%s3 + $0x6c4] sm:$0xf]
        %v688 = vld [vmem:[%s3 + $0x6c8] sm:$0xff]
        %v689 = vld [vmem:[%s3 + $0x6d0] sm:$0xff]
        %v690 = vld [vmem:[%s3 + $0x6d8] sm:$0xff]
        %v691 = vld [vmem:[%s3 + $0x6e0] sm:$0xf]
        %v692 = vld [vmem:[%s3 + $0x6e4] sm:$0xff]
        %v693 = vld [vmem:[%s3 + $0x6ec] sm:$0xff]
        %v694 = vld [vmem:[%s3 + $0x6f4] sm:$0xff]
        %v695 = vld [vmem:[%s3 + $0x6fc] sm:$0xf]
        %v696 = vld [vmem:[%s4] sm:$0x7f]
        %v698 = vlaneseq
        %v699 = vshrl.u32 %v698, 7
        %v700 = vsub.s32 0, %v699
        %v701 = vrot.slane %v696, %v700
        %v702 = vlaneseq
        %v703 = vshrl.u32 %v702, 7
        %v704 = vsub.s32 1, %v703
        %v705 = vrot.slane %v696, %v704
        %v706 = vlaneseq
        %v707 = vshrl.u32 %v706, 7
        %v708 = vsub.s32 2, %v707
        %v709 = vrot.slane %v696, %v708
        %v710 = vlaneseq
        %v711 = vshrl.u32 %v710, 7
        %v712 = vsub.s32 3, %v711
        %v713 = vrot.slane %v696, %v712
        %v714 = vlaneseq
        %v715 = vshrl.u32 %v714, 7
        %v716 = vsub.s32 4, %v715
        %v717 = vrot.slane %v696, %v716
        %v718 = vlaneseq
        %v719 = vshrl.u32 %v718, 7
        %v720 = vsub.s32 5, %v719
        %v721 = vrot.slane %v696, %v720
        %v722 = vlaneseq
        %v723 = vshrl.u32 %v722, 7
        %v724 = vsub.s32 6, %v723
        %v725 = vrot.slane %v696, %v724
        %v989 = vunpack.c.l.b16 %v440
        %v990 = vunpack.c.h.b16 %v440
        %v991 = vunpack.c.l.b16 %v441
        %v992 = vunpack.c.h.b16 %v441
        %v993 = vunpack.c.l.b16 %v442
        %v994 = vunpack.c.h.b16 %v442
        %v995 = vunpack.c.l.b16 %v443
        %v996 = vunpack.c.l.b16 %v444
        %v997 = vunpack.c.h.b16 %v444
        %v998 = vunpack.c.l.b16 %v445
        %v999 = vunpack.c.h.b16 %v445
        %v1000 = vunpack.c.l.b16 %v446
        %v1001 = vunpack.c.h.b16 %v446
        %v1002 = vunpack.c.l.b16 %v447
        %v1003 = vunpack.c.l.b16 %v448
        %v1004 = vunpack.c.h.b16 %v448
        %v1005 = vunpack.c.l.b16 %v449
        %v1006 = vunpack.c.h.b16 %v449
        %v1007 = vunpack.c.l.b16 %v450
        %v1008 = vunpack.c.h.b16 %v450
        %v1009 = vunpack.c.l.b16 %v451
        %v1010 = vunpack.c.l.b16 %v452
        %v1011 = vunpack.c.h.b16 %v452
        %v1012 = vunpack.c.l.b16 %v453
        %v1013 = vunpack.c.h.b16 %v453
        %v1014 = vunpack.c.l.b16 %v454
        %v1015 = vunpack.c.h.b16 %v454
        %v1016 = vunpack.c.l.b16 %v455
        %v1017 = vunpack.c.l.b16 %v456
        %v1018 = vunpack.c.h.b16 %v456
        %v1019 = vunpack.c.l.b16 %v457
        %v1020 = vunpack.c.h.b16 %v457
        %v1021 = vunpack.c.l.b16 %v458
        %v1022 = vunpack.c.h.b16 %v458
        %v1023 = vunpack.c.l.b16 %v459
        %v1024 = vunpack.c.l.b16 %v460
        %v1025 = vunpack.c.h.b16 %v460
        %v1026 = vunpack.c.l.b16 %v461
        %v1027 = vunpack.c.h.b16 %v461
        %v1028 = vunpack.c.l.b16 %v462
        %v1029 = vunpack.c.h.b16 %v462
        %v1030 = vunpack.c.l.b16 %v463
        %v1031 = vunpack.c.l.b16 %v464
        %v1032 = vunpack.c.h.b16 %v464
        %v1033 = vunpack.c.l.b16 %v465
        %v1034 = vunpack.c.h.b16 %v465
        %v1035 = vunpack.c.l.b16 %v466
        %v1036 = vunpack.c.h.b16 %v466
        %v1037 = vunpack.c.l.b16 %v467
        %v1038 = vunpack.c.l.b16 %v468
        %v1039 = vunpack.c.h.b16 %v468
        %v1040 = vunpack.c.l.b16 %v469
        %v1041 = vunpack.c.h.b16 %v469
        %v1042 = vunpack.c.l.b16 %v470
        %v1043 = vunpack.c.h.b16 %v470
        %v1044 = vunpack.c.l.b16 %v471
        %v1045 = vunpack.c.l.b16 %v472
        %v1046 = vunpack.c.h.b16 %v472
        %v1047 = vunpack.c.l.b16 %v473
        %v1048 = vunpack.c.h.b16 %v473
        %v1049 = vunpack.c.l.b16 %v474
        %v1050 = vunpack.c.h.b16 %v474
        %v1051 = vunpack.c.l.b16 %v475
        %v1052 = vunpack.c.l.b16 %v476
        %v1053 = vunpack.c.h.b16 %v476
        %v1054 = vunpack.c.l.b16 %v477
        %v1055 = vunpack.c.h.b16 %v477
        %v1056 = vunpack.c.l.b16 %v478
        %v1057 = vunpack.c.h.b16 %v478
        %v1058 = vunpack.c.l.b16 %v479
        %v1059 = vunpack.c.l.b16 %v480
        %v1060 = vunpack.c.h.b16 %v480
        %v1061 = vunpack.c.l.b16 %v481
        %v1062 = vunpack.c.h.b16 %v481
        %v1063 = vunpack.c.l.b16 %v482
        %v1064 = vunpack.c.h.b16 %v482
        %v1065 = vunpack.c.l.b16 %v483
        %v1066 = vunpack.c.l.b16 %v484
        %v1067 = vunpack.c.h.b16 %v484
        %v1068 = vunpack.c.l.b16 %v485
        %v1069 = vunpack.c.h.b16 %v485
        %v1070 = vunpack.c.l.b16 %v486
        %v1071 = vunpack.c.h.b16 %v486
        %v1072 = vunpack.c.l.b16 %v487
        %v1073 = vunpack.c.l.b16 %v488
        %v1074 = vunpack.c.h.b16 %v488
        %v1075 = vunpack.c.l.b16 %v489
        %v1076 = vunpack.c.h.b16 %v489
        %v1077 = vunpack.c.l.b16 %v490
        %v1078 = vunpack.c.h.b16 %v490
        %v1079 = vunpack.c.l.b16 %v491
        %v1080 = vunpack.c.l.b16 %v492
        %v1081 = vunpack.c.h.b16 %v492
        %v1082 = vunpack.c.l.b16 %v493
        %v1083 = vunpack.c.h.b16 %v493
        %v1084 = vunpack.c.l.b16 %v494
        %v1085 = vunpack.c.h.b16 %v494
        %v1086 = vunpack.c.l.b16 %v495
        %v1087 = vunpack.c.l.b16 %v496
        %v1088 = vunpack.c.h.b16 %v496
        %v1089 = vunpack.c.l.b16 %v497
        %v1090 = vunpack.c.h.b16 %v497
        %v1091 = vunpack.c.l.b16 %v498
        %v1092 = vunpack.c.h.b16 %v498
        %v1093 = vunpack.c.l.b16 %v499
        %v1094 = vunpack.c.l.b16 %v500
        %v1095 = vunpack.c.h.b16 %v500
        %v1096 = vunpack.c.l.b16 %v501
        %v1097 = vunpack.c.h.b16 %v501
        %v1098 = vunpack.c.l.b16 %v502
        %v1099 = vunpack.c.h.b16 %v502
        %v1100 = vunpack.c.l.b16 %v503
        %v1101 = vunpack.c.l.b16 %v504
        %v1102 = vunpack.c.h.b16 %v504
        %v1103 = vunpack.c.l.b16 %v505
        %v1104 = vunpack.c.h.b16 %v505
        %v1105 = vunpack.c.l.b16 %v506
        %v1106 = vunpack.c.h.b16 %v506
        %v1107 = vunpack.c.l.b16 %v507
        %v1108 = vunpack.c.l.b16 %v508
        %v1109 = vunpack.c.h.b16 %v508
        %v1110 = vunpack.c.l.b16 %v509
        %v1111 = vunpack.c.h.b16 %v509
        %v1112 = vunpack.c.l.b16 %v510
        %v1113 = vunpack.c.h.b16 %v510
        %v1114 = vunpack.c.l.b16 %v511
        %v1115 = vunpack.c.l.b16 %v512
        %v1116 = vunpack.c.h.b16 %v512
        %v1117 = vunpack.c.l.b16 %v513
        %v1118 = vunpack.c.h.b16 %v513
        %v1119 = vunpack.c.l.b16 %v514
        %v1120 = vunpack.c.h.b16 %v514
        %v1121 = vunpack.c.l.b16 %v515
        %v1122 = vunpack.c.l.b16 %v516
        %v1123 = vunpack.c.h.b16 %v516
        %v1124 = vunpack.c.l.b16 %v517
        %v1125 = vunpack.c.h.b16 %v517
        %v1126 = vunpack.c.l.b16 %v518
        %v1127 = vunpack.c.h.b16 %v518
        %v1128 = vunpack.c.l.b16 %v519
        %v1129 = vunpack.c.l.b16 %v520
        %v1130 = vunpack.c.h.b16 %v520
        %v1131 = vunpack.c.l.b16 %v521
        %v1132 = vunpack.c.h.b16 %v521
        %v1133 = vunpack.c.l.b16 %v522
        %v1134 = vunpack.c.h.b16 %v522
        %v1135 = vunpack.c.l.b16 %v523
        %v1136 = vunpack.c.l.b16 %v524
        %v1137 = vunpack.c.h.b16 %v524
        %v1138 = vunpack.c.l.b16 %v525
        %v1139 = vunpack.c.h.b16 %v525
        %v1140 = vunpack.c.l.b16 %v526
        %v1141 = vunpack.c.h.b16 %v526
        %v1142 = vunpack.c.l.b16 %v527
        %v1143 = vunpack.c.l.b16 %v528
        %v1144 = vunpack.c.h.b16 %v528
        %v1145 = vunpack.c.l.b16 %v529
        %v1146 = vunpack.c.h.b16 %v529
        %v1147 = vunpack.c.l.b16 %v530
        %v1148 = vunpack.c.h.b16 %v530
        %v1149 = vunpack.c.l.b16 %v531
        %v1150 = vunpack.c.l.b16 %v532
        %v1151 = vunpack.c.h.b16 %v532
        %v1152 = vunpack.c.l.b16 %v533
        %v1153 = vunpack.c.h.b16 %v533
        %v1154 = vunpack.c.l.b16 %v534
        %v1155 = vunpack.c.h.b16 %v534
        %v1156 = vunpack.c.l.b16 %v535
        %v1157 = vunpack.c.l.b16 %v536
        %v1158 = vunpack.c.h.b16 %v536
        %v1159 = vunpack.c.l.b16 %v537
        %v1160 = vunpack.c.h.b16 %v537
        %v1161 = vunpack.c.l.b16 %v538
        %v1162 = vunpack.c.h.b16 %v538
        %v1163 = vunpack.c.l.b16 %v539
        %v1164 = vunpack.c.l.b16 %v540
        %v1165 = vunpack.c.h.b16 %v540
        %v1166 = vunpack.c.l.b16 %v541
        %v1167 = vunpack.c.h.b16 %v541
        %v1168 = vunpack.c.l.b16 %v542
        %v1169 = vunpack.c.h.b16 %v542
        %v1170 = vunpack.c.l.b16 %v543
        %v1171 = vunpack.c.l.b16 %v544
        %v1172 = vunpack.c.h.b16 %v544
        %v1173 = vunpack.c.l.b16 %v545
        %v1174 = vunpack.c.h.b16 %v545
        %v1175 = vunpack.c.l.b16 %v546
        %v1176 = vunpack.c.h.b16 %v546
        %v1177 = vunpack.c.l.b16 %v547
        %v1178 = vunpack.c.l.b16 %v548
        %v1179 = vunpack.c.h.b16 %v548
        %v1180 = vunpack.c.l.b16 %v549
        %v1181 = vunpack.c.h.b16 %v549
        %v1182 = vunpack.c.l.b16 %v550
        %v1183 = vunpack.c.h.b16 %v550
        %v1184 = vunpack.c.l.b16 %v551
        %v1185 = vunpack.c.l.b16 %v552
        %v1186 = vunpack.c.h.b16 %v552
        %v1187 = vunpack.c.l.b16 %v553
        %v1188 = vunpack.c.h.b16 %v553
        %v1189 = vunpack.c.l.b16 %v554
        %v1190 = vunpack.c.h.b16 %v554
        %v1191 = vunpack.c.l.b16 %v555
        %v1192 = vunpack.c.l.b16 %v556
        %v1193 = vunpack.c.h.b16 %v556
        %v1194 = vunpack.c.l.b16 %v557
        %v1195 = vunpack.c.h.b16 %v557
        %v1196 = vunpack.c.l.b16 %v558
        %v1197 = vunpack.c.h.b16 %v558
        %v1198 = vunpack.c.l.b16 %v559
        %v1199 = vunpack.c.l.b16 %v560
        %v1200 = vunpack.c.h.b16 %v560
        %v1201 = vunpack.c.l.b16 %v561
        %v1202 = vunpack.c.h.b16 %v561
        %v1203 = vunpack.c.l.b16 %v562
        %v1204 = vunpack.c.h.b16 %v562
        %v1205 = vunpack.c.l.b16 %v563
        %v1206 = vunpack.c.l.b16 %v564
        %v1207 = vunpack.c.h.b16 %v564
        %v1208 = vunpack.c.l.b16 %v565
        %v1209 = vunpack.c.h.b16 %v565
        %v1210 = vunpack.c.l.b16 %v566
        %v1211 = vunpack.c.h.b16 %v566
        %v1212 = vunpack.c.l.b16 %v567
        %v1213 = vunpack.c.l.b16 %v568
        %v1214 = vunpack.c.h.b16 %v568
        %v1215 = vunpack.c.l.b16 %v569
        %v1216 = vunpack.c.h.b16 %v569
        %v1217 = vunpack.c.l.b16 %v570
        %v1218 = vunpack.c.h.b16 %v570
        %v1219 = vunpack.c.l.b16 %v571
        %v1220 = vunpack.c.l.b16 %v572
        %v1221 = vunpack.c.h.b16 %v572
        %v1222 = vunpack.c.l.b16 %v573
        %v1223 = vunpack.c.h.b16 %v573
        %v1224 = vunpack.c.l.b16 %v574
        %v1225 = vunpack.c.h.b16 %v574
        %v1226 = vunpack.c.l.b16 %v575
        %v1227 = vunpack.c.l.b16 %v576
        %v1228 = vunpack.c.h.b16 %v576
        %v1229 = vunpack.c.l.b16 %v577
        %v1230 = vunpack.c.h.b16 %v577
        %v1231 = vunpack.c.l.b16 %v578
        %v1232 = vunpack.c.h.b16 %v578
        %v1233 = vunpack.c.l.b16 %v579
        %v1234 = vunpack.c.l.b16 %v580
        %v1235 = vunpack.c.h.b16 %v580
        %v1236 = vunpack.c.l.b16 %v581
        %v1237 = vunpack.c.h.b16 %v581
        %v1238 = vunpack.c.l.b16 %v582
        %v1239 = vunpack.c.h.b16 %v582
        %v1240 = vunpack.c.l.b16 %v583
        %v1241 = vunpack.c.l.b16 %v584
        %v1242 = vunpack.c.h.b16 %v584
        %v1243 = vunpack.c.l.b16 %v585
        %v1244 = vunpack.c.h.b16 %v585
        %v1245 = vunpack.c.l.b16 %v586
        %v1246 = vunpack.c.h.b16 %v586
        %v1247 = vunpack.c.l.b16 %v587
        %v1248 = vunpack.c.l.b16 %v588
        %v1249 = vunpack.c.h.b16 %v588
        %v1250 = vunpack.c.l.b16 %v589
        %v1251 = vunpack.c.h.b16 %v589
        %v1252 = vunpack.c.l.b16 %v590
        %v1253 = vunpack.c.h.b16 %v590
        %v1254 = vunpack.c.l.b16 %v591
        %v1255 = vunpack.c.l.b16 %v592
        %v1256 = vunpack.c.h.b16 %v592
        %v1257 = vunpack.c.l.b16 %v593
        %v1258 = vunpack.c.h.b16 %v593
        %v1259 = vunpack.c.l.b16 %v594
        %v1260 = vunpack.c.h.b16 %v594
        %v1261 = vunpack.c.l.b16 %v595
        %v1262 = vunpack.c.l.b16 %v596
        %v1263 = vunpack.c.h.b16 %v596
        %v1264 = vunpack.c.l.b16 %v597
        %v1265 = vunpack.c.h.b16 %v597
        %v1266 = vunpack.c.l.b16 %v598
        %v1267 = vunpack.c.h.b16 %v598
        %v1268 = vunpack.c.l.b16 %v599
        %v1269 = vunpack.c.l.b16 %v600
        %v1270 = vunpack.c.h.b16 %v600
        %v1271 = vunpack.c.l.b16 %v601
        %v1272 = vunpack.c.h.b16 %v601
        %v1273 = vunpack.c.l.b16 %v602
        %v1274 = vunpack.c.h.b16 %v602
        %v1275 = vunpack.c.l.b16 %v603
        %v1276 = vunpack.c.l.b16 %v604
        %v1277 = vunpack.c.h.b16 %v604
        %v1278 = vunpack.c.l.b16 %v605
        %v1279 = vunpack.c.h.b16 %v605
        %v1280 = vunpack.c.l.b16 %v606
        %v1281 = vunpack.c.h.b16 %v606
        %v1282 = vunpack.c.l.b16 %v607
        %v1283 = vunpack.c.l.b16 %v608
        %v1284 = vunpack.c.h.b16 %v608
        %v1285 = vunpack.c.l.b16 %v609
        %v1286 = vunpack.c.h.b16 %v609
        %v1287 = vunpack.c.l.b16 %v610
        %v1288 = vunpack.c.h.b16 %v610
        %v1289 = vunpack.c.l.b16 %v611
        %v1290 = vunpack.c.l.b16 %v612
        %v1291 = vunpack.c.h.b16 %v612
        %v1292 = vunpack.c.l.b16 %v613
        %v1293 = vunpack.c.h.b16 %v613
        %v1294 = vunpack.c.l.b16 %v614
        %v1295 = vunpack.c.h.b16 %v614
        %v1296 = vunpack.c.l.b16 %v615
        %v1297 = vunpack.c.l.b16 %v616
        %v1298 = vunpack.c.h.b16 %v616
        %v1299 = vunpack.c.l.b16 %v617
        %v1300 = vunpack.c.h.b16 %v617
        %v1301 = vunpack.c.l.b16 %v618
        %v1302 = vunpack.c.h.b16 %v618
        %v1303 = vunpack.c.l.b16 %v619
        %v1304 = vunpack.c.l.b16 %v620
        %v1305 = vunpack.c.h.b16 %v620
        %v1306 = vunpack.c.l.b16 %v621
        %v1307 = vunpack.c.h.b16 %v621
        %v1308 = vunpack.c.l.b16 %v622
        %v1309 = vunpack.c.h.b16 %v622
        %v1310 = vunpack.c.l.b16 %v623
        %v1311 = vunpack.c.l.b16 %v624
        %v1312 = vunpack.c.h.b16 %v624
        %v1313 = vunpack.c.l.b16 %v625
        %v1314 = vunpack.c.h.b16 %v625
        %v1315 = vunpack.c.l.b16 %v626
        %v1316 = vunpack.c.h.b16 %v626
        %v1317 = vunpack.c.l.b16 %v627
        %v1318 = vunpack.c.l.b16 %v628
        %v1319 = vunpack.c.h.b16 %v628
        %v1320 = vunpack.c.l.b16 %v629
        %v1321 = vunpack.c.h.b16 %v629
        %v1322 = vunpack.c.l.b16 %v630
        %v1323 = vunpack.c.h.b16 %v630
        %v1324 = vunpack.c.l.b16 %v631
        %v1325 = vunpack.c.l.b16 %v632
        %v1326 = vunpack.c.h.b16 %v632
        %v1327 = vunpack.c.l.b16 %v633
        %v1328 = vunpack.c.h.b16 %v633
        %v1329 = vunpack.c.l.b16 %v634
        %v1330 = vunpack.c.h.b16 %v634
        %v1331 = vunpack.c.l.b16 %v635
        %v1332 = vunpack.c.l.b16 %v636
        %v1333 = vunpack.c.h.b16 %v636
        %v1334 = vunpack.c.l.b16 %v637
        %v1335 = vunpack.c.h.b16 %v637
        %v1336 = vunpack.c.l.b16 %v638
        %v1337 = vunpack.c.h.b16 %v638
        %v1338 = vunpack.c.l.b16 %v639
        %v1339 = vunpack.c.l.b16 %v640
        %v1340 = vunpack.c.h.b16 %v640
        %v1341 = vunpack.c.l.b16 %v641
        %v1342 = vunpack.c.h.b16 %v641
        %v1343 = vunpack.c.l.b16 %v642
        %v1344 = vunpack.c.h.b16 %v642
        %v1345 = vunpack.c.l.b16 %v643
        %v1346 = vunpack.c.l.b16 %v644
        %v1347 = vunpack.c.h.b16 %v644
        %v1348 = vunpack.c.l.b16 %v645
        %v1349 = vunpack.c.h.b16 %v645
        %v1350 = vunpack.c.l.b16 %v646
        %v1351 = vunpack.c.h.b16 %v646
        %v1352 = vunpack.c.l.b16 %v647
        %v1353 = vunpack.c.l.b16 %v648
        %v1354 = vunpack.c.h.b16 %v648
        %v1355 = vunpack.c.l.b16 %v649
        %v1356 = vunpack.c.h.b16 %v649
        %v1357 = vunpack.c.l.b16 %v650
        %v1358 = vunpack.c.h.b16 %v650
        %v1359 = vunpack.c.l.b16 %v651
        %v1360 = vunpack.c.l.b16 %v652
        %v1361 = vunpack.c.h.b16 %v652
        %v1362 = vunpack.c.l.b16 %v653
        %v1363 = vunpack.c.h.b16 %v653
        %v1364 = vunpack.c.l.b16 %v654
        %v1365 = vunpack.c.h.b16 %v654
        %v1366 = vunpack.c.l.b16 %v655
        %v1367 = vunpack.c.l.b16 %v656
        %v1368 = vunpack.c.h.b16 %v656
        %v1369 = vunpack.c.l.b16 %v657
        %v1370 = vunpack.c.h.b16 %v657
        %v1371 = vunpack.c.l.b16 %v658
        %v1372 = vunpack.c.h.b16 %v658
        %v1373 = vunpack.c.l.b16 %v659
        %v1374 = vunpack.c.l.b16 %v660
        %v1375 = vunpack.c.h.b16 %v660
        %v1376 = vunpack.c.l.b16 %v661
        %v1377 = vunpack.c.h.b16 %v661
        %v1378 = vunpack.c.l.b16 %v662
        %v1379 = vunpack.c.h.b16 %v662
        %v1380 = vunpack.c.l.b16 %v663
        %v1381 = vunpack.c.l.b16 %v664
        %v1382 = vunpack.c.h.b16 %v664
        %v1383 = vunpack.c.l.b16 %v665
        %v1384 = vunpack.c.h.b16 %v665
        %v1385 = vunpack.c.l.b16 %v666
        %v1386 = vunpack.c.h.b16 %v666
        %v1387 = vunpack.c.l.b16 %v667
        %v1388 = vunpack.c.l.b16 %v668
        %v1389 = vunpack.c.h.b16 %v668
        %v1390 = vunpack.c.l.b16 %v669
        %v1391 = vunpack.c.h.b16 %v669
        %v1392 = vunpack.c.l.b16 %v670
        %v1393 = vunpack.c.h.b16 %v670
        %v1394 = vunpack.c.l.b16 %v671
        %v1395 = vunpack.c.l.b16 %v672
        %v1396 = vunpack.c.h.b16 %v672
        %v1397 = vunpack.c.l.b16 %v673
        %v1398 = vunpack.c.h.b16 %v673
        %v1399 = vunpack.c.l.b16 %v674
        %v1400 = vunpack.c.h.b16 %v674
        %v1401 = vunpack.c.l.b16 %v675
        %v1402 = vunpack.c.l.b16 %v676
        %v1403 = vunpack.c.h.b16 %v676
        %v1404 = vunpack.c.l.b16 %v677
        %v1405 = vunpack.c.h.b16 %v677
        %v1406 = vunpack.c.l.b16 %v678
        %v1407 = vunpack.c.h.b16 %v678
        %v1408 = vunpack.c.l.b16 %v679
        %v1409 = vunpack.c.l.b16 %v680
        %v1410 = vunpack.c.h.b16 %v680
        %v1411 = vunpack.c.l.b16 %v681
        %v1412 = vunpack.c.h.b16 %v681
        %v1413 = vunpack.c.l.b16 %v682
        %v1414 = vunpack.c.h.b16 %v682
        %v1415 = vunpack.c.l.b16 %v683
        %v1416 = vunpack.c.l.b16 %v684
        %v1417 = vunpack.c.h.b16 %v684
        %v1418 = vunpack.c.l.b16 %v685
        %v1419 = vunpack.c.h.b16 %v685
        %v1420 = vunpack.c.l.b16 %v686
        %v1421 = vunpack.c.h.b16 %v686
        %v1422 = vunpack.c.l.b16 %v687
        %v1423 = vunpack.c.l.b16 %v688
        %v1424 = vunpack.c.h.b16 %v688
        %v1425 = vunpack.c.l.b16 %v689
        %v1426 = vunpack.c.h.b16 %v689
        %v1427 = vunpack.c.l.b16 %v690
        %v1428 = vunpack.c.h.b16 %v690
        %v1429 = vunpack.c.l.b16 %v691
        %v1430 = vunpack.c.l.b16 %v692
        %v1431 = vunpack.c.h.b16 %v692
        %v1432 = vunpack.c.l.b16 %v693
        %v1433 = vunpack.c.h.b16 %v693
        %v1434 = vunpack.c.l.b16 %v694
        %v1435 = vunpack.c.h.b16 %v694
        %v1436 = vunpack.c.l.b16 %v695
        %v1437 = vpack.c.b16 %v996, %v989
        %v1438 = vpack.c.b16 %v997, %v990
        %v1439 = vpack.c.b16 %v998, %v991
        %v1440 = vpack.c.b16 %v999, %v992
        %v1441 = vpack.c.b16 %v1000, %v993
        %v1442 = vpack.c.b16 %v1001, %v994
        %v1443 = vpack.c.b16 %v1002, %v995
        %v1444 = vpack.c.b16 %v1010, %v1003
        %v1445 = vpack.c.b16 %v1011, %v1004
        %v1446 = vpack.c.b16 %v1012, %v1005
        %v1447 = vpack.c.b16 %v1013, %v1006
        %v1448 = vpack.c.b16 %v1014, %v1007
        %v1449 = vpack.c.b16 %v1015, %v1008
        %v1450 = vpack.c.b16 %v1016, %v1009
        %v1451 = vpack.c.b16 %v1024, %v1017
        %v1452 = vpack.c.b16 %v1025, %v1018
        %v1453 = vpack.c.b16 %v1026, %v1019
        %v1454 = vpack.c.b16 %v1027, %v1020
        %v1455 = vpack.c.b16 %v1028, %v1021
        %v1456 = vpack.c.b16 %v1029, %v1022
        %v1457 = vpack.c.b16 %v1030, %v1023
        %v1458 = vpack.c.b16 %v1038, %v1031
        %v1459 = vpack.c.b16 %v1039, %v1032
        %v1460 = vpack.c.b16 %v1040, %v1033
        %v1461 = vpack.c.b16 %v1041, %v1034
        %v1462 = vpack.c.b16 %v1042, %v1035
        %v1463 = vpack.c.b16 %v1043, %v1036
        %v1464 = vpack.c.b16 %v1044, %v1037
        %v1465 = vpack.c.b16 %v1052, %v1045
        %v1466 = vpack.c.b16 %v1053, %v1046
        %v1467 = vpack.c.b16 %v1054, %v1047
        %v1468 = vpack.c.b16 %v1055, %v1048
        %v1469 = vpack.c.b16 %v1056, %v1049
        %v1470 = vpack.c.b16 %v1057, %v1050
        %v1471 = vpack.c.b16 %v1058, %v1051
        %v1472 = vpack.c.b16 %v1066, %v1059
        %v1473 = vpack.c.b16 %v1067, %v1060
        %v1474 = vpack.c.b16 %v1068, %v1061
        %v1475 = vpack.c.b16 %v1069, %v1062
        %v1476 = vpack.c.b16 %v1070, %v1063
        %v1477 = vpack.c.b16 %v1071, %v1064
        %v1478 = vpack.c.b16 %v1072, %v1065
        %v1479 = vpack.c.b16 %v1080, %v1073
        %v1480 = vpack.c.b16 %v1081, %v1074
        %v1481 = vpack.c.b16 %v1082, %v1075
        %v1482 = vpack.c.b16 %v1083, %v1076
        %v1483 = vpack.c.b16 %v1084, %v1077
        %v1484 = vpack.c.b16 %v1085, %v1078
        %v1485 = vpack.c.b16 %v1086, %v1079
        %v1486 = vpack.c.b16 %v1094, %v1087
        %v1487 = vpack.c.b16 %v1095, %v1088
        %v1488 = vpack.c.b16 %v1096, %v1089
        %v1489 = vpack.c.b16 %v1097, %v1090
        %v1490 = vpack.c.b16 %v1098, %v1091
        %v1491 = vpack.c.b16 %v1099, %v1092
        %v1492 = vpack.c.b16 %v1100, %v1093
        %v1493 = vpack.c.b16 %v1108, %v1101
        %v1494 = vpack.c.b16 %v1109, %v1102
        %v1495 = vpack.c.b16 %v1110, %v1103
        %v1496 = vpack.c.b16 %v1111, %v1104
        %v1497 = vpack.c.b16 %v1112, %v1105
        %v1498 = vpack.c.b16 %v1113, %v1106
        %v1499 = vpack.c.b16 %v1114, %v1107
        %v1500 = vpack.c.b16 %v1122, %v1115
        %v1501 = vpack.c.b16 %v1123, %v1116
        %v1502 = vpack.c.b16 %v1124, %v1117
        %v1503 = vpack.c.b16 %v1125, %v1118
        %v1504 = vpack.c.b16 %v1126, %v1119
        %v1505 = vpack.c.b16 %v1127, %v1120
        %v1506 = vpack.c.b16 %v1128, %v1121
        %v1507 = vpack.c.b16 %v1136, %v1129
        %v1508 = vpack.c.b16 %v1137, %v1130
        %v1509 = vpack.c.b16 %v1138, %v1131
        %v1510 = vpack.c.b16 %v1139, %v1132
        %v1511 = vpack.c.b16 %v1140, %v1133
        %v1512 = vpack.c.b16 %v1141, %v1134
        %v1513 = vpack.c.b16 %v1142, %v1135
        %v1514 = vpack.c.b16 %v1150, %v1143
        %v1515 = vpack.c.b16 %v1151, %v1144
        %v1516 = vpack.c.b16 %v1152, %v1145
        %v1517 = vpack.c.b16 %v1153, %v1146
        %v1518 = vpack.c.b16 %v1154, %v1147
        %v1519 = vpack.c.b16 %v1155, %v1148
        %v1520 = vpack.c.b16 %v1156, %v1149
        %v1521 = vpack.c.b16 %v1164, %v1157
        %v1522 = vpack.c.b16 %v1165, %v1158
        %v1523 = vpack.c.b16 %v1166, %v1159
        %v1524 = vpack.c.b16 %v1167, %v1160
        %v1525 = vpack.c.b16 %v1168, %v1161
        %v1526 = vpack.c.b16 %v1169, %v1162
        %v1527 = vpack.c.b16 %v1170, %v1163
        %v1528 = vpack.c.b16 %v1178, %v1171
        %v1529 = vpack.c.b16 %v1179, %v1172
        %v1530 = vpack.c.b16 %v1180, %v1173
        %v1531 = vpack.c.b16 %v1181, %v1174
        %v1532 = vpack.c.b16 %v1182, %v1175
        %v1533 = vpack.c.b16 %v1183, %v1176
        %v1534 = vpack.c.b16 %v1184, %v1177
        %v1535 = vpack.c.b16 %v1192, %v1185
        %v1536 = vpack.c.b16 %v1193, %v1186
        %v1537 = vpack.c.b16 %v1194, %v1187
        %v1538 = vpack.c.b16 %v1195, %v1188
        %v1539 = vpack.c.b16 %v1196, %v1189
        %v1540 = vpack.c.b16 %v1197, %v1190
        %v1541 = vpack.c.b16 %v1198, %v1191
        %v1542 = vpack.c.b16 %v1206, %v1199
        %v1543 = vpack.c.b16 %v1207, %v1200
        %v1544 = vpack.c.b16 %v1208, %v1201
        %v1545 = vpack.c.b16 %v1209, %v1202
        %v1546 = vpack.c.b16 %v1210, %v1203
        %v1547 = vpack.c.b16 %v1211, %v1204
        %v1548 = vpack.c.b16 %v1212, %v1205
        %v1549 = vpack.c.b16 %v1220, %v1213
        %v1550 = vpack.c.b16 %v1221, %v1214
        %v1551 = vpack.c.b16 %v1222, %v1215
        %v1552 = vpack.c.b16 %v1223, %v1216
        %v1553 = vpack.c.b16 %v1224, %v1217
        %v1554 = vpack.c.b16 %v1225, %v1218
        %v1555 = vpack.c.b16 %v1226, %v1219
        %v1556 = vpack.c.b16 %v1234, %v1227
        %v1557 = vpack.c.b16 %v1235, %v1228
        %v1558 = vpack.c.b16 %v1236, %v1229
        %v1559 = vpack.c.b16 %v1237, %v1230
        %v1560 = vpack.c.b16 %v1238, %v1231
        %v1561 = vpack.c.b16 %v1239, %v1232
        %v1562 = vpack.c.b16 %v1240, %v1233
        %v1563 = vpack.c.b16 %v1248, %v1241
        %v1564 = vpack.c.b16 %v1249, %v1242
        %v1565 = vpack.c.b16 %v1250, %v1243
        %v1566 = vpack.c.b16 %v1251, %v1244
        %v1567 = vpack.c.b16 %v1252, %v1245
        %v1568 = vpack.c.b16 %v1253, %v1246
        %v1569 = vpack.c.b16 %v1254, %v1247
        %v1570 = vpack.c.b16 %v1262, %v1255
        %v1571 = vpack.c.b16 %v1263, %v1256
        %v1572 = vpack.c.b16 %v1264, %v1257
        %v1573 = vpack.c.b16 %v1265, %v1258
        %v1574 = vpack.c.b16 %v1266, %v1259
        %v1575 = vpack.c.b16 %v1267, %v1260
        %v1576 = vpack.c.b16 %v1268, %v1261
        %v1577 = vpack.c.b16 %v1276, %v1269
        %v1578 = vpack.c.b16 %v1277, %v1270
        %v1579 = vpack.c.b16 %v1278, %v1271
        %v1580 = vpack.c.b16 %v1279, %v1272
        %v1581 = vpack.c.b16 %v1280, %v1273
        %v1582 = vpack.c.b16 %v1281, %v1274
        %v1583 = vpack.c.b16 %v1282, %v1275
        %v1584 = vpack.c.b16 %v1290, %v1283
        %v1585 = vpack.c.b16 %v1291, %v1284
        %v1586 = vpack.c.b16 %v1292, %v1285
        %v1587 = vpack.c.b16 %v1293, %v1286
        %v1588 = vpack.c.b16 %v1294, %v1287
        %v1589 = vpack.c.b16 %v1295, %v1288
        %v1590 = vpack.c.b16 %v1296, %v1289
        %v1591 = vpack.c.b16 %v1304, %v1297
        %v1592 = vpack.c.b16 %v1305, %v1298
        %v1593 = vpack.c.b16 %v1306, %v1299
        %v1594 = vpack.c.b16 %v1307, %v1300
        %v1595 = vpack.c.b16 %v1308, %v1301
        %v1596 = vpack.c.b16 %v1309, %v1302
        %v1597 = vpack.c.b16 %v1310, %v1303
        %v1598 = vpack.c.b16 %v1318, %v1311
        %v1599 = vpack.c.b16 %v1319, %v1312
        %v1600 = vpack.c.b16 %v1320, %v1313
        %v1601 = vpack.c.b16 %v1321, %v1314
        %v1602 = vpack.c.b16 %v1322, %v1315
        %v1603 = vpack.c.b16 %v1323, %v1316
        %v1604 = vpack.c.b16 %v1324, %v1317
        %v1605 = vpack.c.b16 %v1332, %v1325
        %v1606 = vpack.c.b16 %v1333, %v1326
        %v1607 = vpack.c.b16 %v1334, %v1327
        %v1608 = vpack.c.b16 %v1335, %v1328
        %v1609 = vpack.c.b16 %v1336, %v1329
        %v1610 = vpack.c.b16 %v1337, %v1330
        %v1611 = vpack.c.b16 %v1338, %v1331
        %v1612 = vpack.c.b16 %v1346, %v1339
        %v1613 = vpack.c.b16 %v1347, %v1340
        %v1614 = vpack.c.b16 %v1348, %v1341
        %v1615 = vpack.c.b16 %v1349, %v1342
        %v1616 = vpack.c.b16 %v1350, %v1343
        %v1617 = vpack.c.b16 %v1351, %v1344
        %v1618 = vpack.c.b16 %v1352, %v1345
        %v1619 = vpack.c.b16 %v1360, %v1353
        %v1620 = vpack.c.b16 %v1361, %v1354
        %v1621 = vpack.c.b16 %v1362, %v1355
        %v1622 = vpack.c.b16 %v1363, %v1356
        %v1623 = vpack.c.b16 %v1364, %v1357
        %v1624 = vpack.c.b16 %v1365, %v1358
        %v1625 = vpack.c.b16 %v1366, %v1359
        %v1626 = vpack.c.b16 %v1374, %v1367
        %v1627 = vpack.c.b16 %v1375, %v1368
        %v1628 = vpack.c.b16 %v1376, %v1369
        %v1629 = vpack.c.b16 %v1377, %v1370
        %v1630 = vpack.c.b16 %v1378, %v1371
        %v1631 = vpack.c.b16 %v1379, %v1372
        %v1632 = vpack.c.b16 %v1380, %v1373
        %v1633 = vpack.c.b16 %v1388, %v1381
        %v1634 = vpack.c.b16 %v1389, %v1382
        %v1635 = vpack.c.b16 %v1390, %v1383
        %v1636 = vpack.c.b16 %v1391, %v1384
        %v1637 = vpack.c.b16 %v1392, %v1385
        %v1638 = vpack.c.b16 %v1393, %v1386
        %v1639 = vpack.c.b16 %v1394, %v1387
        %v1640 = vpack.c.b16 %v1402, %v1395
        %v1641 = vpack.c.b16 %v1403, %v1396
        %v1642 = vpack.c.b16 %v1404, %v1397
        %v1643 = vpack.c.b16 %v1405, %v1398
        %v1644 = vpack.c.b16 %v1406, %v1399
        %v1645 = vpack.c.b16 %v1407, %v1400
        %v1646 = vpack.c.b16 %v1408, %v1401
        %v1647 = vpack.c.b16 %v1416, %v1409
        %v1648 = vpack.c.b16 %v1417, %v1410
        %v1649 = vpack.c.b16 %v1418, %v1411
        %v1650 = vpack.c.b16 %v1419, %v1412
        %v1651 = vpack.c.b16 %v1420, %v1413
        %v1652 = vpack.c.b16 %v1421, %v1414
        %v1653 = vpack.c.b16 %v1422, %v1415
        %v1654 = vpack.c.b16 %v1430, %v1423
        %v1655 = vpack.c.b16 %v1431, %v1424
        %v1656 = vpack.c.b16 %v1432, %v1425
        %v1657 = vpack.c.b16 %v1433, %v1426
        %v1658 = vpack.c.b16 %v1434, %v1427
        %v1659 = vpack.c.b16 %v1435, %v1428
        %v1660 = vpack.c.b16 %v1436, %v1429
        %1885 = vmatprep.subr.bf16.mxu0 %v1438
        %1886 = vmatpush1.bf16.msra.mxu0 %v1437
        %1887 = vmatprep.subr.bf16.mxu0 %v1445
        %1888 = vmatpush1.bf16.msra.mxu0 %v1444
        %1889 = vmatprep.subr.bf16.mxu0 %v1452
        %1890 = vmatpush1.bf16.msra.mxu0 %v1451
        %1891 = vmatprep.subr.bf16.mxu0 %v1459
        %1892 = vmatpush1.bf16.msra.mxu0 %v1458
        %1893 = vmatprep.subr.bf16.mxu0 %v1466
        %1894 = vmatpush1.bf16.msra.mxu0 %v1465
        %1895 = vmatprep.subr.bf16.mxu0 %v1473
        %1896 = vmatpush1.bf16.msra.mxu0 %v1472
        %1897 = vmatprep.subr.bf16.mxu0 %v1480
        %1898 = vmatpush1.bf16.msra.mxu0 %v1479
        %1899 = vmatprep.subr.bf16.mxu0 %v1487
        %1900 = vmatpush1.bf16.msra.mxu0 %v1486
        %1901 = vmatprep.subr.bf16.mxu0 %v1494
        %1902 = vmatpush1.bf16.msra.mxu0 %v1493
        %1903 = vmatprep.subr.bf16.mxu0 %v1501
        %1904 = vmatpush1.bf16.msra.mxu0 %v1500
        %1905 = vmatprep.subr.bf16.mxu0 %v1508
        %1906 = vmatpush1.bf16.msra.mxu0 %v1507
        %1907 = vmatprep.subr.bf16.mxu0 %v1515
        %1908 = vmatpush1.bf16.msra.mxu0 %v1514
        %1909 = vmatprep.subr.bf16.mxu0 %v1522
        %1910 = vmatpush1.bf16.msra.mxu0 %v1521
        %1911 = vmatprep.subr.bf16.mxu0 %v1529
        %1912 = vmatpush1.bf16.msra.mxu0 %v1528
        %1913 = vmatprep.subr.bf16.mxu0 %v1536
        %1914 = vmatpush1.bf16.msra.mxu0 %v1535
        %1915 = vmatprep.subr.bf16.mxu0 %v1543
        %1916 = vmatpush1.bf16.msra.mxu0 %v1542
        %1917 = vmatprep.mubr.bf16.mxu0 %v433
        %1918 = vmatmul.mubr.bf16.gmra.mrb[0].mxu0 %v432
        %v1919 = vpop.f32.mrb[0].mxu0
        %v1920 = vadd.f32 %v701, %v1919
        %v1921 = vpop.f32.mrb[0].mxu0
        %v1922 = vadd.f32 %v705, %v1921
        %v1923 = vpop.f32.mrb[0].mxu0
        %v1924 = vadd.f32 %v701, %v1923
        %v1925 = vpop.f32.mrb[0].mxu0
        %v1926 = vadd.f32 %v705, %v1925
        %1927 = vmatprep.mubr.bf16.mxu0 %v437
        %1928 = vmatmul.mubr.bf16.gmra.mrb[0].mxu0 %v436
        %v1929 = vpop.f32.mrb[0].mxu0
        %v1930 = vadd.f32 %v701, %v1929
        %v1931 = vpop.f32.mrb[0].mxu0
        %v1932 = vadd.f32 %v705, %v1931
        %v1933 = vpop.f32.mrb[0].mxu0
        %v1934 = vadd.f32 %v701, %v1933
        %v1935 = vpop.f32.mrb[0].mxu0
        %v1936 = vadd.f32 %v705, %v1935
        %1937 = vdwg.mxu0
        %1938 = vmatprep.subr.bf16.mxu0 %v1550
        %1939 = vmatpush1.bf16.msra.mxu0 %v1549
        %1940 = vmatprep.subr.bf16.mxu0 %v1557
        %1941 = vmatpush1.bf16.msra.mxu0 %v1556
        %1942 = vmatprep.subr.bf16.mxu0 %v1564
        %1943 = vmatpush1.bf16.msra.mxu0 %v1563
        %1944 = vmatprep.subr.bf16.mxu0 %v1571
        %1945 = vmatpush1.bf16.msra.mxu0 %v1570
        %1946 = vmatprep.subr.bf16.mxu0 %v1578
        %1947 = vmatpush1.bf16.msra.mxu0 %v1577
        %1948 = vmatprep.subr.bf16.mxu0 %v1585
        %1949 = vmatpush1.bf16.msra.mxu0 %v1584
        %1950 = vmatprep.subr.bf16.mxu0 %v1592
        %1951 = vmatpush1.bf16.msra.mxu0 %v1591
        %1952 = vmatprep.subr.bf16.mxu0 %v1599
        %1953 = vmatpush1.bf16.msra.mxu0 %v1598
        %1954 = vmatprep.subr.bf16.mxu0 %v1606
        %1955 = vmatpush1.bf16.msra.mxu0 %v1605
        %1956 = vmatprep.subr.bf16.mxu0 %v1613
        %1957 = vmatpush1.bf16.msra.mxu0 %v1612
        %1958 = vmatprep.subr.bf16.mxu0 %v1620
        %1959 = vmatpush1.bf16.msra.mxu0 %v1619
        %1960 = vmatprep.subr.bf16.mxu0 %v1627
        %1961 = vmatpush1.bf16.msra.mxu0 %v1626
        %1962 = vmatprep.subr.bf16.mxu0 %v1634
        %1963 = vmatpush1.bf16.msra.mxu0 %v1633
        %1964 = vmatprep.subr.bf16.mxu0 %v1641
        %1965 = vmatpush1.bf16.msra.mxu0 %v1640
        %1966 = vmatprep.subr.bf16.mxu0 %v1648
        %1967 = vmatpush1.bf16.msra.mxu0 %v1647
        %1968 = vmatprep.subr.bf16.mxu0 %v1655
        %1969 = vmatpush1.bf16.msra.mxu0 %v1654
        %1970 = vmatprep.mubr.bf16.mxu0 %v435
        %1971 = vmatmul.mubr.bf16.gmra.mrb[0].mxu0 %v434
        %v1972 = vpop.f32.mrb[0].mxu0
        %v1973 = vadd.f32 %v1920, %v1972
        %v1974 = vpop.f32.mrb[0].mxu0
        %v1975 = vadd.f32 %v1922, %v1974
        %v1976 = vpop.f32.mrb[0].mxu0
        %v1977 = vadd.f32 %v1924, %v1976
        %v1978 = vpop.f32.mrb[0].mxu0
        %v1979 = vadd.f32 %v1926, %v1978
        %1980 = vmatprep.mubr.bf16.mxu0 %v439
        %1981 = vmatmul.mubr.bf16.gmra.mrb[0].mxu0 %v438
        %v1982 = vpop.f32.mrb[0].mxu0
        %v1983 = vadd.f32 %v1930, %v1982
        %v1984 = vpop.f32.mrb[0].mxu0
        %v1985 = vadd.f32 %v1932, %v1984
        %v1986 = vpop.f32.mrb[0].mxu0
        %v1987 = vadd.f32 %v1934, %v1986
        %v1988 = vpop.f32.mrb[0].mxu0
        %v1989 = vadd.f32 %v1936, %v1988
        %1990 = vdwg.mxu0
        %1991 = vmatprep.subr.bf16.mxu0 %v1440
        %1992 = vmatpush1.bf16.msra.mxu0 %v1439
        %1993 = vmatprep.subr.bf16.mxu0 %v1447
        %1994 = vmatpush1.bf16.msra.mxu0 %v1446
        %1995 = vmatprep.subr.bf16.mxu0 %v1454
        %1996 = vmatpush1.bf16.msra.mxu0 %v1453
        %1997 = vmatprep.subr.bf16.mxu0 %v1461
        %1998 = vmatpush1.bf16.msra.mxu0 %v1460
        %1999 = vmatprep.subr.bf16.mxu0 %v1468
        %2000 = vmatpush1.bf16.msra.mxu0 %v1467
        %2001 = vmatprep.subr.bf16.mxu0 %v1475
        %2002 = vmatpush1.bf16.msra.mxu0 %v1474
        %2003 = vmatprep.subr.bf16.mxu0 %v1482
        %2004 = vmatpush1.bf16.msra.mxu0 %v1481
        %2005 = vmatprep.subr.bf16.mxu0 %v1489
        %2006 = vmatpush1.bf16.msra.mxu0 %v1488
        %2007 = vmatprep.subr.bf16.mxu0 %v1496
        %2008 = vmatpush1.bf16.msra.mxu0 %v1495
        %2009 = vmatprep.subr.bf16.mxu0 %v1503
        %2010 = vmatpush1.bf16.msra.mxu0 %v1502
        %2011 = vmatprep.subr.bf16.mxu0 %v1510
        %2012 = vmatpush1.bf16.msra.mxu0 %v1509
        %2013 = vmatprep.subr.bf16.mxu0 %v1517
        %2014 = vmatpush1.bf16.msra.mxu0 %v1516
        %2015 = vmatprep.subr.bf16.mxu0 %v1524
        %2016 = vmatpush1.bf16.msra.mxu0 %v1523
        %2017 = vmatprep.subr.bf16.mxu0 %v1531
        %2018 = vmatpush1.bf16.msra.mxu0 %v1530
        %2019 = vmatprep.subr.bf16.mxu0 %v1538
        %2020 = vmatpush1.bf16.msra.mxu0 %v1537
        %2021 = vmatprep.subr.bf16.mxu0 %v1545
        %2022 = vmatpush1.bf16.msra.mxu0 %v1544
        %2023 = vmatprep.mubr.bf16.mxu0 %v433
        %2024 = vmatmul.mubr.bf16.gmra.mrb[0].mxu0 %v432
        %v2025 = vpop.f32.mrb[0].mxu0
        %v2026 = vadd.f32 %v709, %v2025
        %v2027 = vpop.f32.mrb[0].mxu0
        %v2028 = vadd.f32 %v713, %v2027
        %v2029 = vpop.f32.mrb[0].mxu0
        %v2030 = vadd.f32 %v709, %v2029
        %v2031 = vpop.f32.mrb[0].mxu0
        %v2032 = vadd.f32 %v713, %v2031
        %2033 = vmatprep.mubr.bf16.mxu0 %v437
        %2034 = vmatmul.mubr.bf16.gmra.mrb[0].mxu0 %v436
        %v2035 = vpop.f32.mrb[0].mxu0
        %v2036 = vadd.f32 %v709, %v2035
        %v2037 = vpop.f32.mrb[0].mxu0
        %v2038 = vadd.f32 %v713, %v2037
        %v2039 = vpop.f32.mrb[0].mxu0
        %v2040 = vadd.f32 %v709, %v2039
        %v2041 = vpop.f32.mrb[0].mxu0
        %v2042 = vadd.f32 %v713, %v2041
        %2043 = vdwg.mxu0
        %2044 = vmatprep.subr.bf16.mxu0 %v1552
        %2045 = vmatpush1.bf16.msra.mxu0 %v1551
        %2046 = vmatprep.subr.bf16.mxu0 %v1559
        %2047 = vmatpush1.bf16.msra.mxu0 %v1558
        %2048 = vmatprep.subr.bf16.mxu0 %v1566
        %2049 = vmatpush1.bf16.msra.mxu0 %v1565
        %2050 = vmatprep.subr.bf16.mxu0 %v1573
        %2051 = vmatpush1.bf16.msra.mxu0 %v1572
        %2052 = vmatprep.subr.bf16.mxu0 %v1580
        %2053 = vmatpush1.bf16.msra.mxu0 %v1579
        %2054 = vmatprep.subr.bf16.mxu0 %v1587
        %2055 = vmatpush1.bf16.msra.mxu0 %v1586
        %2056 = vmatprep.subr.bf16.mxu0 %v1594
        %2057 = vmatpush1.bf16.msra.mxu0 %v1593
        %2058 = vmatprep.subr.bf16.mxu0 %v1601
        %2059 = vmatpush1.bf16.msra.mxu0 %v1600
        %2060 = vmatprep.subr.bf16.mxu0 %v1608
        %2061 = vmatpush1.bf16.msra.mxu0 %v1607
        %2062 = vmatprep.subr.bf16.mxu0 %v1615
        %2063 = vmatpush1.bf16.msra.mxu0 %v1614
        %2064 = vmatprep.subr.bf16.mxu0 %v1622
        %2065 = vmatpush1.bf16.msra.mxu0 %v1621
        %2066 = vmatprep.subr.bf16.mxu0 %v1629
        %2067 = vmatpush1.bf16.msra.mxu0 %v1628
        %2068 = vmatprep.subr.bf16.mxu0 %v1636
        %2069 = vmatpush1.bf16.msra.mxu0 %v1635
        %2070 = vmatprep.subr.bf16.mxu0 %v1643
        %2071 = vmatpush1.bf16.msra.mxu0 %v1642
        %2072 = vmatprep.subr.bf16.mxu0 %v1650
        %2073 = vmatpush1.bf16.msra.mxu0 %v1649
        %2074 = vmatprep.subr.bf16.mxu0 %v1657
        %2075 = vmatpush1.bf16.msra.mxu0 %v1656
        %2076 = vmatprep.mubr.bf16.mxu0 %v435
        %2077 = vmatmul.mubr.bf16.gmra.mrb[0].mxu0 %v434
        %v2078 = vpop.f32.mrb[0].mxu0
        %v2079 = vadd.f32 %v2026, %v2078
        %v2080 = vpop.f32.mrb[0].mxu0
        %v2081 = vadd.f32 %v2028, %v2080
        %v2082 = vpop.f32.mrb[0].mxu0
        %v2083 = vadd.f32 %v2030, %v2082
        %v2084 = vpop.f32.mrb[0].mxu0
        %v2085 = vadd.f32 %v2032, %v2084
        %2086 = vmatprep.mubr.bf16.mxu0 %v439
        %2087 = vmatmul.mubr.bf16.gmra.mrb[0].mxu0 %v438
        %v2088 = vpop.f32.mrb[0].mxu0
        %v2089 = vadd.f32 %v2036, %v2088
        %v2090 = vpop.f32.mrb[0].mxu0
        %v2091 = vadd.f32 %v2038, %v2090
        %v2092 = vpop.f32.mrb[0].mxu0
        %v2093 = vadd.f32 %v2040, %v2092
        %v2094 = vpop.f32.mrb[0].mxu0
        %v2095 = vadd.f32 %v2042, %v2094
        %2096 = vdwg.mxu0
        %2097 = vmatprep.subr.bf16.mxu0 %v1442
        %2098 = vmatpush1.bf16.msra.mxu0 %v1441
        %2099 = vmatprep.subr.bf16.mxu0 %v1449
        %2100 = vmatpush1.bf16.msra.mxu0 %v1448
        %2101 = vmatprep.subr.bf16.mxu0 %v1456
        %2102 = vmatpush1.bf16.msra.mxu0 %v1455
        %2103 = vmatprep.subr.bf16.mxu0 %v1463
        %2104 = vmatpush1.bf16.msra.mxu0 %v1462
        %2105 = vmatprep.subr.bf16.mxu0 %v1470
        %2106 = vmatpush1.bf16.msra.mxu0 %v1469
        %2107 = vmatprep.subr.bf16.mxu0 %v1477
        %2108 = vmatpush1.bf16.msra.mxu0 %v1476
        %2109 = vmatprep.subr.bf16.mxu0 %v1484
        %2110 = vmatpush1.bf16.msra.mxu0 %v1483
        %2111 = vmatprep.subr.bf16.mxu0 %v1491
        %2112 = vmatpush1.bf16.msra.mxu0 %v1490
        %2113 = vmatprep.subr.bf16.mxu0 %v1498
        %2114 = vmatpush1.bf16.msra.mxu0 %v1497
        %2115 = vmatprep.subr.bf16.mxu0 %v1505
        %2116 = vmatpush1.bf16.msra.mxu0 %v1504
        %2117 = vmatprep.subr.bf16.mxu0 %v1512
        %2118 = vmatpush1.bf16.msra.mxu0 %v1511
        %2119 = vmatprep.subr.bf16.mxu0 %v1519
        %2120 = vmatpush1.bf16.msra.mxu0 %v1518
        %2121 = vmatprep.subr.bf16.mxu0 %v1526
        %2122 = vmatpush1.bf16.msra.mxu0 %v1525
        %2123 = vmatprep.subr.bf16.mxu0 %v1533
        %2124 = vmatpush1.bf16.msra.mxu0 %v1532
        %2125 = vmatprep.subr.bf16.mxu0 %v1540
        %2126 = vmatpush1.bf16.msra.mxu0 %v1539
        %2127 = vmatprep.subr.bf16.mxu0 %v1547
        %2128 = vmatpush1.bf16.msra.mxu0 %v1546
        %2129 = vmatprep.mubr.bf16.mxu0 %v433
        %2130 = vmatmul.mubr.bf16.gmra.mrb[0].mxu0 %v432
        %v2131 = vpop.f32.mrb[0].mxu0
        %v2132 = vadd.f32 %v717, %v2131
        %v2133 = vpop.f32.mrb[0].mxu0
        %v2134 = vadd.f32 %v721, %v2133
        %v2135 = vpop.f32.mrb[0].mxu0
        %v2136 = vadd.f32 %v717, %v2135
        %v2137 = vpop.f32.mrb[0].mxu0
        %v2138 = vadd.f32 %v721, %v2137
        %2139 = vmatprep.mubr.bf16.mxu0 %v437
        %2140 = vmatmul.mubr.bf16.gmra.mrb[0].mxu0 %v436
        %v2141 = vpop.f32.mrb[0].mxu0
        %v2142 = vadd.f32 %v717, %v2141
        %v2143 = vpop.f32.mrb[0].mxu0
        %v2144 = vadd.f32 %v721, %v2143
        %v2145 = vpop.f32.mrb[0].mxu0
        %v2146 = vadd.f32 %v717, %v2145
        %v2147 = vpop.f32.mrb[0].mxu0
        %v2148 = vadd.f32 %v721, %v2147
        %2149 = vdwg.mxu0
        %2150 = vmatprep.subr.bf16.mxu0 %v1554
        %2151 = vmatpush1.bf16.msra.mxu0 %v1553
        %2152 = vmatprep.subr.bf16.mxu0 %v1561
        %2153 = vmatpush1.bf16.msra.mxu0 %v1560
        %2154 = vmatprep.subr.bf16.mxu0 %v1568
        %2155 = vmatpush1.bf16.msra.mxu0 %v1567
        %2156 = vmatprep.subr.bf16.mxu0 %v1575
        %2157 = vmatpush1.bf16.msra.mxu0 %v1574
        %2158 = vmatprep.subr.bf16.mxu0 %v1582
        %2159 = vmatpush1.bf16.msra.mxu0 %v1581
        %2160 = vmatprep.subr.bf16.mxu0 %v1589
        %2161 = vmatpush1.bf16.msra.mxu0 %v1588
        %2162 = vmatprep.subr.bf16.mxu0 %v1596
        %2163 = vmatpush1.bf16.msra.mxu0 %v1595
        %2164 = vmatprep.subr.bf16.mxu0 %v1603
        %2165 = vmatpush1.bf16.msra.mxu0 %v1602
        %2166 = vmatprep.subr.bf16.mxu0 %v1610
        %2167 = vmatpush1.bf16.msra.mxu0 %v1609
        %2168 = vmatprep.subr.bf16.mxu0 %v1617
        %2169 = vmatpush1.bf16.msra.mxu0 %v1616
        %2170 = vmatprep.subr.bf16.mxu0 %v1624
        %2171 = vmatpush1.bf16.msra.mxu0 %v1623
        %2172 = vmatprep.subr.bf16.mxu0 %v1631
        %2173 = vmatpush1.bf16.msra.mxu0 %v1630
        %2174 = vmatprep.subr.bf16.mxu0 %v1638
        %2175 = vmatpush1.bf16.msra.mxu0 %v1637
        %2176 = vmatprep.subr.bf16.mxu0 %v1645
        %2177 = vmatpush1.bf16.msra.mxu0 %v1644
        %2178 = vmatprep.subr.bf16.mxu0 %v1652
        %2179 = vmatpush1.bf16.msra.mxu0 %v1651
        %2180 = vmatprep.subr.bf16.mxu0 %v1659
        %2181 = vmatpush1.bf16.msra.mxu0 %v1658
        %2182 = vmatprep.mubr.bf16.mxu0 %v435
        %2183 = vmatmul.mubr.bf16.gmra.mrb[0].mxu0 %v434
        %v2184 = vpop.f32.mrb[0].mxu0
        %v2185 = vadd.f32 %v2132, %v2184
        %v2186 = vpop.f32.mrb[0].mxu0
        %v2187 = vadd.f32 %v2134, %v2186
        %v2188 = vpop.f32.mrb[0].mxu0
        %v2189 = vadd.f32 %v2136, %v2188
        %v2190 = vpop.f32.mrb[0].mxu0
        %v2191 = vadd.f32 %v2138, %v2190
        %2192 = vmatprep.mubr.bf16.mxu0 %v439
        %2193 = vmatmul.mubr.bf16.gmra.mrb[0].mxu0 %v438
        %v2194 = vpop.f32.mrb[0].mxu0
        %v2195 = vadd.f32 %v2142, %v2194
        %v2196 = vpop.f32.mrb[0].mxu0
        %v2197 = vadd.f32 %v2144, %v2196
        %v2198 = vpop.f32.mrb[0].mxu0
        %v2199 = vadd.f32 %v2146, %v2198
        %v2200 = vpop.f32.mrb[0].mxu0
        %v2201 = vadd.f32 %v2148, %v2200
        %2202 = vdwg.mxu0
        %2203 = vmatprep.subr.bf16.mxu0 0
        %2204 = vmatpush1.bf16.msra.mxu0 %v1443
        %2205 = vmatprep.subr.bf16.mxu0 0
        %2206 = vmatpush1.bf16.msra.mxu0 %v1450
        %2207 = vmatprep.subr.bf16.mxu0 0
        %2208 = vmatpush1.bf16.msra.mxu0 %v1457
        %2209 = vmatprep.subr.bf16.mxu0 0
        %2210 = vmatpush1.bf16.msra.mxu0 %v1464
        %2211 = vmatprep.subr.bf16.mxu0 0
        %2212 = vmatpush1.bf16.msra.mxu0 %v1471
        %2213 = vmatprep.subr.bf16.mxu0 0
        %2214 = vmatpush1.bf16.msra.mxu0 %v1478
        %2215 = vmatprep.subr.bf16.mxu0 0
        %2216 = vmatpush1.bf16.msra.mxu0 %v1485
        %2217 = vmatprep.subr.bf16.mxu0 0
        %2218 = vmatpush1.bf16.msra.mxu0 %v1492
        %2219 = vmatprep.subr.bf16.mxu0 0
        %2220 = vmatpush1.bf16.msra.mxu0 %v1499
        %2221 = vmatprep.subr.bf16.mxu0 0
        %2222 = vmatpush1.bf16.msra.mxu0 %v1506
        %2223 = vmatprep.subr.bf16.mxu0 0
        %2224 = vmatpush1.bf16.msra.mxu0 %v1513
        %2225 = vmatprep.subr.bf16.mxu0 0
        %2226 = vmatpush1.bf16.msra.mxu0 %v1520
        %2227 = vmatprep.subr.bf16.mxu0 0
        %2228 = vmatpush1.bf16.msra.mxu0 %v1527
        %2229 = vmatprep.subr.bf16.mxu0 0
        %2230 = vmatpush1.bf16.msra.mxu0 %v1534
        %2231 = vmatprep.subr.bf16.mxu0 0
        %2232 = vmatpush1.bf16.msra.mxu0 %v1541
        %2233 = vmatprep.subr.bf16.mxu0 0
        %2234 = vmatpush1.bf16.msra.mxu0 %v1548
        %2235 = vmatprep.mubr.bf16.mxu0 %v433
        %2236 = vmatmul.mubr.bf16.gmra.mrb[0].mxu0 %v432
        %v2237 = vpop.f32.mrb[0].mxu0
        %v2238 = vadd.f32 %v725, %v2237
        %v2239 = vpop.f32.mrb[0].mxu0
        %v2240 = vpop.f32.mrb[0].mxu0
        %v2241 = vadd.f32 %v725, %v2240
        %v2242 = vpop.f32.mrb[0].mxu0
        %2243 = vmatprep.mubr.bf16.mxu0 %v437
        %2244 = vmatmul.mubr.bf16.gmra.mrb[0].mxu0 %v436
        %v2245 = vpop.f32.mrb[0].mxu0
        %v2246 = vadd.f32 %v725, %v2245
        %v2247 = vpop.f32.mrb[0].mxu0
        %v2248 = vpop.f32.mrb[0].mxu0
        %v2249 = vadd.f32 %v725, %v2248
        %v2250 = vpop.f32.mrb[0].mxu0
        %2251 = vdwg.mxu0
        %2252 = vmatprep.subr.bf16.mxu0 0
        %2253 = vmatpush1.bf16.msra.mxu0 %v1555
        %2254 = vmatprep.subr.bf16.mxu0 0
        %2255 = vmatpush1.bf16.msra.mxu0 %v1562
        %2256 = vmatprep.subr.bf16.mxu0 0
        %2257 = vmatpush1.bf16.msra.mxu0 %v1569
        %2258 = vmatprep.subr.bf16.mxu0 0
        %2259 = vmatpush1.bf16.msra.mxu0 %v1576
        %2260 = vmatprep.subr.bf16.mxu0 0
        %2261 = vmatpush1.bf16.msra.mxu0 %v1583
        %2262 = vmatprep.subr.bf16.mxu0 0
        %2263 = vmatpush1.bf16.msra.mxu0 %v1590
        %2264 = vmatprep.subr.bf16.mxu0 0
        %2265 = vmatpush1.bf16.msra.mxu0 %v1597
        %2266 = vmatprep.subr.bf16.mxu0 0
        %2267 = vmatpush1.bf16.msra.mxu0 %v1604
        %2268 = vmatprep.subr.bf16.mxu0 0
        %2269 = vmatpush1.bf16.msra.mxu0 %v1611
        %2270 = vmatprep.subr.bf16.mxu0 0
        %2271 = vmatpush1.bf16.msra.mxu0 %v1618
        %2272 = vmatprep.subr.bf16.mxu0 0
        %2273 = vmatpush1.bf16.msra.mxu0 %v1625
        %2274 = vmatprep.subr.bf16.mxu0 0
        %2275 = vmatpush1.bf16.msra.mxu0 %v1632
        %2276 = vmatprep.subr.bf16.mxu0 0
        %2277 = vmatpush1.bf16.msra.mxu0 %v1639
        %2278 = vmatprep.subr.bf16.mxu0 0
        %2279 = vmatpush1.bf16.msra.mxu0 %v1646
        %2280 = vmatprep.subr.bf16.mxu0 0
        %2281 = vmatpush1.bf16.msra.mxu0 %v1653
        %2282 = vmatprep.subr.bf16.mxu0 0
        %2283 = vmatpush1.bf16.msra.mxu0 %v1660
        %2284 = vmatprep.mubr.bf16.mxu0 %v435
        %2285 = vmatmul.mubr.bf16.gmra.mrb[0].mxu0 %v434
        %v2286 = vpop.f32.mrb[0].mxu0
        %v2287 = vadd.f32 %v2238, %v2286
        %v2288 = vpop.f32.mrb[0].mxu0
        %v2289 = vpop.f32.mrb[0].mxu0
        %v2290 = vadd.f32 %v2241, %v2289
        %v2291 = vpop.f32.mrb[0].mxu0
        %2292 = vmatprep.mubr.bf16.mxu0 %v439
        %2293 = vmatmul.mubr.bf16.gmra.mrb[0].mxu0 %v438
        %v2294 = vpop.f32.mrb[0].mxu0
        %v2295 = vadd.f32 %v2246, %v2294
        %v2296 = vpop.f32.mrb[0].mxu0
        %v2297 = vpop.f32.mrb[0].mxu0
        %v2298 = vadd.f32 %v2249, %v2297
        %v2299 = vpop.f32.mrb[0].mxu0
        %2300 = vdwg.mxu0
        %v2301 = vsub.f32 0.0, %v1973
        %v2302 = vsub.f32 0.0, %v1975
        %v2303 = vsub.f32 0.0, %v2079
        %v2304 = vsub.f32 0.0, %v2081
        %v2305 = vsub.f32 0.0, %v2185
        %v2306 = vsub.f32 0.0, %v2187
        %v2307 = vsub.f32 0.0, %v2287
        %v2308 = vsub.f32 0.0, %v1977
        %v2309 = vsub.f32 0.0, %v1979
        %v2310 = vsub.f32 0.0, %v2083
        %v2311 = vsub.f32 0.0, %v2085
        %v2312 = vsub.f32 0.0, %v2189
        %v2313 = vsub.f32 0.0, %v2191
        %v2314 = vsub.f32 0.0, %v2290
        %v2315 = vsub.f32 0.0, %v1983
        %v2316 = vsub.f32 0.0, %v1985
        %v2317 = vsub.f32 0.0, %v2089
        %v2318 = vsub.f32 0.0, %v2091
        %v2319 = vsub.f32 0.0, %v2195
        %v2320 = vsub.f32 0.0, %v2197
        %v2321 = vsub.f32 0.0, %v2295
        %v2322 = vsub.f32 0.0, %v1987
        %v2323 = vsub.f32 0.0, %v1989
        %v2324 = vsub.f32 0.0, %v2093
        %v2325 = vsub.f32 0.0, %v2095
        %v2326 = vsub.f32 0.0, %v2199
        %v2327 = vsub.f32 0.0, %v2201
        %v2328 = vsub.f32 0.0, %v2298
        %v2329 = vmul.f32 %v2301, 1.442695
        %v2330 = vpow.pop %v2329
        %v2331 = vmul.f32 %v2302, 1.442695
        %v2332 = vpow.pop %v2331
        %v2333 = vmul.f32 %v2303, 1.442695
        %v2334 = vpow.pop %v2333
        %v2335 = vmul.f32 %v2304, 1.442695
        %v2336 = vpow.pop %v2335
        %v2337 = vmul.f32 %v2305, 1.442695
        %v2338 = vpow.pop %v2337
        %v2339 = vmul.f32 %v2306, 1.442695
        %v2340 = vpow.pop %v2339
        %v2341 = vmul.f32 %v2307, 1.442695
        %v2342 = vpow.pop %v2341
        %v2343 = vmul.f32 %v2308, 1.442695
        %v2344 = vpow.pop %v2343
        %v2345 = vmul.f32 %v2309, 1.442695
        %v2346 = vpow.pop %v2345
        %v2347 = vmul.f32 %v2310, 1.442695
        %v2348 = vpow.pop %v2347
        %v2349 = vmul.f32 %v2311, 1.442695
        %v2350 = vpow.pop %v2349
        %v2351 = vmul.f32 %v2312, 1.442695
        %v2352 = vpow.pop %v2351
        %v2353 = vmul.f32 %v2313, 1.442695
        %v2354 = vpow.pop %v2353
        %v2355 = vmul.f32 %v2314, 1.442695
        %v2356 = vpow.pop %v2355
        %v2357 = vmul.f32 %v2315, 1.442695
        %v2358 = vpow.pop %v2357
        %v2359 = vmul.f32 %v2316, 1.442695
        %v2360 = vpow.pop %v2359
        %v2361 = vmul.f32 %v2317, 1.442695
        %v2362 = vpow.pop %v2361
        %v2363 = vmul.f32 %v2318, 1.442695
        %v2364 = vpow.pop %v2363
        %v2365 = vmul.f32 %v2319, 1.442695
        %v2366 = vpow.pop %v2365
        %v2367 = vmul.f32 %v2320, 1.442695
        %v2368 = vpow.pop %v2367
        %v2369 = vmul.f32 %v2321, 1.442695
        %v2370 = vpow.pop %v2369
        %v2371 = vmul.f32 %v2322, 1.442695
        %v2372 = vpow.pop %v2371
        %v2373 = vmul.f32 %v2323, 1.442695
        %v2374 = vpow.pop %v2373
        %v2375 = vmul.f32 %v2324, 1.442695
        %v2376 = vpow.pop %v2375
        %v2377 = vmul.f32 %v2325, 1.442695
        %v2378 = vpow.pop %v2377
        %v2379 = vmul.f32 %v2326, 1.442695
        %v2380 = vpow.pop %v2379
        %v2381 = vmul.f32 %v2327, 1.442695
        %v2382 = vpow.pop %v2381
        %v2383 = vmul.f32 %v2328, 1.442695
        %v2384 = vpow.pop %v2383
        %v2385 = vadd.f32 %v2330, 1.0
        %v2386 = vadd.f32 %v2332, 1.0
        %v2387 = vadd.f32 %v2334, 1.0
        %v2388 = vadd.f32 %v2336, 1.0
        %v2389 = vadd.f32 %v2338, 1.0
        %v2390 = vadd.f32 %v2340, 1.0
        %v2391 = vadd.f32 %v2342, 1.0
        %v2392 = vadd.f32 %v2344, 1.0
        %v2393 = vadd.f32 %v2346, 1.0
        %v2394 = vadd.f32 %v2348, 1.0
        %v2395 = vadd.f32 %v2350, 1.0
        %v2396 = vadd.f32 %v2352, 1.0
        %v2397 = vadd.f32 %v2354, 1.0
        %v2398 = vadd.f32 %v2356, 1.0
        %v2399 = vadd.f32 %v2358, 1.0
        %v2400 = vadd.f32 %v2360, 1.0
        %v2401 = vadd.f32 %v2362, 1.0
        %v2402 = vadd.f32 %v2364, 1.0
        %v2403 = vadd.f32 %v2366, 1.0
        %v2404 = vadd.f32 %v2368, 1.0
        %v2405 = vadd.f32 %v2370, 1.0
        %v2406 = vadd.f32 %v2372, 1.0
        %v2407 = vadd.f32 %v2374, 1.0
        %v2408 = vadd.f32 %v2376, 1.0
        %v2409 = vadd.f32 %v2378, 1.0
        %v2410 = vadd.f32 %v2380, 1.0
        %v2411 = vadd.f32 %v2382, 1.0
        %v2412 = vadd.f32 %v2384, 1.0
        %v2413 = vrcp.pop %v2385
        %v2414 = vrcp.pop %v2386
        %v2415 = vrcp.pop %v2387
        %v2416 = vrcp.pop %v2388
        %v2417 = vrcp.pop %v2389
        %v2418 = vrcp.pop %v2390
        %v2419 = vrcp.pop %v2391
        %v2420 = vrcp.pop %v2392
        %v2421 = vrcp.pop %v2393
        %v2422 = vrcp.pop %v2394
        %v2423 = vrcp.pop %v2395
        %v2424 = vrcp.pop %v2396
        %v2425 = vrcp.pop %v2397
        %v2426 = vrcp.pop %v2398
        %v2427 = vrcp.pop %v2399
        %v2428 = vrcp.pop %v2400
        %v2429 = vrcp.pop %v2401
        %v2430 = vrcp.pop %v2402
        %v2431 = vrcp.pop %v2403
        %v2432 = vrcp.pop %v2404
        %v2433 = vrcp.pop %v2405
        %v2434 = vrcp.pop %v2406
        %v2435 = vrcp.pop %v2407
        %v2436 = vrcp.pop %v2408
        %v2437 = vrcp.pop %v2409
        %v2438 = vrcp.pop %v2410
        %v2439 = vrcp.pop %v2411
        %v2440 = vrcp.pop %v2412
        %v2441 = vpack.c.bf16 %v2420, %v2413
        %v2442 = vpack.c.bf16 %v2421, %v2414
        %v2443 = vpack.c.bf16 %v2422, %v2415
        %v2444 = vpack.c.bf16 %v2423, %v2416
        %v2445 = vpack.c.bf16 %v2424, %v2417
        %v2446 = vpack.c.bf16 %v2425, %v2418
        %v2447 = vpack.c.bf16 %v2426, %v2419
        %v2448 = vpack.c.bf16 %v2434, %v2427
        %v2449 = vpack.c.bf16 %v2435, %v2428
        %v2450 = vpack.c.bf16 %v2436, %v2429
        %v2451 = vpack.c.bf16 %v2437, %v2430
        %v2452 = vpack.c.bf16 %v2438, %v2431
        %v2453 = vpack.c.bf16 %v2439, %v2432
        %v2454 = vpack.c.bf16 %v2440, %v2433
        %v2469 = vunpack.c.l.b16 %v2441
        %v2470 = vunpack.c.l.b16 %v2442
        %v2471 = vunpack.c.l.b16 %v2443
        %v2472 = vunpack.c.l.b16 %v2444
        %v2473 = vunpack.c.l.b16 %v2445
        %v2474 = vunpack.c.l.b16 %v2446
        %v2475 = vunpack.c.l.b16 %v2447
        %v2476 = vunpack.c.h.b16 %v2441
        %v2477 = vunpack.c.h.b16 %v2442
        %v2478 = vunpack.c.h.b16 %v2443
        %v2479 = vunpack.c.h.b16 %v2444
        %v2480 = vunpack.c.h.b16 %v2445
        %v2481 = vunpack.c.h.b16 %v2446
        %v2482 = vunpack.c.h.b16 %v2447
        %v2483 = vunpack.c.l.b16 %v2448
        %v2484 = vunpack.c.l.b16 %v2449
        %v2485 = vunpack.c.l.b16 %v2450
        %v2486 = vunpack.c.l.b16 %v2451
        %v2487 = vunpack.c.l.b16 %v2452
        %v2488 = vunpack.c.l.b16 %v2453
        %v2489 = vunpack.c.l.b16 %v2454
        %v2490 = vunpack.c.h.b16 %v2448
        %v2491 = vunpack.c.h.b16 %v2449
        %v2492 = vunpack.c.h.b16 %v2450
        %v2493 = vunpack.c.h.b16 %v2451
        %v2494 = vunpack.c.h.b16 %v2452
        %v2495 = vunpack.c.h.b16 %v2453
        %v2496 = vunpack.c.h.b16 %v2454
        %v2497 = vpack.c.b16 %v2470, %v2469
        %v2498 = vpack.c.b16 %v2472, %v2471
        %v2499 = vpack.c.b16 %v2474, %v2473
        %v2500 = vpack.c.b16 %v2475, %v2475
        %v2501 = vpack.c.b16 %v2477, %v2476
        %v2502 = vpack.c.b16 %v2479, %v2478
        %v2503 = vpack.c.b16 %v2481, %v2480
        %v2504 = vpack.c.b16 %v2482, %v2482
        %v2505 = vpack.c.b16 %v2484, %v2483
        %v2506 = vpack.c.b16 %v2486, %v2485
        %v2507 = vpack.c.b16 %v2488, %v2487
        %v2508 = vpack.c.b16 %v2489, %v2489
        %v2509 = vpack.c.b16 %v2491, %v2490
        %v2510 = vpack.c.b16 %v2493, %v2492
        %v2511 = vpack.c.b16 %v2495, %v2494
        %v2512 = vpack.c.b16 %v2496, %v2496
        %2529 = vst [vmem:[%s218] sm:$0xff] %v2497
        %2530 = vst [vmem:[%s218 + $0x8] sm:$0xff] %v2498
        %2531 = vst [vmem:[%s218 + $0x10] sm:$0xff] %v2499
        %vm2532 = vcmask 125952
        %2533 = vst.msk [vmem:[%s218 + $0x18] sm:$0xf] %vm2532, %v2500
        %2534 = vst [vmem:[%s218 + $0x1c] sm:$0xff] %v2501
        %2535 = vst [vmem:[%s218 + $0x24] sm:$0xff] %v2502
        %2536 = vst [vmem:[%s218 + $0x2c] sm:$0xff] %v2503
        %2537 = vst.msk [vmem:[%s218 + $0x34] sm:$0xf] %vm2532, %v2504
        %2538 = vst [vmem:[%s218 + $0x38] sm:$0xff] %v2505
        %2539 = vst [vmem:[%s218 + $0x40] sm:$0xff] %v2506
        %2540 = vst [vmem:[%s218 + $0x48] sm:$0xff] %v2507
        %2541 = vst.msk [vmem:[%s218 + $0x50] sm:$0xf] %vm2532, %v2508
        %2542 = vst [vmem:[%s218 + $0x54] sm:$0xff] %v2509
        %2543 = vst [vmem:[%s218 + $0x5c] sm:$0xff] %v2510
        %2544 = vst [vmem:[%s218 + $0x64] sm:$0xff] %v2511
        %2545 = vst.msk [vmem:[%s218 + $0x6c] sm:$0xf] %vm2532, %v2512
        %s2546 = sand.u32 %s137, 1
        %s2547 = scalar_lea.sflag [#allocation3], %s2546
        %s2548 = sand.u32 %s137, 1
        %s2549 = smul.addr %s2548, 112
        %s2550 = scalar_lea.vmem [#allocation2], %s2549
        // Predicated region
        $region41: #{tpu_custom_call.1} parent=39 // pred_check
          %p2551 = pneg %p147
        $region42: #{tpu_custom_call.1} parent=39 // pred_check_branch
          %2553 = sbr.rel (%p2551) target = $region44
        $region43: #{tpu_custom_call.1} parent=39 // pred_region
          %s2554 = smul.u32 4, %s19
          %s2556 = ssub.s32 1792, 1792
          %2557 = vsyncadd %s2547, %s2556
          %s2558 = smul.addr %s2554, 7
          %s2559 = smul.addr %s2558, 64
          %s2560 = scalar_lea.hbm %s5, %s2559
          %s2561 = sshll.u32 %s2550, 4
          %s2562 = int_to_ptr.vmem [resolvable:$true] %s2561
          %2567 = dma.vmem_to_hbm [thread:$0]  %s2562, 1792, %s2560, %s2547, 448, 448, 28
        $region44: #{tpu_custom_call.1} parent=39 // pred_fallthru
          _
      $region40: #{tpu_custom_call.1} parent=5 // pred_fallthru
        _
      %p2568 = scmp.le.s32.totalorder 2, %s14
      // Predicated region
      $region45: #{tpu_custom_call.1} parent=5 // pred_check
        %p2569 = pneg %p2568
      $region46: #{tpu_custom_call.1} parent=5 // pred_check_branch
        %2571 = sbr.rel (%p2569) target = $region48
      $region47: #{tpu_custom_call.1} parent=5 // pred_region
        %s2572 = ssub.s32 %s14, 2
        // Predicated region
        $region49: #{tpu_custom_call.1} parent=47 // pred_check
          %p2573 = pneg %p153
        $region50: #{tpu_custom_call.1} parent=47 // pred_check_branch
          %2575 = sbr.rel (%p2573) target = $region52
        $region51: #{tpu_custom_call.1} parent=47 // pred_region
          %s2576 = sand.u32 %s138, 1
          %s2577 = scalar_lea.sflag [#allocation3], %s2576
          %s2578 = sand.u32 %s138, 1
          %s2579 = smul.addr %s2578, 112
          %s2580 = scalar_lea.vmem [#allocation2], %s2579
          %2581 = dma.done %s2577, 1792
        $region52: #{tpu_custom_call.1} parent=47 // pred_fallthru
          _
      $region48: #{tpu_custom_call.1} parent=5 // pred_fallthru
        _
    $region6: #{tpu_custom_call.1} parent=1 // loop_footer
      %s18 = sadd.s32 1, %s14
    $region7: #{tpu_custom_call.1} parent=1 // loop_footer_branch
      %13 = sbr.rel target = $region3
    $region8: #{tpu_custom_call.1} parent=1 // loop_exit
      _
    %2582 = vsyncpa [#allocation3], 1
    %s2583 = scalar_lea.sflag [#allocation3], 1
    %2584 = vsyncpa %s2583, 1

// kernel: tpu_custom_call.1
$region0: #{tpu_custom_call.1}
  #allocation0 [shape = 'u32[]', space=smem, size = 0x4, offset = 0x4, fixed_abs, tag = 'smem constant byte address 0x4 - core index']
  #allocation1 [shape = 'u32[144,128]{1,0:T(1,128)}', space=vmem, size = 0x12000, scoped, tag = 'internal scratch']
  %s0 = inlined_call_operand.vmem [shape: f32[64,32], index: 0, kind: input, shape index: {}]
  %s1 = inlined_call_operand.vmem [shape: bf16[32,512], index: 1, kind: input, shape index: {}]
  %s2 = inlined_call_operand.vmem [shape: f32[1,512], index: 2, kind: input, shape index: {}]
  %s3 = inlined_call_operand.vmem [shape: bf16[512,784], index: 3, kind: input, shape index: {}]
  %s4 = inlined_call_operand.vmem [shape: f32[1,784], index: 4, kind: input, shape index: {}]
  %s5 = inlined_call_operand.hbm [shape: bf16[64,784], index: 5, kind: output, shape index: {}]
  %s6 = sld [smem:[#allocation0]]
  $region53: #{tpu_custom_call.1} parent=0
    _
  %s8 = ssub.s32 1, %s6
  %s9 = scalar_select 0, %s8, %s6
  $region1: #{tpu_custom_call.1} parent=0
    #allocation2 [shape = 'u8[114688]{0}', space=vmem, size = 0x1c000, scoped, tag = 'output window, operand 0']
    #allocation3 [shape = 's32[2]{0}', space=sflag, size = 0x8, scoped, tag = 'scoped memory for tpu_custom_call.1']
    %10 = vsyncpa [#allocation3], 0
    %s11 = scalar_lea.sflag [#allocation3], 1
    %12 = vsyncpa %s11, 0
    loop: start=0, step=1, limit=4
    $region2: #{tpu_custom_call.1} parent=1 // loop_pre_header
      _
    $region3: #{tpu_custom_call.1} parent=1 // loop_header
      %s14 = sphi 0, %s18
      %p15 = scmp.ge.s32.totalorder %s14, 4
      %s24 = sphi 0, %s26
      %s27 = sphi 0, %s24
      %s28 = sphi 0, %s27
      %s44 = sphi 0, %s28
      %s48 = sphi 0, %s48
      %s50 = sphi 0, %s48
      %s51 = sphi 0, %s50
      %s65 = sphi 0, %s51
      %s69 = sphi 0, %s69
      %s71 = sphi 0, %s69
      %s72 = sphi 0, %s71
      %s86 = sphi 0, %s72
      %s90 = sphi 0, %s90
      %s92 = sphi 0, %s90
      %s93 = sphi 0, %s92
      %s107 = sphi 0, %s93
      %s111 = sphi 0, %s111
      %s113 = sphi 0, %s111
      %s114 = sphi 0, %s113
      %s128 = sphi 0, %s114
      %s134 = sphi 0, %s136
      %s137 = sphi 0, %s134
      %s138 = sphi 0, %s137
      %s154 = sphi 0, %s138
    $region4: #{tpu_custom_call.1} parent=1 // loop_header_branch
      %17 = sbr.rel (%p15) target = $region8
    $region5: #{tpu_custom_call.1} parent=1 // loop_body
      %s19 = ssub.s32 %s14, 1
      %s20 = ssub.s32 %s14, 2
      %s21 = sadd.s32 %s14, 1
      %s22 = ssub.s32 %s14, %s21
      %p23 = scmp.eq.s32.totalorder %s22, 0
      %s25 = sadd.s32 %s24, 1
      %s26 = scalar_select %p23, %s24, %s25
      %p29 = pneg %p23
      %p30 = scmp.eq.s32.totalorder %s14, 1
      %p31 = por %p29, %p30
      %p32 = scmp.ne.s32.totalorder %s24, %s27
      %p33 = scmp.eq.s32.totalorder %s14, 0
      %p34 = por %p32, %p33
      %p35 = scmp.ne.s32.totalorder %s24, %s27
      %p36 = scmp.eq.s32.totalorder %s19, 1
      %p37 = por %p35, %p36
      %p38 = scmp.ne.s32.totalorder %s27, %s28
      %p39 = scmp.eq.s32.totalorder %s19, 0
      %p40 = por %p38, %p39
      %p41 = scmp.ne.s32.totalorder %s27, %s28
      %p42 = scmp.eq.s32.totalorder %s20, 1
      %p43 = por %p41, %p42
      %p45 = scmp.ne.s32.totalorder %s28, %s44
      %p46 = scmp.eq.s32.totalorder %s20, 0
      %p47 = por %p45, %p46
      %s49 = sadd.s32 %s48, 1
      %p52 = scmp.eq.s32.totalorder %s14, 1
      %p53 = scmp.ne.s32.totalorder %s48, %s50
      %p54 = scmp.eq.s32.totalorder %s14, 0
      %p55 = por %p53, %p54
      %p56 = scmp.ne.s32.totalorder %s48, %s50
      %p57 = scmp.eq.s32.totalorder %s19, 1
      %p58 = por %p56, %p57
      %p59 = scmp.ne.s32.totalorder %s50, %s51
      %p60 = scmp.eq.s32.totalorder %s19, 0
      %p61 = por %p59, %p60
      %p62 = scmp.ne.s32.totalorder %s50, %s51
      %p63 = scmp.eq.s32.totalorder %s20, 1
      %p64 = por %p62, %p63
      %p66 = scmp.ne.s32.totalorder %s51, %s65
      %p67 = scmp.eq.s32.totalorder %s20, 0
      %p68 = por %p66, %p67
      %s70 = sadd.s32 %s69, 1
      %p73 = scmp.eq.s32.totalorder %s14, 1
      %p74 = scmp.ne.s32.totalorder %s69, %s71
      %p75 = scmp.eq.s32.totalorder %s14, 0
      %p76 = por %p74, %p75
      %p77 = scmp.ne.s32.totalorder %s69, %s71
      %p78 = scmp.eq.s32.totalorder %s19, 1
      %p79 = por %p77, %p78
      %p80 = scmp.ne.s32.totalorder %s71, %s72
      %p81 = scmp.eq.s32.totalorder %s19, 0
      %p82 = por %p80, %p81
      %p83 = scmp.ne.s32.totalorder %s71, %s72
      %p84 = scmp.eq.s32.totalorder %s20, 1
      %p85 = por %p83, %p84
      %p87 = scmp.ne.s32.totalorder %s72, %s86
      %p88 = scmp.eq.s32.totalorder %s20, 0
      %p89 = por %p87, %p88
      %s91 = sadd.s32 %s90, 1
      %p94 = scmp.eq.s32.totalorder %s14, 1
      %p95 = scmp.ne.s32.totalorder %s90, %s92
      %p96 = scmp.eq.s32.totalorder %s14, 0
      %p97 = por %p95, %p96
      %p98 = scmp.ne.s32.totalorder %s90, %s92
      %p99 = scmp.eq.s32.totalorder %s19, 1
      %p100 = por %p98, %p99
      %p101 = scmp.ne.s32.totalorder %s92, %s93
      %p102 = scmp.eq.s32.totalorder %s19, 0
      %p103 = por %p101, %p102
      %p104 = scmp.ne.s32.totalorder %s92, %s93
      %p105 = scmp.eq.s32.totalorder %s20, 1
      %p106 = por %p104, %p105
      %p108 = scmp.ne.s32.totalorder %s93, %s107
      %p109 = scmp.eq.s32.totalorder %s20, 0
      %p110 = por %p108, %p109
      %s112 = sadd.s32 %s111, 1
      %p115 = scmp.eq.s32.totalorder %s14, 1
      %p116 = scmp.ne.s32.totalorder %s111, %s113
      %p117 = scmp.eq.s32.totalorder %s14, 0
      %p118 = por %p116, %p117
      %p119 = scmp.ne.s32.totalorder %s111, %s113
      %p120 = scmp.eq.s32.totalorder %s19, 1
      %p121 = por %p119, %p120
      %p122 = scmp.ne.s32.totalorder %s113, %s114
      %p123 = scmp.eq.s32.totalorder %s19, 0
      %p124 = por %p122, %p123
      %p125 = scmp.ne.s32.totalorder %s113, %s114
      %p126 = scmp.eq.s32.totalorder %s20, 1
      %p127 = por %p125, %p126
      %p129 = scmp.ne.s32.totalorder %s114, %s128
      %p130 = scmp.eq.s32.totalorder %s20, 0
      %p131 = por %p129, %p130
      %s132 = ssub.s32 %s14, %s21
      %p133 = scmp.eq.s32.totalorder %s132, 0
      %s135 = sadd.s32 %s134, 1
      %s136 = scalar_select %p133, %s134, %s135
      %p139 = pneg %p133
      %p140 = scmp.eq.s32.totalorder %s14, 1
      %p141 = por %p139, %p140
      %p142 = scmp.ne.s32.totalorder %s134, %s137
      %p143 = scmp.eq.s32.totalorder %s14, 0
      %p144 = por %p142, %p143
      %p145 = scmp.ne.s32.totalorder %s134, %s137
      %p146 = scmp.eq.s32.totalorder %s19, 1
      %p147 = por %p145, %p146
      %p148 = scmp.ne.s32.totalorder %s137, %s138
      %p149 = scmp.eq.s32.totalorder %s19, 0
      %p150 = por %p148, %p149
      %p151 = scmp.ne.s32.totalorder %s137, %s138
      %p152 = scmp.eq.s32.totalorder %s20, 1
      %p153 = por %p151, %p152
      %p155 = scmp.ne.s32.totalorder %s138, %s154
      %p156 = scmp.eq.s32.totalorder %s20, 0
      %p157 = por %p155, %p156
      %p158 = scmp.le.s32.totalorder 1, %s14
      %p159 = scmp.lt.s32.totalorder %s14, 3
      %p160 = pnand %p158, %p159
      %p161 = pneg %p160
      // Predicated region
      $region9: #{tpu_custom_call.1} parent=5 // pred_check
        _
      $region10: #{tpu_custom_call.1} parent=5 // pred_check_branch
        %163 = sbr.rel (%p160) target = $region12
      $region11: #{tpu_custom_call.1} parent=5 // pred_region
        %s164 = ssub.s32 %s14, 1
        // Predicated region
        $region13: #{tpu_custom_call.1} parent=11 // pred_check
          %p165 = pneg %p61
        $region14: #{tpu_custom_call.1} parent=11 // pred_check_branch
          %167 = sbr.rel (%p165) target = $region16
        $region15: #{tpu_custom_call.1} parent=11 // pred_region
          _
        $region16: #{tpu_custom_call.1} parent=11 // pred_fallthru
          _
        // Predicated region
        $region17: #{tpu_custom_call.1} parent=11 // pred_check
          %p168 = pneg %p82
        $region18: #{tpu_custom_call.1} parent=11 // pred_check_branch
          %170 = sbr.rel (%p168) target = $region20
        $region19: #{tpu_custom_call.1} parent=11 // pred_region
          _
        $region20: #{tpu_custom_call.1} parent=11 // pred_fallthru
          _
        // Predicated region
        $region21: #{tpu_custom_call.1} parent=11 // pred_check
          %p171 = pneg %p103
        $region22: #{tpu_custom_call.1} parent=11 // pred_check_branch
          %173 = sbr.rel (%p171) target = $region24
        $region23: #{tpu_custom_call.1} parent=11 // pred_region
          _
        $region24: #{tpu_custom_call.1} parent=11 // pred_fallthru
          _
        // Predicated region
        $region25: #{tpu_custom_call.1} parent=11 // pred_check
          %p174 = pneg %p124
        $region26: #{tpu_custom_call.1} parent=11 // pred_check_branch
          %176 = sbr.rel (%p174) target = $region28
        $region27: #{tpu_custom_call.1} parent=11 // pred_region
          _
        $region28: #{tpu_custom_call.1} parent=11 // pred_fallthru
          _
      $region12: #{tpu_custom_call.1} parent=5 // pred_fallthru
        _
      %p177 = scmp.lt.s32.totalorder %s14, 2
      // Predicated region
      $region29: #{tpu_custom_call.1} parent=5 // pred_check
        %p178 = pneg %p177
      $region30: #{tpu_custom_call.1} parent=5 // pred_check_branch
        %180 = sbr.rel (%p178) target = $region32
      $region31: #{tpu_custom_call.1} parent=5 // pred_region
        // Predicated region
        $region33: #{tpu_custom_call.1} parent=31 // pred_check
          %p181 = pneg %p34
        $region34: #{tpu_custom_call.1} parent=31 // pred_check_branch
          %183 = sbr.rel (%p181) target = $region36
        $region35: #{tpu_custom_call.1} parent=31 // pred_region
          %s184 = smul.u32 4, %s14
          %p185 = scmp.lt.s32.totalorder %s184, 7
          %s186 = scalar_select %p185, %s184, 7
          %s187 = smul.addr %s186, 8
          %s188 = scalar_lea.vmem %s0, %s187
          %s189 = smul.u32 4, %s14
        $region36: #{tpu_custom_call.1} parent=31 // pred_fallthru
          _
      $region32: #{tpu_custom_call.1} parent=5 // pred_fallthru
        _
      %p190 = scmp.le.s32.totalorder 1, %s14
      %p191 = scmp.lt.s32.totalorder %s14, 3
      %p192 = pnand %p190, %p191
      %p193 = pneg %p192
      // Predicated region
      $region37: #{tpu_custom_call.1} parent=5 // pred_check
        _
      $region38: #{tpu_custom_call.1} parent=5 // pred_check_branch
        %195 = sbr.rel (%p192) target = $region40
      $region39: #{tpu_custom_call.1} parent=5 // pred_region
        %s196 = ssub.s32 %s14, 1
        %s197 = smul.u32 4, %s19
        %p198 = scmp.lt.s32.totalorder %s197, 7
        %s199 = scalar_select %p198, %s197, 7
        %s200 = smul.addr %s199, 8
        %s201 = scalar_lea.vmem %s0, %s200
        %p202 = pneg %p40
        %p203 = pneg %p37
        %p204 = pneg %p61
        %p205 = pneg %p58
        %p206 = pneg %p82
        %p207 = pneg %p79
        %p208 = pneg %p103
        %p209 = pneg %p100
        %p210 = pneg %p124
        %p211 = pneg %p121
        %p212 = pneg %p150
        %p213 = pneg %p147
        %s214 = sand.u32 %s137, 1
        %s215 = scalar_lea.sflag [#allocation3], %s214
        %s216 = sand.u32 %s137, 1
        %s217 = smul.addr %s216, 112
        %s218 = scalar_lea.vmem [#allocation2], %s217
        %s219 = smul.u32 4, %s19
        %p220 = scmp.lt.s32.totalorder %s219, 7
        %s221 = scalar_select %p220, %s219, 7
        %s222 = smul.addr %s221, 8
        %s223 = scalar_lea.vmem %s0, %s222
        %s224 = smul.u32 4, %s19
        %s225 = smul.u32 4, %s19
        %v227 = vld [vmem:[%s223] sm:$0xff]
        %v228 = vld [vmem:[%s223 + $0x8] sm:$0xff]
        %v229 = vld [vmem:[%s223 + $0x10] sm:$0xff]
        %v230 = vld [vmem:[%s223 + $0x18] sm:$0xff]
        %v231 = vpack.c.bf16 %v228, %v227
        %v232 = vpack.c.bf16 %v230, %v229
        %v233 = vld [vmem:[%s1] sm:$0xff]
        %v234 = vld [vmem:[%s1 + $0x8] sm:$0xff]
        %v235 = vld [vmem:[%s1 + $0x10] sm:$0xff]
        %v236 = vld [vmem:[%s1 + $0x18] sm:$0xff]
        %v237 = vld [vmem:[%s1 + $0x20] sm:$0xff]
        %v238 = vld [vmem:[%s1 + $0x28] sm:$0xff]
        %v239 = vld [vmem:[%s1 + $0x30] sm:$0xff]
        %v240 = vld [vmem:[%s1 + $0x38] sm:$0xff]
        %v241 = vld [vmem:[%s2] sm:$0xf]
        %v243 = vlaneseq
        %v244 = vshrl.u32 %v243, 7
        %v245 = vsub.s32 0, %v244
        %v246 = vrot.slane %v241, %v245
        %v247 = vlaneseq
        %v248 = vshrl.u32 %v247, 7
        %v249 = vsub.s32 1, %v248
        %v250 = vrot.slane %v241, %v249
        %v251 = vlaneseq
        %v252 = vshrl.u32 %v251, 7
        %v253 = vsub.s32 2, %v252
        %v254 = vrot.slane %v241, %v253
        %v255 = vlaneseq
        %v256 = vshrl.u32 %v255, 7
        %v257 = vsub.s32 3, %v256
        %v258 = vrot.slane %v241, %v257
        %v271 = vunpack.c.l.b16 %v233
        %v272 = vunpack.c.h.b16 %v233
        %v273 = vunpack.c.l.b16 %v234
        %v274 = vunpack.c.h.b16 %v234
        %v275 = vunpack.c.l.b16 %v235
        %v276 = vunpack.c.h.b16 %v235
        %v277 = vunpack.c.l.b16 %v236
        %v278 = vunpack.c.h.b16 %v236
        %v279 = vunpack.c.l.b16 %v237
        %v280 = vunpack.c.h.b16 %v237
        %v281 = vunpack.c.l.b16 %v238
        %v282 = vunpack.c.h.b16 %v238
        %v283 = vunpack.c.l.b16 %v239
        %v284 = vunpack.c.h.b16 %v239
        %v285 = vunpack.c.l.b16 %v240
        %v286 = vunpack.c.h.b16 %v240
        %v287 = vpack.c.b16 %v275, %v271
        %v288 = vpack.c.b16 %v276, %v272
        %v289 = vpack.c.b16 %v277, %v273
        %v290 = vpack.c.b16 %v278, %v274
        %v291 = vpack.c.b16 %v283, %v279
        %v292 = vpack.c.b16 %v284, %v280
        %v293 = vpack.c.b16 %v285, %v281
        %v294 = vpack.c.b16 %v286, %v282
        %vm303 = vcmask 261120
        %v305 = vsel %vm303, %v231, 0
        %v308 = vsel %vm303, %v232, 0
        %310 = vmatprep.subr.bf16.mxu0 %v288
        %311 = vmatpush1.bf16.msra.mxu0 %v287
        %312 = vmatprep.subr.bf16.mxu0 %v292
        %313 = vmatpush1.bf16.msra.mxu0 %v291
        %314 = vmatprep.subr.bf16.mxu0 0
        %315 = vmatpush1.bf16.msra.mxu0 0
        %316 = vmatprep.subr.bf16.mxu0 0
        %317 = vmatpush1.bf16.msra.mxu0 0
        %318 = vmatprep.subr.bf16.mxu0 0
        %319 = vmatpush1.bf16.msra.mxu0 0
        %320 = vmatprep.subr.bf16.mxu0 0
        %321 = vmatpush1.bf16.msra.mxu0 0
        %322 = vmatprep.subr.bf16.mxu0 0
        %323 = vmatpush1.bf16.msra.mxu0 0
        %324 = vmatprep.subr.bf16.mxu0 0
        %325 = vmatpush1.bf16.msra.mxu0 0
        %326 = vmatprep.subr.bf16.mxu0 0
        %327 = vmatpush1.bf16.msra.mxu0 0
        %328 = vmatprep.subr.bf16.mxu0 0
        %329 = vmatpush1.bf16.msra.mxu0 0
        %330 = vmatprep.subr.bf16.mxu0 0
        %331 = vmatpush1.bf16.msra.mxu0 0
        %332 = vmatprep.subr.bf16.mxu0 0
        %333 = vmatpush1.bf16.msra.mxu0 0
        %334 = vmatprep.subr.bf16.mxu0 0
        %335 = vmatpush1.bf16.msra.mxu0 0
        %336 = vmatprep.subr.bf16.mxu0 0
        %337 = vmatpush1.bf16.msra.mxu0 0
        %338 = vmatprep.subr.bf16.mxu0 0
        %339 = vmatpush1.bf16.msra.mxu0 0
        %340 = vmatprep.subr.bf16.mxu0 0
        %341 = vmatpush1.bf16.msra.mxu0 0
        %342 = vmatprep.mubr.bf16.mxu0 0
        %343 = vmatmul.mubr.bf16.gmra.mrb[0].mxu0 %v305
        %v344 = vpop.f32.mrb[0].mxu0
        %v345 = vadd.f32 %v246, %v344
        %v346 = vpop.f32.mrb[0].mxu0
        %v347 = vadd.f32 %v250, %v346
        %v348 = vpop.f32.mrb[0].mxu0
        %v349 = vadd.f32 %v246, %v348
        %v350 = vpop.f32.mrb[0].mxu0
        %v351 = vadd.f32 %v250, %v350
        %352 = vmatprep.mubr.bf16.mxu0 0
        %353 = vmatmul.mubr.bf16.gmra.mrb[0].mxu0 %v308
        %v354 = vpop.f32.mrb[0].mxu0
        %v355 = vadd.f32 %v246, %v354
        %v356 = vpop.f32.mrb[0].mxu0
        %v357 = vadd.f32 %v250, %v356
        %v358 = vpop.f32.mrb[0].mxu0
        %v359 = vadd.f32 %v246, %v358
        %v360 = vpop.f32.mrb[0].mxu0
        %v361 = vadd.f32 %v250, %v360
        %362 = vdwg.mxu0
        %363 = vmatprep.subr.bf16.mxu0 %v290
        %364 = vmatpush1.bf16.msra.mxu0 %v289
        %365 = vmatprep.subr.bf16.mxu0 %v294
        %366 = vmatpush1.bf16.msra.mxu0 %v293
        %367 = vmatprep.subr.bf16.mxu0 0
        %368 = vmatpush1.bf16.msra.mxu0 0
        %369 = vmatprep.subr.bf16.mxu0 0
        %370 = vmatpush1.bf16.msra.mxu0 0
        %371 = vmatprep.subr.bf16.mxu0 0
        %372 = vmatpush1.bf16.msra.mxu0 0
        %373 = vmatprep.subr.bf16.mxu0 0
        %374 = vmatpush1.bf16.msra.mxu0 0
        %375 = vmatprep.subr.bf16.mxu0 0
        %376 = vmatpush1.bf16.msra.mxu0 0
        %377 = vmatprep.subr.bf16.mxu0 0
        %378 = vmatpush1.bf16.msra.mxu0 0
        %379 = vmatprep.subr.bf16.mxu0 0
        %380 = vmatpush1.bf16.msra.mxu0 0
        %381 = vmatprep.subr.bf16.mxu0 0
        %382 = vmatpush1.bf16.msra.mxu0 0
        %383 = vmatprep.subr.bf16.mxu0 0
        %384 = vmatpush1.bf16.msra.mxu0 0
        %385 = vmatprep.subr.bf16.mxu0 0
        %386 = vmatpush1.bf16.msra.mxu0 0
        %387 = vmatprep.subr.bf16.mxu0 0
        %388 = vmatpush1.bf16.msra.mxu0 0
        %389 = vmatprep.subr.bf16.mxu0 0
        %390 = vmatpush1.bf16.msra.mxu0 0
        %391 = vmatprep.subr.bf16.mxu0 0
        %392 = vmatpush1.bf16.msra.mxu0 0
        %393 = vmatprep.subr.bf16.mxu0 0
        %394 = vmatpush1.bf16.msra.mxu0 0
        %395 = vmatprep.mubr.bf16.mxu0 0
        %396 = vmatmul.mubr.bf16.gmra.mrb[0].mxu0 %v305
        %v397 = vpop.f32.mrb[0].mxu0
        %v398 = vadd.f32 %v254, %v397
        %v399 = vpop.f32.mrb[0].mxu0
        %v400 = vadd.f32 %v258, %v399
        %v401 = vpop.f32.mrb[0].mxu0
        %v402 = vadd.f32 %v254, %v401
        %v403 = vpop.f32.mrb[0].mxu0
        %v404 = vadd.f32 %v258, %v403
        %405 = vmatprep.mubr.bf16.mxu0 0
        %406 = vmatmul.mubr.bf16.gmra.mrb[0].mxu0 %v308
        %v407 = vpop.f32.mrb[0].mxu0
        %v408 = vadd.f32 %v254, %v407
        %v409 = vpop.f32.mrb[0].mxu0
        %v410 = vadd.f32 %v258, %v409
        %v411 = vpop.f32.mrb[0].mxu0
        %v412 = vadd.f32 %v254, %v411
        %v413 = vpop.f32.mrb[0].mxu0
        %v414 = vadd.f32 %v258, %v413
        %415 = vdwg.mxu0
        %v416 = vmax.f32 %v345, 0.0
        %v417 = vmax.f32 %v347, 0.0
        %v418 = vmax.f32 %v398, 0.0
        %v419 = vmax.f32 %v400, 0.0
        %v420 = vmax.f32 %v349, 0.0
        %v421 = vmax.f32 %v351, 0.0
        %v422 = vmax.f32 %v402, 0.0
        %v423 = vmax.f32 %v404, 0.0
        %v424 = vmax.f32 %v355, 0.0
        %v425 = vmax.f32 %v357, 0.0
        %v426 = vmax.f32 %v408, 0.0
        %v427 = vmax.f32 %v410, 0.0
        %v428 = vmax.f32 %v359, 0.0
        %v429 = vmax.f32 %v361, 0.0
        %v430 = vmax.f32 %v412, 0.0
        %v431 = vmax.f32 %v414, 0.0
        %v432 = vpack.c.bf16 %v420, %v416
        %v433 = vpack.c.bf16 %v421, %v417
        %v434 = vpack.c.bf16 %v422, %v418
        %v435 = vpack.c.bf16 %v423, %v419
        %v436 = vpack.c.bf16 %v428, %v424
        %v437 = vpack.c.bf16 %v429, %v425
        %v438 = vpack.c.bf16 %v430, %v426
        %v439 = vpack.c.bf16 %v431, %v427
        %v440 = vld [vmem:[%s3] sm:$0xff]
        %v441 = vld [vmem:[%s3 + $0x8] sm:$0xff]
        %v442 = vld [vmem:[%s3 + $0x10] sm:$0xff]
        %v443 = vld [vmem:[%s3 + $0x18] sm:$0xf]
        %v444 = vld [vmem:[%s3 + $0x1c] sm:$0xff]
        %v445 = vld [vmem:[%s3 + $0x24] sm:$0xff]
        %v446 = vld [vmem:[%s3 + $0x2c] sm:$0xff]
        %v447 = vld [vmem:[%s3 + $0x34] sm:$0xf]
        %v448 = vld [vmem:[%s3 + $0x38] sm:$0xff]
        %v449 = vld [vmem:[%s3 + $0x40] sm:$0xff]
        %v450 = vld [vmem:[%s3 + $0x48] sm:$0xff]
        %v451 = vld [vmem:[%s3 + $0x50] sm:$0xf]
        %v452 = vld [vmem:[%s3 + $0x54] sm:$0xff]
        %v453 = vld [vmem:[%s3 + $0x5c] sm:$0xff]
        %v454 = vld [vmem:[%s3 + $0x64] sm:$0xff]
        %v455 = vld [vmem:[%s3 + $0x6c] sm:$0xf]
        %v456 = vld [vmem:[%s3 + $0x70] sm:$0xff]
        %v457 = vld [vmem:[%s3 + $0x78] sm:$0xff]
        %v458 = vld [vmem:[%s3 + $0x80] sm:$0xff]
        %v459 = vld [vmem:[%s3 + $0x88] sm:$0xf]
        %v460 = vld [vmem:[%s3 + $0x8c] sm:$0xff]
        %v461 = vld [vmem:[%s3 + $0x94] sm:$0xff]
        %v462 = vld [vmem:[%s3 + $0x9c] sm:$0xff]
        %v463 = vld [vmem:[%s3 + $0xa4] sm:$0xf]
        %v464 = vld [vmem:[%s3 + $0xa8] sm:$0xff]
        %v465 = vld [vmem:[%s3 + $0xb0] sm:$0xff]
        %v466 = vld [vmem:[%s3 + $0xb8] sm:$0xff]
        %v467 = vld [vmem:[%s3 + $0xc0] sm:$0xf]
        %v468 = vld [vmem:[%s3 + $0xc4] sm:$0xff]
        %v469 = vld [vmem:[%s3 + $0xcc] sm:$0xff]
        %v470 = vld [vmem:[%s3 + $0xd4] sm:$0xff]
        %v471 = vld [vmem:[%s3 + $0xdc] sm:$0xf]
        %v472 = vld [vmem:[%s3 + $0xe0] sm:$0xff]
        %v473 = vld [vmem:[%s3 + $0xe8] sm:$0xff]
        %v474 = vld [vmem:[%s3 + $0xf0] sm:$0xff]
        %v475 = vld [vmem:[%s3 + $0xf8] sm:$0xf]
        %v476 = vld [vmem:[%s3 + $0xfc] sm:$0xff]
        %v477 = vld [vmem:[%s3 + $0x104] sm:$0xff]
        %v478 = vld [vmem:[%s3 + $0x10c] sm:$0xff]
        %v479 = vld [vmem:[%s3 + $0x114] sm:$0xf]
        %v480 = vld [vmem:[%s3 + $0x118] sm:$0xff]
        %v481 = vld [vmem:[%s3 + $0x120] sm:$0xff]
        %v482 = vld [vmem:[%s3 + $0x128] sm:$0xff]
        %v483 = vld [vmem:[%s3 + $0x130] sm:$0xf]
        %v484 = vld [vmem:[%s3 + $0x134] sm:$0xff]
        %v485 = vld [vmem:[%s3 + $0x13c] sm:$0xff]
        %v486 = vld [vmem:[%s3 + $0x144] sm:$0xff]
        %v487 = vld [vmem:[%s3 + $0x14c] sm:$0xf]
        %v488 = vld [vmem:[%s3 + $0x150] sm:$0xff]
        %v489 = vld [vmem:[%s3 + $0x158] sm:$0xff]
        %v490 = vld [vmem:[%s3 + $0x160] sm:$0xff]
        %v491 = vld [vmem:[%s3 + $0x168] sm:$0xf]
        %v492 = vld [vmem:[%s3 + $0x16c] sm:$0xff]
        %v493 = vld [vmem:[%s3 + $0x174] sm:$0xff]
        %v494 = vld [vmem:[%s3 + $0x17c] sm:$0xff]
        %v495 = vld [vmem:[%s3 + $0x184] sm:$0xf]
        %v496 = vld [vmem:[%s3 + $0x188] sm:$0xff]
        %v497 = vld [vmem:[%s3 + $0x190] sm:$0xff]
        %v498 = vld [vmem:[%s3 + $0x198] sm:$0xff]
        %v499 = vld [vmem:[%s3 + $0x1a0] sm:$0xf]
        %v500 = vld [vmem:[%s3 + $0x1a4] sm:$0xff]
        %v501 = vld [vmem:[%s3 + $0x1ac] sm:$0xff]
        %v502 = vld [vmem:[%s3 + $0x1b4] sm:$0xff]
        %v503 = vld [vmem:[%s3 + $0x1bc] sm:$0xf]
        %v504 = vld [vmem:[%s3 + $0x1c0] sm:$0xff]
        %v505 = vld [vmem:[%s3 + $0x1c8] sm:$0xff]
        %v506 = vld [vmem:[%s3 + $0x1d0] sm:$0xff]
        %v507 = vld [vmem:[%s3 + $0x1d8] sm:$0xf]
        %v508 = vld [vmem:[%s3 + $0x1dc] sm:$0xff]
        %v509 = vld [vmem:[%s3 + $0x1e4] sm:$0xff]
        %v510 = vld [vmem:[%s3 + $0x1ec] sm:$0xff]
        %v511 = vld [vmem:[%s3 + $0x1f4] sm:$0xf]
        %v512 = vld [vmem:[%s3 + $0x1f8] sm:$0xff]
        %v513 = vld [vmem:[%s3 + $0x200] sm:$0xff]
        %v514 = vld [vmem:[%s3 + $0x208] sm:$0xff]
        %v515 = vld [vmem:[%s3 + $0x210] sm:$0xf]
        %v516 = vld [vmem:[%s3 + $0x214] sm:$0xff]
        %v517 = vld [vmem:[%s3 + $0x21c] sm:$0xff]
        %v518 = vld [vmem:[%s3 + $0x224] sm:$0xff]
        %v519 = vld [vmem:[%s3 + $0x22c] sm:$0xf]
        %v520 = vld [vmem:[%s3 + $0x230] sm:$0xff]
        %v521 = vld [vmem:[%s3 + $0x238] sm:$0xff]
        %v522 = vld [vmem:[%s3 + $0x240] sm:$0xff]
        %v523 = vld [vmem:[%s3 + $0x248] sm:$0xf]
        %v524 = vld [vmem:[%s3 + $0x24c] sm:$0xff]
        %v525 = vld [vmem:[%s3 + $0x254] sm:$0xff]
        %v526 = vld [vmem:[%s3 + $0x25c] sm:$0xff]
        %v527 = vld [vmem:[%s3 + $0x264] sm:$0xf]
        %v528 = vld [vmem:[%s3 + $0x268] sm:$0xff]
        %v529 = vld [vmem:[%s3 + $0x270] sm:$0xff]
        %v530 = vld [vmem:[%s3 + $0x278] sm:$0xff]
        %v531 = vld [vmem:[%s3 + $0x280] sm:$0xf]
        %v532 = vld [vmem:[%s3 + $0x284] sm:$0xff]
        %v533 = vld [vmem:[%s3 + $0x28c] sm:$0xff]
        %v534 = vld [vmem:[%s3 + $0x294] sm:$0xff]
        %v535 = vld [vmem:[%s3 + $0x29c] sm:$0xf]
        %v536 = vld [vmem:[%s3 + $0x2a0] sm:$0xff]
        %v537 = vld [vmem:[%s3 + $0x2a8] sm:$0xff]
        %v538 = vld [vmem:[%s3 + $0x2b0] sm:$0xff]
        %v539 = vld [vmem:[%s3 + $0x2b8] sm:$0xf]
        %v540 = vld [vmem:[%s3 + $0x2bc] sm:$0xff]
        %v541 = vld [vmem:[%s3 + $0x2c4] sm:$0xff]
        %v542 = vld [vmem:[%s3 + $0x2cc] sm:$0xff]
        %v543 = vld [vmem:[%s3 + $0x2d4] sm:$0xf]
        %v544 = vld [vmem:[%s3 + $0x2d8] sm:$0xff]
        %v545 = vld [vmem:[%s3 + $0x2e0] sm:$0xff]
        %v546 = vld [vmem:[%s3 + $0x2e8] sm:$0xff]
        %v547 = vld [vmem:[%s3 + $0x2f0] sm:$0xf]
        %v548 = vld [vmem:[%s3 + $0x2f4] sm:$0xff]
        %v549 = vld [vmem:[%s3 + $0x2fc] sm:$0xff]
        %v550 = vld [vmem:[%s3 + $0x304] sm:$0xff]
        %v551 = vld [vmem:[%s3 + $0x30c] sm:$0xf]
        %v552 = vld [vmem:[%s3 + $0x310] sm:$0xff]
        %v553 = vld [vmem:[%s3 + $0x318] sm:$0xff]
        %v554 = vld [vmem:[%s3 + $0x320] sm:$0xff]
        %v555 = vld [vmem:[%s3 + $0x328] sm:$0xf]
        %v556 = vld [vmem:[%s3 + $0x32c] sm:$0xff]
        %v557 = vld [vmem:[%s3 + $0x334] sm:$0xff]
        %v558 = vld [vmem:[%s3 + $0x33c] sm:$0xff]
        %v559 = vld [vmem:[%s3 + $0x344] sm:$0xf]
        %v560 = vld [vmem:[%s3 + $0x348] sm:$0xff]
        %v561 = vld [vmem:[%s3 + $0x350] sm:$0xff]
        %v562 = vld [vmem:[%s3 + $0x358] sm:$0xff]
        %v563 = vld [vmem:[%s3 + $0x360] sm:$0xf]
        %v564 = vld [vmem:[%s3 + $0x364] sm:$0xff]
        %v565 = vld [vmem:[%s3 + $0x36c] sm:$0xff]
        %v566 = vld [vmem:[%s3 + $0x374] sm:$0xff]
        %v567 = vld [vmem:[%s3 + $0x37c] sm:$0xf]
        %v568 = vld [vmem:[%s3 + $0x380] sm:$0xff]
        %v569 = vld [vmem:[%s3 + $0x388] sm:$0xff]
        %v570 = vld [vmem:[%s3 + $0x390] sm:$0xff]
        %v571 = vld [vmem:[%s3 + $0x398] sm:$0xf]
        %v572 = vld [vmem:[%s3 + $0x39c] sm:$0xff]
        %v573 = vld [vmem:[%s3 + $0x3a4] sm:$0xff]
        %v574 = vld [vmem:[%s3 + $0x3ac] sm:$0xff]
        %v575 = vld [vmem:[%s3 + $0x3b4] sm:$0xf]
        %v576 = vld [vmem:[%s3 + $0x3b8] sm:$0xff]
        %v577 = vld [vmem:[%s3 + $0x3c0] sm:$0xff]
        %v578 = vld [vmem:[%s3 + $0x3c8] sm:$0xff]
        %v579 = vld [vmem:[%s3 + $0x3d0] sm:$0xf]
        %v580 = vld [vmem:[%s3 + $0x3d4] sm:$0xff]
        %v581 = vld [vmem:[%s3 + $0x3dc] sm:$0xff]
        %v582 = vld [vmem:[%s3 + $0x3e4] sm:$0xff]
        %v583 = vld [vmem:[%s3 + $0x3ec] sm:$0xf]
        %v584 = vld [vmem:[%s3 + $0x3f0] sm:$0xff]
        %v585 = vld [vmem:[%s3 + $0x3f8] sm:$0xff]
        %v586 = vld [vmem:[%s3 + $0x400] sm:$0xff]
        %v587 = vld [vmem:[%s3 + $0x408] sm:$0xf]
        %v588 = vld [vmem:[%s3 + $0x40c] sm:$0xff]
        %v589 = vld [vmem:[%s3 + $0x414] sm:$0xff]
        %v590 = vld [vmem:[%s3 + $0x41c] sm:$0xff]
        %v591 = vld [vmem:[%s3 + $0x424] sm:$0xf]
        %v592 = vld [vmem:[%s3 + $0x428] sm:$0xff]
        %v593 = vld [vmem:[%s3 + $0x430] sm:$0xff]
        %v594 = vld [vmem:[%s3 + $0x438] sm:$0xff]
        %v595 = vld [vmem:[%s3 + $0x440] sm:$0xf]
        %v596 = vld [vmem:[%s3 + $0x444] sm:$0xff]
        %v597 = vld [vmem:[%s3 + $0x44c] sm:$0xff]
        %v598 = vld [vmem:[%s3 + $0x454] sm:$0xff]
        %v599 = vld [vmem:[%s3 + $0x45c] sm:$0xf]
        %v600 = vld [vmem:[%s3 + $0x460] sm:$0xff]
        %v601 = vld [vmem:[%s3 + $0x468] sm:$0xff]
        %v602 = vld [vmem:[%s3 + $0x470] sm:$0xff]
        %v603 = vld [vmem:[%s3 + $0x478] sm:$0xf]
        %v604 = vld [vmem:[%s3 + $0x47c] sm:$0xff]
        %v605 = vld [vmem:[%s3 + $0x484] sm:$0xff]
        %v606 = vld [vmem:[%s3 + $0x48c] sm:$0xff]
        %v607 = vld [vmem:[%s3 + $0x494] sm:$0xf]
        %v608 = vld [vmem:[%s3 + $0x498] sm:$0xff]
        %v609 = vld [vmem:[%s3 + $0x4a0] sm:$0xff]
        %v610 = vld [vmem:[%s3 + $0x4a8] sm:$0xff]
        %v611 = vld [vmem:[%s3 + $0x4b0] sm:$0xf]
        %v612 = vld [vmem:[%s3 + $0x4b4] sm:$0xff]
        %v613 = vld [vmem:[%s3 + $0x4bc] sm:$0xff]
        %v614 = vld [vmem:[%s3 + $0x4c4] sm:$0xff]
        %v615 = vld [vmem:[%s3 + $0x4cc] sm:$0xf]
        %v616 = vld [vmem:[%s3 + $0x4d0] sm:$0xff]
        %v617 = vld [vmem:[%s3 + $0x4d8] sm:$0xff]
        %v618 = vld [vmem:[%s3 + $0x4e0] sm:$0xff]
        %v619 = vld [vmem:[%s3 + $0x4e8] sm:$0xf]
        %v620 = vld [vmem:[%s3 + $0x4ec] sm:$0xff]
        %v621 = vld [vmem:[%s3 + $0x4f4] sm:$0xff]
        %v622 = vld [vmem:[%s3 + $0x4fc] sm:$0xff]
        %v623 = vld [vmem:[%s3 + $0x504] sm:$0xf]
        %v624 = vld [vmem:[%s3 + $0x508] sm:$0xff]
        %v625 = vld [vmem:[%s3 + $0x510] sm:$0xff]
        %v626 = vld [vmem:[%s3 + $0x518] sm:$0xff]
        %v627 = vld [vmem:[%s3 + $0x520] sm:$0xf]
        %v628 = vld [vmem:[%s3 + $0x524] sm:$0xff]
        %v629 = vld [vmem:[%s3 + $0x52c] sm:$0xff]
        %v630 = vld [vmem:[%s3 + $0x534] sm:$0xff]
        %v631 = vld [vmem:[%s3 + $0x53c] sm:$0xf]
        %v632 = vld [vmem:[%s3 + $0x540] sm:$0xff]
        %v633 = vld [vmem:[%s3 + $0x548] sm:$0xff]
        %v634 = vld [vmem:[%s3 + $0x550] sm:$0xff]
        %v635 = vld [vmem:[%s3 + $0x558] sm:$0xf]
        %v636 = vld [vmem:[%s3 + $0x55c] sm:$0xff]
        %v637 = vld [vmem:[%s3 + $0x564] sm:$0xff]
        %v638 = vld [vmem:[%s3 + $0x56c] sm:$0xff]
        %v639 = vld [vmem:[%s3 + $0x574] sm:$0xf]
        %v640 = vld [vmem:[%s3 + $0x578] sm:$0xff]
        %v641 = vld [vmem:[%s3 + $0x580] sm:$0xff]
        %v642 = vld [vmem:[%s3 + $0x588] sm:$0xff]
        %v643 = vld [vmem:[%s3 + $0x590] sm:$0xf]
        %v644 = vld [vmem:[%s3 + $0x594] sm:$0xff]
        %v645 = vld [vmem:[%s3 + $0x59c] sm:$0xff]
        %v646 = vld [vmem:[%s3 + $0x5a4] sm:$0xff]
        %v647 = vld [vmem:[%s3 + $0x5ac] sm:$0xf]
        %v648 = vld [vmem:[%s3 + $0x5b0] sm:$0xff]
        %v649 = vld [vmem:[%s3 + $0x5b8] sm:$0xff]
        %v650 = vld [vmem:[%s3 + $0x5c0] sm:$0xff]
        %v651 = vld [vmem:[%s3 + $0x5c8] sm:$0xf]
        %v652 = vld [vmem:[%s3 + $0x5cc] sm:$0xff]
        %v653 = vld [vmem:[%s3 + $0x5d4] sm:$0xff]
        %v654 = vld [vmem:[%s3 + $0x5dc] sm:$0xff]
        %v655 = vld [vmem:[%s3 + $0x5e4] sm:$0xf]
        %v656 = vld [vmem:[%s3 + $0x5e8] sm:$0xff]
        %v657 = vld [vmem:[%s3 + $0x5f0] sm:$0xff]
        %v658 = vld [vmem:[%s3 + $0x5f8] sm:$0xff]
        %v659 = vld [vmem:[%s3 + $0x600] sm:$0xf]
        %v660 = vld [vmem:[%s3 + $0x604] sm:$0xff]
        %v661 = vld [vmem:[%s3 + $0x60c] sm:$0xff]
        %v662 = vld [vmem:[%s3 + $0x614] sm:$0xff]
        %v663 = vld [vmem:[%s3 + $0x61c] sm:$0xf]
        %v664 = vld [vmem:[%s3 + $0x620] sm:$0xff]
        %v665 = vld [vmem:[%s3 + $0x628] sm:$0xff]
        %v666 = vld [vmem:[%s3 + $0x630] sm:$0xff]
        %v667 = vld [vmem:[%s3 + $0x638] sm:$0xf]
        %v668 = vld [vmem:[%s3 + $0x63c] sm:$0xff]
        %v669 = vld [vmem:[%s3 + $0x644] sm:$0xff]
        %v670 = vld [vmem:[%s3 + $0x64c] sm:$0xff]
        %v671 = vld [vmem:[%s3 + $0x654] sm:$0xf]
        %v672 = vld [vmem:[%s3 + $0x658] sm:$0xff]
        %v673 = vld [vmem:[%s3 + $0x660] sm:$0xff]
        %v674 = vld [vmem:[%s3 + $0x668] sm:$0xff]
        %v675 = vld [vmem:[%s3 + $0x670] sm:$0xf]
        %v676 = vld [vmem:[%s3 + $0x674] sm:$0xff]
        %v677 = vld [vmem:[%s3 + $0x67c] sm:$0xff]
        %v678 = vld [vmem:[%s3 + $0x684] sm:$0xff]
        %v679 = vld [vmem:[%s3 + $0x68c] sm:$0xf]
        %v680 = vld [vmem:[%s3 + $0x690] sm:$0xff]
        %v681 = vld [vmem:[%s3 + $0x698] sm:$0xff]
        %v682 = vld [vmem:[%s3 + $0x6a0] sm:$0xff]
        %v683 = vld [vmem:[%s3 + $0x6a8] sm:$0xf]
        %v684 = vld [vmem:[%s3 + $0x6ac] sm:$0xff]
        %v685 = vld [vmem:[%s3 + $0x6b4] sm:$0xff]
        %v686 = vld [vmem:[%s3 + $0x6bc] sm:$0xff]
        %v687 = vld [vmem:[%s3 + $0x6c4] sm:$0xf]
        %v688 = vld [vmem:[%s3 + $0x6c8] sm:$0xff]
        %v689 = vld [vmem:[%s3 + $0x6d0] sm:$0xff]
        %v690 = vld [vmem:[%s3 + $0x6d8] sm:$0xff]
        %v691 = vld [vmem:[%s3 + $0x6e0] sm:$0xf]
        %v692 = vld [vmem:[%s3 + $0x6e4] sm:$0xff]
        %v693 = vld [vmem:[%s3 + $0x6ec] sm:$0xff]
        %v694 = vld [vmem:[%s3 + $0x6f4] sm:$0xff]
        %v695 = vld [vmem:[%s3 + $0x6fc] sm:$0xf]
        %v696 = vld [vmem:[%s4] sm:$0x7f]
        %v698 = vlaneseq
        %v699 = vshrl.u32 %v698, 7
        %v700 = vsub.s32 0, %v699
        %v701 = vrot.slane %v696, %v700
        %v702 = vlaneseq
        %v703 = vshrl.u32 %v702, 7
        %v704 = vsub.s32 1, %v703
        %v705 = vrot.slane %v696, %v704
        %v706 = vlaneseq
        %v707 = vshrl.u32 %v706, 7
        %v708 = vsub.s32 2, %v707
        %v709 = vrot.slane %v696, %v708
        %v710 = vlaneseq
        %v711 = vshrl.u32 %v710, 7
        %v712 = vsub.s32 3, %v711
        %v713 = vrot.slane %v696, %v712
        %v714 = vlaneseq
        %v715 = vshrl.u32 %v714, 7
        %v716 = vsub.s32 4, %v715
        %v717 = vrot.slane %v696, %v716
        %v718 = vlaneseq
        %v719 = vshrl.u32 %v718, 7
        %v720 = vsub.s32 5, %v719
        %v721 = vrot.slane %v696, %v720
        %v722 = vlaneseq
        %v723 = vshrl.u32 %v722, 7
        %v724 = vsub.s32 6, %v723
        %v725 = vrot.slane %v696, %v724
        %v989 = vunpack.c.l.b16 %v440
        %v990 = vunpack.c.h.b16 %v440
        %v991 = vunpack.c.l.b16 %v441
        %v992 = vunpack.c.h.b16 %v441
        %v993 = vunpack.c.l.b16 %v442
        %v994 = vunpack.c.h.b16 %v442
        %v995 = vunpack.c.l.b16 %v443
        %v996 = vunpack.c.l.b16 %v444
        %v997 = vunpack.c.h.b16 %v444
        %v998 = vunpack.c.l.b16 %v445
        %v999 = vunpack.c.h.b16 %v445
        %v1000 = vunpack.c.l.b16 %v446
        %v1001 = vunpack.c.h.b16 %v446
        %v1002 = vunpack.c.l.b16 %v447
        %v1003 = vunpack.c.l.b16 %v448
        %v1004 = vunpack.c.h.b16 %v448
        %v1005 = vunpack.c.l.b16 %v449
        %v1006 = vunpack.c.h.b16 %v449
        %v1007 = vunpack.c.l.b16 %v450
        %v1008 = vunpack.c.h.b16 %v450
        %v1009 = vunpack.c.l.b16 %v451
        %v1010 = vunpack.c.l.b16 %v452
        %v1011 = vunpack.c.h.b16 %v452
        %v1012 = vunpack.c.l.b16 %v453
        %v1013 = vunpack.c.h.b16 %v453
        %v1014 = vunpack.c.l.b16 %v454
        %v1015 = vunpack.c.h.b16 %v454
        %v1016 = vunpack.c.l.b16 %v455
        %v1017 = vunpack.c.l.b16 %v456
        %v1018 = vunpack.c.h.b16 %v456
        %v1019 = vunpack.c.l.b16 %v457
        %v1020 = vunpack.c.h.b16 %v457
        %v1021 = vunpack.c.l.b16 %v458
        %v1022 = vunpack.c.h.b16 %v458
        %v1023 = vunpack.c.l.b16 %v459
        %v1024 = vunpack.c.l.b16 %v460
        %v1025 = vunpack.c.h.b16 %v460
        %v1026 = vunpack.c.l.b16 %v461
        %v1027 = vunpack.c.h.b16 %v461
        %v1028 = vunpack.c.l.b16 %v462
        %v1029 = vunpack.c.h.b16 %v462
        %v1030 = vunpack.c.l.b16 %v463
        %v1031 = vunpack.c.l.b16 %v464
        %v1032 = vunpack.c.h.b16 %v464
        %v1033 = vunpack.c.l.b16 %v465
        %v1034 = vunpack.c.h.b16 %v465
        %v1035 = vunpack.c.l.b16 %v466
        %v1036 = vunpack.c.h.b16 %v466
        %v1037 = vunpack.c.l.b16 %v467
        %v1038 = vunpack.c.l.b16 %v468
        %v1039 = vunpack.c.h.b16 %v468
        %v1040 = vunpack.c.l.b16 %v469
        %v1041 = vunpack.c.h.b16 %v469
        %v1042 = vunpack.c.l.b16 %v470
        %v1043 = vunpack.c.h.b16 %v470
        %v1044 = vunpack.c.l.b16 %v471
        %v1045 = vunpack.c.l.b16 %v472
        %v1046 = vunpack.c.h.b16 %v472
        %v1047 = vunpack.c.l.b16 %v473
        %v1048 = vunpack.c.h.b16 %v473
        %v1049 = vunpack.c.l.b16 %v474
        %v1050 = vunpack.c.h.b16 %v474
        %v1051 = vunpack.c.l.b16 %v475
        %v1052 = vunpack.c.l.b16 %v476
        %v1053 = vunpack.c.h.b16 %v476
        %v1054 = vunpack.c.l.b16 %v477
        %v1055 = vunpack.c.h.b16 %v477
        %v1056 = vunpack.c.l.b16 %v478
        %v1057 = vunpack.c.h.b16 %v478
        %v1058 = vunpack.c.l.b16 %v479
        %v1059 = vunpack.c.l.b16 %v480
        %v1060 = vunpack.c.h.b16 %v480
        %v1061 = vunpack.c.l.b16 %v481
        %v1062 = vunpack.c.h.b16 %v481
        %v1063 = vunpack.c.l.b16 %v482
        %v1064 = vunpack.c.h.b16 %v482
        %v1065 = vunpack.c.l.b16 %v483
        %v1066 = vunpack.c.l.b16 %v484
        %v1067 = vunpack.c.h.b16 %v484
        %v1068 = vunpack.c.l.b16 %v485
        %v1069 = vunpack.c.h.b16 %v485
        %v1070 = vunpack.c.l.b16 %v486
        %v1071 = vunpack.c.h.b16 %v486
        %v1072 = vunpack.c.l.b16 %v487
        %v1073 = vunpack.c.l.b16 %v488
        %v1074 = vunpack.c.h.b16 %v488
        %v1075 = vunpack.c.l.b16 %v489
        %v1076 = vunpack.c.h.b16 %v489
        %v1077 = vunpack.c.l.b16 %v490
        %v1078 = vunpack.c.h.b16 %v490
        %v1079 = vunpack.c.l.b16 %v491
        %v1080 = vunpack.c.l.b16 %v492
        %v1081 = vunpack.c.h.b16 %v492
        %v1082 = vunpack.c.l.b16 %v493
        %v1083 = vunpack.c.h.b16 %v493
        %v1084 = vunpack.c.l.b16 %v494
        %v1085 = vunpack.c.h.b16 %v494
        %v1086 = vunpack.c.l.b16 %v495
        %v1087 = vunpack.c.l.b16 %v496
        %v1088 = vunpack.c.h.b16 %v496
        %v1089 = vunpack.c.l.b16 %v497
        %v1090 = vunpack.c.h.b16 %v497
        %v1091 = vunpack.c.l.b16 %v498
        %v1092 = vunpack.c.h.b16 %v498
        %v1093 = vunpack.c.l.b16 %v499
        %v1094 = vunpack.c.l.b16 %v500
        %v1095 = vunpack.c.h.b16 %v500
        %v1096 = vunpack.c.l.b16 %v501
        %v1097 = vunpack.c.h.b16 %v501
        %v1098 = vunpack.c.l.b16 %v502
        %v1099 = vunpack.c.h.b16 %v502
        %v1100 = vunpack.c.l.b16 %v503
        %v1101 = vunpack.c.l.b16 %v504
        %v1102 = vunpack.c.h.b16 %v504
        %v1103 = vunpack.c.l.b16 %v505
        %v1104 = vunpack.c.h.b16 %v505
        %v1105 = vunpack.c.l.b16 %v506
        %v1106 = vunpack.c.h.b16 %v506
        %v1107 = vunpack.c.l.b16 %v507
        %v1108 = vunpack.c.l.b16 %v508
        %v1109 = vunpack.c.h.b16 %v508
        %v1110 = vunpack.c.l.b16 %v509
        %v1111 = vunpack.c.h.b16 %v509
        %v1112 = vunpack.c.l.b16 %v510
        %v1113 = vunpack.c.h.b16 %v510
        %v1114 = vunpack.c.l.b16 %v511
        %v1115 = vunpack.c.l.b16 %v512
        %v1116 = vunpack.c.h.b16 %v512
        %v1117 = vunpack.c.l.b16 %v513
        %v1118 = vunpack.c.h.b16 %v513
        %v1119 = vunpack.c.l.b16 %v514
        %v1120 = vunpack.c.h.b16 %v514
        %v1121 = vunpack.c.l.b16 %v515
        %v1122 = vunpack.c.l.b16 %v516
        %v1123 = vunpack.c.h.b16 %v516
        %v1124 = vunpack.c.l.b16 %v517
        %v1125 = vunpack.c.h.b16 %v517
        %v1126 = vunpack.c.l.b16 %v518
        %v1127 = vunpack.c.h.b16 %v518
        %v1128 = vunpack.c.l.b16 %v519
        %v1129 = vunpack.c.l.b16 %v520
        %v1130 = vunpack.c.h.b16 %v520
        %v1131 = vunpack.c.l.b16 %v521
        %v1132 = vunpack.c.h.b16 %v521
        %v1133 = vunpack.c.l.b16 %v522
        %v1134 = vunpack.c.h.b16 %v522
        %v1135 = vunpack.c.l.b16 %v523
        %v1136 = vunpack.c.l.b16 %v524
        %v1137 = vunpack.c.h.b16 %v524
        %v1138 = vunpack.c.l.b16 %v525
        %v1139 = vunpack.c.h.b16 %v525
        %v1140 = vunpack.c.l.b16 %v526
        %v1141 = vunpack.c.h.b16 %v526
        %v1142 = vunpack.c.l.b16 %v527
        %v1143 = vunpack.c.l.b16 %v528
        %v1144 = vunpack.c.h.b16 %v528
        %v1145 = vunpack.c.l.b16 %v529
        %v1146 = vunpack.c.h.b16 %v529
        %v1147 = vunpack.c.l.b16 %v530
        %v1148 = vunpack.c.h.b16 %v530
        %v1149 = vunpack.c.l.b16 %v531
        %v1150 = vunpack.c.l.b16 %v532
        %v1151 = vunpack.c.h.b16 %v532
        %v1152 = vunpack.c.l.b16 %v533
        %v1153 = vunpack.c.h.b16 %v533
        %v1154 = vunpack.c.l.b16 %v534
        %v1155 = vunpack.c.h.b16 %v534
        %v1156 = vunpack.c.l.b16 %v535
        %v1157 = vunpack.c.l.b16 %v536
        %v1158 = vunpack.c.h.b16 %v536
        %v1159 = vunpack.c.l.b16 %v537
        %v1160 = vunpack.c.h.b16 %v537
        %v1161 = vunpack.c.l.b16 %v538
        %v1162 = vunpack.c.h.b16 %v538
        %v1163 = vunpack.c.l.b16 %v539
        %v1164 = vunpack.c.l.b16 %v540
        %v1165 = vunpack.c.h.b16 %v540
        %v1166 = vunpack.c.l.b16 %v541
        %v1167 = vunpack.c.h.b16 %v541
        %v1168 = vunpack.c.l.b16 %v542
        %v1169 = vunpack.c.h.b16 %v542
        %v1170 = vunpack.c.l.b16 %v543
        %v1171 = vunpack.c.l.b16 %v544
        %v1172 = vunpack.c.h.b16 %v544
        %v1173 = vunpack.c.l.b16 %v545
        %v1174 = vunpack.c.h.b16 %v545
        %v1175 = vunpack.c.l.b16 %v546
        %v1176 = vunpack.c.h.b16 %v546
        %v1177 = vunpack.c.l.b16 %v547
        %v1178 = vunpack.c.l.b16 %v548
        %v1179 = vunpack.c.h.b16 %v548
        %v1180 = vunpack.c.l.b16 %v549
        %v1181 = vunpack.c.h.b16 %v549
        %v1182 = vunpack.c.l.b16 %v550
        %v1183 = vunpack.c.h.b16 %v550
        %v1184 = vunpack.c.l.b16 %v551
        %v1185 = vunpack.c.l.b16 %v552
        %v1186 = vunpack.c.h.b16 %v552
        %v1187 = vunpack.c.l.b16 %v553
        %v1188 = vunpack.c.h.b16 %v553
        %v1189 = vunpack.c.l.b16 %v554
        %v1190 = vunpack.c.h.b16 %v554
        %v1191 = vunpack.c.l.b16 %v555
        %v1192 = vunpack.c.l.b16 %v556
        %v1193 = vunpack.c.h.b16 %v556
        %v1194 = vunpack.c.l.b16 %v557
        %v1195 = vunpack.c.h.b16 %v557
        %v1196 = vunpack.c.l.b16 %v558
        %v1197 = vunpack.c.h.b16 %v558
        %v1198 = vunpack.c.l.b16 %v559
        %v1199 = vunpack.c.l.b16 %v560
        %v1200 = vunpack.c.h.b16 %v560
        %v1201 = vunpack.c.l.b16 %v561
        %v1202 = vunpack.c.h.b16 %v561
        %v1203 = vunpack.c.l.b16 %v562
        %v1204 = vunpack.c.h.b16 %v562
        %v1205 = vunpack.c.l.b16 %v563
        %v1206 = vunpack.c.l.b16 %v564
        %v1207 = vunpack.c.h.b16 %v564
        %v1208 = vunpack.c.l.b16 %v565
        %v1209 = vunpack.c.h.b16 %v565
        %v1210 = vunpack.c.l.b16 %v566
        %v1211 = vunpack.c.h.b16 %v566
        %v1212 = vunpack.c.l.b16 %v567
        %v1213 = vunpack.c.l.b16 %v568
        %v1214 = vunpack.c.h.b16 %v568
        %v1215 = vunpack.c.l.b16 %v569
        %v1216 = vunpack.c.h.b16 %v569
        %v1217 = vunpack.c.l.b16 %v570
        %v1218 = vunpack.c.h.b16 %v570
        %v1219 = vunpack.c.l.b16 %v571
        %v1220 = vunpack.c.l.b16 %v572
        %v1221 = vunpack.c.h.b16 %v572
        %v1222 = vunpack.c.l.b16 %v573
        %v1223 = vunpack.c.h.b16 %v573
        %v1224 = vunpack.c.l.b16 %v574
        %v1225 = vunpack.c.h.b16 %v574
        %v1226 = vunpack.c.l.b16 %v575
        %v1227 = vunpack.c.l.b16 %v576
        %v1228 = vunpack.c.h.b16 %v576
        %v1229 = vunpack.c.l.b16 %v577
        %v1230 = vunpack.c.h.b16 %v577
        %v1231 = vunpack.c.l.b16 %v578
        %v1232 = vunpack.c.h.b16 %v578
        %v1233 = vunpack.c.l.b16 %v579
        %v1234 = vunpack.c.l.b16 %v580
        %v1235 = vunpack.c.h.b16 %v580
        %v1236 = vunpack.c.l.b16 %v581
        %v1237 = vunpack.c.h.b16 %v581
        %v1238 = vunpack.c.l.b16 %v582
        %v1239 = vunpack.c.h.b16 %v582
        %v1240 = vunpack.c.l.b16 %v583
        %v1241 = vunpack.c.l.b16 %v584
        %v1242 = vunpack.c.h.b16 %v584
        %v1243 = vunpack.c.l.b16 %v585
        %v1244 = vunpack.c.h.b16 %v585
        %v1245 = vunpack.c.l.b16 %v586
        %v1246 = vunpack.c.h.b16 %v586
        %v1247 = vunpack.c.l.b16 %v587
        %v1248 = vunpack.c.l.b16 %v588
        %v1249 = vunpack.c.h.b16 %v588
        %v1250 = vunpack.c.l.b16 %v589
        %v1251 = vunpack.c.h.b16 %v589
        %v1252 = vunpack.c.l.b16 %v590
        %v1253 = vunpack.c.h.b16 %v590
        %v1254 = vunpack.c.l.b16 %v591
        %v1255 = vunpack.c.l.b16 %v592
        %v1256 = vunpack.c.h.b16 %v592
        %v1257 = vunpack.c.l.b16 %v593
        %v1258 = vunpack.c.h.b16 %v593
        %v1259 = vunpack.c.l.b16 %v594
        %v1260 = vunpack.c.h.b16 %v594
        %v1261 = vunpack.c.l.b16 %v595
        %v1262 = vunpack.c.l.b16 %v596
        %v1263 = vunpack.c.h.b16 %v596
        %v1264 = vunpack.c.l.b16 %v597
        %v1265 = vunpack.c.h.b16 %v597
        %v1266 = vunpack.c.l.b16 %v598
        %v1267 = vunpack.c.h.b16 %v598
        %v1268 = vunpack.c.l.b16 %v599
        %v1269 = vunpack.c.l.b16 %v600
        %v1270 = vunpack.c.h.b16 %v600
        %v1271 = vunpack.c.l.b16 %v601
        %v1272 = vunpack.c.h.b16 %v601
        %v1273 = vunpack.c.l.b16 %v602
        %v1274 = vunpack.c.h.b16 %v602
        %v1275 = vunpack.c.l.b16 %v603
        %v1276 = vunpack.c.l.b16 %v604
        %v1277 = vunpack.c.h.b16 %v604
        %v1278 = vunpack.c.l.b16 %v605
        %v1279 = vunpack.c.h.b16 %v605
        %v1280 = vunpack.c.l.b16 %v606
        %v1281 = vunpack.c.h.b16 %v606
        %v1282 = vunpack.c.l.b16 %v607
        %v1283 = vunpack.c.l.b16 %v608
        %v1284 = vunpack.c.h.b16 %v608
        %v1285 = vunpack.c.l.b16 %v609
        %v1286 = vunpack.c.h.b16 %v609
        %v1287 = vunpack.c.l.b16 %v610
        %v1288 = vunpack.c.h.b16 %v610
        %v1289 = vunpack.c.l.b16 %v611
        %v1290 = vunpack.c.l.b16 %v612
        %v1291 = vunpack.c.h.b16 %v612
        %v1292 = vunpack.c.l.b16 %v613
        %v1293 = vunpack.c.h.b16 %v613
        %v1294 = vunpack.c.l.b16 %v614
        %v1295 = vunpack.c.h.b16 %v614
        %v1296 = vunpack.c.l.b16 %v615
        %v1297 = vunpack.c.l.b16 %v616
        %v1298 = vunpack.c.h.b16 %v616
        %v1299 = vunpack.c.l.b16 %v617
        %v1300 = vunpack.c.h.b16 %v617
        %v1301 = vunpack.c.l.b16 %v618
        %v1302 = vunpack.c.h.b16 %v618
        %v1303 = vunpack.c.l.b16 %v619
        %v1304 = vunpack.c.l.b16 %v620
        %v1305 = vunpack.c.h.b16 %v620
        %v1306 = vunpack.c.l.b16 %v621
        %v1307 = vunpack.c.h.b16 %v621
        %v1308 = vunpack.c.l.b16 %v622
        %v1309 = vunpack.c.h.b16 %v622
        %v1310 = vunpack.c.l.b16 %v623
        %v1311 = vunpack.c.l.b16 %v624
        %v1312 = vunpack.c.h.b16 %v624
        %v1313 = vunpack.c.l.b16 %v625
        %v1314 = vunpack.c.h.b16 %v625
        %v1315 = vunpack.c.l.b16 %v626
        %v1316 = vunpack.c.h.b16 %v626
        %v1317 = vunpack.c.l.b16 %v627
        %v1318 = vunpack.c.l.b16 %v628
        %v1319 = vunpack.c.h.b16 %v628
        %v1320 = vunpack.c.l.b16 %v629
        %v1321 = vunpack.c.h.b16 %v629
        %v1322 = vunpack.c.l.b16 %v630
        %v1323 = vunpack.c.h.b16 %v630
        %v1324 = vunpack.c.l.b16 %v631
        %v1325 = vunpack.c.l.b16 %v632
        %v1326 = vunpack.c.h.b16 %v632
        %v1327 = vunpack.c.l.b16 %v633
        %v1328 = vunpack.c.h.b16 %v633
        %v1329 = vunpack.c.l.b16 %v634
        %v1330 = vunpack.c.h.b16 %v634
        %v1331 = vunpack.c.l.b16 %v635
        %v1332 = vunpack.c.l.b16 %v636
        %v1333 = vunpack.c.h.b16 %v636
        %v1334 = vunpack.c.l.b16 %v637
        %v1335 = vunpack.c.h.b16 %v637
        %v1336 = vunpack.c.l.b16 %v638
        %v1337 = vunpack.c.h.b16 %v638
        %v1338 = vunpack.c.l.b16 %v639
        %v1339 = vunpack.c.l.b16 %v640
        %v1340 = vunpack.c.h.b16 %v640
        %v1341 = vunpack.c.l.b16 %v641
        %v1342 = vunpack.c.h.b16 %v641
        %v1343 = vunpack.c.l.b16 %v642
        %v1344 = vunpack.c.h.b16 %v642
        %v1345 = vunpack.c.l.b16 %v643
        %v1346 = vunpack.c.l.b16 %v644
        %v1347 = vunpack.c.h.b16 %v644
        %v1348 = vunpack.c.l.b16 %v645
        %v1349 = vunpack.c.h.b16 %v645
        %v1350 = vunpack.c.l.b16 %v646
        %v1351 = vunpack.c.h.b16 %v646
        %v1352 = vunpack.c.l.b16 %v647
        %v1353 = vunpack.c.l.b16 %v648
        %v1354 = vunpack.c.h.b16 %v648
        %v1355 = vunpack.c.l.b16 %v649
        %v1356 = vunpack.c.h.b16 %v649
        %v1357 = vunpack.c.l.b16 %v650
        %v1358 = vunpack.c.h.b16 %v650
        %v1359 = vunpack.c.l.b16 %v651
        %v1360 = vunpack.c.l.b16 %v652
        %v1361 = vunpack.c.h.b16 %v652
        %v1362 = vunpack.c.l.b16 %v653
        %v1363 = vunpack.c.h.b16 %v653
        %v1364 = vunpack.c.l.b16 %v654
        %v1365 = vunpack.c.h.b16 %v654
        %v1366 = vunpack.c.l.b16 %v655
        %v1367 = vunpack.c.l.b16 %v656
        %v1368 = vunpack.c.h.b16 %v656
        %v1369 = vunpack.c.l.b16 %v657
        %v1370 = vunpack.c.h.b16 %v657
        %v1371 = vunpack.c.l.b16 %v658
        %v1372 = vunpack.c.h.b16 %v658
        %v1373 = vunpack.c.l.b16 %v659
        %v1374 = vunpack.c.l.b16 %v660
        %v1375 = vunpack.c.h.b16 %v660
        %v1376 = vunpack.c.l.b16 %v661
        %v1377 = vunpack.c.h.b16 %v661
        %v1378 = vunpack.c.l.b16 %v662
        %v1379 = vunpack.c.h.b16 %v662
        %v1380 = vunpack.c.l.b16 %v663
        %v1381 = vunpack.c.l.b16 %v664
        %v1382 = vunpack.c.h.b16 %v664
        %v1383 = vunpack.c.l.b16 %v665
        %v1384 = vunpack.c.h.b16 %v665
        %v1385 = vunpack.c.l.b16 %v666
        %v1386 = vunpack.c.h.b16 %v666
        %v1387 = vunpack.c.l.b16 %v667
        %v1388 = vunpack.c.l.b16 %v668
        %v1389 = vunpack.c.h.b16 %v668
        %v1390 = vunpack.c.l.b16 %v669
        %v1391 = vunpack.c.h.b16 %v669
        %v1392 = vunpack.c.l.b16 %v670
        %v1393 = vunpack.c.h.b16 %v670
        %v1394 = vunpack.c.l.b16 %v671
        %v1395 = vunpack.c.l.b16 %v672
        %v1396 = vunpack.c.h.b16 %v672
        %v1397 = vunpack.c.l.b16 %v673
        %v1398 = vunpack.c.h.b16 %v673
        %v1399 = vunpack.c.l.b16 %v674
        %v1400 = vunpack.c.h.b16 %v674
        %v1401 = vunpack.c.l.b16 %v675
        %v1402 = vunpack.c.l.b16 %v676
        %v1403 = vunpack.c.h.b16 %v676
        %v1404 = vunpack.c.l.b16 %v677
        %v1405 = vunpack.c.h.b16 %v677
        %v1406 = vunpack.c.l.b16 %v678
        %v1407 = vunpack.c.h.b16 %v678
        %v1408 = vunpack.c.l.b16 %v679
        %v1409 = vunpack.c.l.b16 %v680
        %v1410 = vunpack.c.h.b16 %v680
        %v1411 = vunpack.c.l.b16 %v681
        %v1412 = vunpack.c.h.b16 %v681
        %v1413 = vunpack.c.l.b16 %v682
        %v1414 = vunpack.c.h.b16 %v682
        %v1415 = vunpack.c.l.b16 %v683
        %v1416 = vunpack.c.l.b16 %v684
        %v1417 = vunpack.c.h.b16 %v684
        %v1418 = vunpack.c.l.b16 %v685
        %v1419 = vunpack.c.h.b16 %v685
        %v1420 = vunpack.c.l.b16 %v686
        %v1421 = vunpack.c.h.b16 %v686
        %v1422 = vunpack.c.l.b16 %v687
        %v1423 = vunpack.c.l.b16 %v688
        %v1424 = vunpack.c.h.b16 %v688
        %v1425 = vunpack.c.l.b16 %v689
        %v1426 = vunpack.c.h.b16 %v689
        %v1427 = vunpack.c.l.b16 %v690
        %v1428 = vunpack.c.h.b16 %v690
        %v1429 = vunpack.c.l.b16 %v691
        %v1430 = vunpack.c.l.b16 %v692
        %v1431 = vunpack.c.h.b16 %v692
        %v1432 = vunpack.c.l.b16 %v693
        %v1433 = vunpack.c.h.b16 %v693
        %v1434 = vunpack.c.l.b16 %v694
        %v1435 = vunpack.c.h.b16 %v694
        %v1436 = vunpack.c.l.b16 %v695
        %v1437 = vpack.c.b16 %v996, %v989
        %v1438 = vpack.c.b16 %v997, %v990
        %v1439 = vpack.c.b16 %v998, %v991
        %v1440 = vpack.c.b16 %v999, %v992
        %v1441 = vpack.c.b16 %v1000, %v993
        %v1442 = vpack.c.b16 %v1001, %v994
        %v1443 = vpack.c.b16 %v1002, %v995
        %v1444 = vpack.c.b16 %v1010, %v1003
        %v1445 = vpack.c.b16 %v1011, %v1004
        %v1446 = vpack.c.b16 %v1012, %v1005
        %v1447 = vpack.c.b16 %v1013, %v1006
        %v1448 = vpack.c.b16 %v1014, %v1007
        %v1449 = vpack.c.b16 %v1015, %v1008
        %v1450 = vpack.c.b16 %v1016, %v1009
        %v1451 = vpack.c.b16 %v1024, %v1017
        %v1452 = vpack.c.b16 %v1025, %v1018
        %v1453 = vpack.c.b16 %v1026, %v1019
        %v1454 = vpack.c.b16 %v1027, %v1020
        %v1455 = vpack.c.b16 %v1028, %v1021
        %v1456 = vpack.c.b16 %v1029, %v1022
        %v1457 = vpack.c.b16 %v1030, %v1023
        %v1458 = vpack.c.b16 %v1038, %v1031
        %v1459 = vpack.c.b16 %v1039, %v1032
        %v1460 = vpack.c.b16 %v1040, %v1033
        %v1461 = vpack.c.b16 %v1041, %v1034
        %v1462 = vpack.c.b16 %v1042, %v1035
        %v1463 = vpack.c.b16 %v1043, %v1036
        %v1464 = vpack.c.b16 %v1044, %v1037
        %v1465 = vpack.c.b16 %v1052, %v1045
        %v1466 = vpack.c.b16 %v1053, %v1046
        %v1467 = vpack.c.b16 %v1054, %v1047
        %v1468 = vpack.c.b16 %v1055, %v1048
        %v1469 = vpack.c.b16 %v1056, %v1049
        %v1470 = vpack.c.b16 %v1057, %v1050
        %v1471 = vpack.c.b16 %v1058, %v1051
        %v1472 = vpack.c.b16 %v1066, %v1059
        %v1473 = vpack.c.b16 %v1067, %v1060
        %v1474 = vpack.c.b16 %v1068, %v1061
        %v1475 = vpack.c.b16 %v1069, %v1062
        %v1476 = vpack.c.b16 %v1070, %v1063
        %v1477 = vpack.c.b16 %v1071, %v1064
        %v1478 = vpack.c.b16 %v1072, %v1065
        %v1479 = vpack.c.b16 %v1080, %v1073
        %v1480 = vpack.c.b16 %v1081, %v1074
        %v1481 = vpack.c.b16 %v1082, %v1075
        %v1482 = vpack.c.b16 %v1083, %v1076
        %v1483 = vpack.c.b16 %v1084, %v1077
        %v1484 = vpack.c.b16 %v1085, %v1078
        %v1485 = vpack.c.b16 %v1086, %v1079
        %v1486 = vpack.c.b16 %v1094, %v1087
        %v1487 = vpack.c.b16 %v1095, %v1088
        %v1488 = vpack.c.b16 %v1096, %v1089
        %v1489 = vpack.c.b16 %v1097, %v1090
        %v1490 = vpack.c.b16 %v1098, %v1091
        %v1491 = vpack.c.b16 %v1099, %v1092
        %v1492 = vpack.c.b16 %v1100, %v1093
        %v1493 = vpack.c.b16 %v1108, %v1101
        %v1494 = vpack.c.b16 %v1109, %v1102
        %v1495 = vpack.c.b16 %v1110, %v1103
        %v1496 = vpack.c.b16 %v1111, %v1104
        %v1497 = vpack.c.b16 %v1112, %v1105
        %v1498 = vpack.c.b16 %v1113, %v1106
        %v1499 = vpack.c.b16 %v1114, %v1107
        %v1500 = vpack.c.b16 %v1122, %v1115
        %v1501 = vpack.c.b16 %v1123, %v1116
        %v1502 = vpack.c.b16 %v1124, %v1117
        %v1503 = vpack.c.b16 %v1125, %v1118
        %v1504 = vpack.c.b16 %v1126, %v1119
        %v1505 = vpack.c.b16 %v1127, %v1120
        %v1506 = vpack.c.b16 %v1128, %v1121
        %v1507 = vpack.c.b16 %v1136, %v1129
        %v1508 = vpack.c.b16 %v1137, %v1130
        %v1509 = vpack.c.b16 %v1138, %v1131
        %v1510 = vpack.c.b16 %v1139, %v1132
        %v1511 = vpack.c.b16 %v1140, %v1133
        %v1512 = vpack.c.b16 %v1141, %v1134
        %v1513 = vpack.c.b16 %v1142, %v1135
        %v1514 = vpack.c.b16 %v1150, %v1143
        %v1515 = vpack.c.b16 %v1151, %v1144
        %v1516 = vpack.c.b16 %v1152, %v1145
        %v1517 = vpack.c.b16 %v1153, %v1146
        %v1518 = vpack.c.b16 %v1154, %v1147
        %v1519 = vpack.c.b16 %v1155, %v1148
        %v1520 = vpack.c.b16 %v1156, %v1149
        %v1521 = vpack.c.b16 %v1164, %v1157
        %v1522 = vpack.c.b16 %v1165, %v1158
        %v1523 = vpack.c.b16 %v1166, %v1159
        %v1524 = vpack.c.b16 %v1167, %v1160
        %v1525 = vpack.c.b16 %v1168, %v1161
        %v1526 = vpack.c.b16 %v1169, %v1162
        %v1527 = vpack.c.b16 %v1170, %v1163
        %v1528 = vpack.c.b16 %v1178, %v1171
        %v1529 = vpack.c.b16 %v1179, %v1172
        %v1530 = vpack.c.b16 %v1180, %v1173
        %v1531 = vpack.c.b16 %v1181, %v1174
        %v1532 = vpack.c.b16 %v1182, %v1175
        %v1533 = vpack.c.b16 %v1183, %v1176
        %v1534 = vpack.c.b16 %v1184, %v1177
        %v1535 = vpack.c.b16 %v1192, %v1185
        %v1536 = vpack.c.b16 %v1193, %v1186
        %v1537 = vpack.c.b16 %v1194, %v1187
        %v1538 = vpack.c.b16 %v1195, %v1188
        %v1539 = vpack.c.b16 %v1196, %v1189
        %v1540 = vpack.c.b16 %v1197, %v1190
        %v1541 = vpack.c.b16 %v1198, %v1191
        %v1542 = vpack.c.b16 %v1206, %v1199
        %v1543 = vpack.c.b16 %v1207, %v1200
        %v1544 = vpack.c.b16 %v1208, %v1201
        %v1545 = vpack.c.b16 %v1209, %v1202
        %v1546 = vpack.c.b16 %v1210, %v1203
        %v1547 = vpack.c.b16 %v1211, %v1204
        %v1548 = vpack.c.b16 %v1212, %v1205
        %v1549 = vpack.c.b16 %v1220, %v1213
        %v1550 = vpack.c.b16 %v1221, %v1214
        %v1551 = vpack.c.b16 %v1222, %v1215
        %v1552 = vpack.c.b16 %v1223, %v1216
        %v1553 = vpack.c.b16 %v1224, %v1217
        %v1554 = vpack.c.b16 %v1225, %v1218
        %v1555 = vpack.c.b16 %v1226, %v1219
        %v1556 = vpack.c.b16 %v1234, %v1227
        %v1557 = vpack.c.b16 %v1235, %v1228
        %v1558 = vpack.c.b16 %v1236, %v1229
        %v1559 = vpack.c.b16 %v1237, %v1230
        %v1560 = vpack.c.b16 %v1238, %v1231
        %v1561 = vpack.c.b16 %v1239, %v1232
        %v1562 = vpack.c.b16 %v1240, %v1233
        %v1563 = vpack.c.b16 %v1248, %v1241
        %v1564 = vpack.c.b16 %v1249, %v1242
        %v1565 = vpack.c.b16 %v1250, %v1243
        %v1566 = vpack.c.b16 %v1251, %v1244
        %v1567 = vpack.c.b16 %v1252, %v1245
        %v1568 = vpack.c.b16 %v1253, %v1246
        %v1569 = vpack.c.b16 %v1254, %v1247
        %v1570 = vpack.c.b16 %v1262, %v1255
        %v1571 = vpack.c.b16 %v1263, %v1256
        %v1572 = vpack.c.b16 %v1264, %v1257
        %v1573 = vpack.c.b16 %v1265, %v1258
        %v1574 = vpack.c.b16 %v1266, %v1259
        %v1575 = vpack.c.b16 %v1267, %v1260
        %v1576 = vpack.c.b16 %v1268, %v1261
        %v1577 = vpack.c.b16 %v1276, %v1269
        %v1578 = vpack.c.b16 %v1277, %v1270
        %v1579 = vpack.c.b16 %v1278, %v1271
        %v1580 = vpack.c.b16 %v1279, %v1272
        %v1581 = vpack.c.b16 %v1280, %v1273
        %v1582 = vpack.c.b16 %v1281, %v1274
        %v1583 = vpack.c.b16 %v1282, %v1275
        %v1584 = vpack.c.b16 %v1290, %v1283
        %v1585 = vpack.c.b16 %v1291, %v1284
        %v1586 = vpack.c.b16 %v1292, %v1285
        %v1587 = vpack.c.b16 %v1293, %v1286
        %v1588 = vpack.c.b16 %v1294, %v1287
        %v1589 = vpack.c.b16 %v1295, %v1288
        %v1590 = vpack.c.b16 %v1296, %v1289
        %v1591 = vpack.c.b16 %v1304, %v1297
        %v1592 = vpack.c.b16 %v1305, %v1298
        %v1593 = vpack.c.b16 %v1306, %v1299
        %v1594 = vpack.c.b16 %v1307, %v1300
        %v1595 = vpack.c.b16 %v1308, %v1301
        %v1596 = vpack.c.b16 %v1309, %v1302
        %v1597 = vpack.c.b16 %v1310, %v1303
        %v1598 = vpack.c.b16 %v1318, %v1311
        %v1599 = vpack.c.b16 %v1319, %v1312
        %v1600 = vpack.c.b16 %v1320, %v1313
        %v1601 = vpack.c.b16 %v1321, %v1314
        %v1602 = vpack.c.b16 %v1322, %v1315
        %v1603 = vpack.c.b16 %v1323, %v1316
        %v1604 = vpack.c.b16 %v1324, %v1317
        %v1605 = vpack.c.b16 %v1332, %v1325
        %v1606 = vpack.c.b16 %v1333, %v1326
        %v1607 = vpack.c.b16 %v1334, %v1327
        %v1608 = vpack.c.b16 %v1335, %v1328
        %v1609 = vpack.c.b16 %v1336, %v1329
        %v1610 = vpack.c.b16 %v1337, %v1330
        %v1611 = vpack.c.b16 %v1338, %v1331
        %v1612 = vpack.c.b16 %v1346, %v1339
        %v1613 = vpack.c.b16 %v1347, %v1340
        %v1614 = vpack.c.b16 %v1348, %v1341
        %v1615 = vpack.c.b16 %v1349, %v1342
        %v1616 = vpack.c.b16 %v1350, %v1343
        %v1617 = vpack.c.b16 %v1351, %v1344
        %v1618 = vpack.c.b16 %v1352, %v1345
        %v1619 = vpack.c.b16 %v1360, %v1353
        %v1620 = vpack.c.b16 %v1361, %v1354
        %v1621 = vpack.c.b16 %v1362, %v1355
        %v1622 = vpack.c.b16 %v1363, %v1356
        %v1623 = vpack.c.b16 %v1364, %v1357
        %v1624 = vpack.c.b16 %v1365, %v1358
        %v1625 = vpack.c.b16 %v1366, %v1359
        %v1626 = vpack.c.b16 %v1374, %v1367
        %v1627 = vpack.c.b16 %v1375, %v1368
        %v1628 = vpack.c.b16 %v1376, %v1369
        %v1629 = vpack.c.b16 %v1377, %v1370
        %v1630 = vpack.c.b16 %v1378, %v1371
        %v1631 = vpack.c.b16 %v1379, %v1372
        %v1632 = vpack.c.b16 %v1380, %v1373
        %v1633 = vpack.c.b16 %v1388, %v1381
        %v1634 = vpack.c.b16 %v1389, %v1382
        %v1635 = vpack.c.b16 %v1390, %v1383
        %v1636 = vpack.c.b16 %v1391, %v1384
        %v1637 = vpack.c.b16 %v1392, %v1385
        %v1638 = vpack.c.b16 %v1393, %v1386
        %v1639 = vpack.c.b16 %v1394, %v1387
        %v1640 = vpack.c.b16 %v1402, %v1395
        %v1641 = vpack.c.b16 %v1403, %v1396
        %v1642 = vpack.c.b16 %v1404, %v1397
        %v1643 = vpack.c.b16 %v1405, %v1398
        %v1644 = vpack.c.b16 %v1406, %v1399
        %v1645 = vpack.c.b16 %v1407, %v1400
        %v1646 = vpack.c.b16 %v1408, %v1401
        %v1647 = vpack.c.b16 %v1416, %v1409
        %v1648 = vpack.c.b16 %v1417, %v1410
        %v1649 = vpack.c.b16 %v1418, %v1411
        %v1650 = vpack.c.b16 %v1419, %v1412
        %v1651 = vpack.c.b16 %v1420, %v1413
        %v1652 = vpack.c.b16 %v1421, %v1414
        %v1653 = vpack.c.b16 %v1422, %v1415
        %v1654 = vpack.c.b16 %v1430, %v1423
        %v1655 = vpack.c.b16 %v1431, %v1424
        %v1656 = vpack.c.b16 %v1432, %v1425
        %v1657 = vpack.c.b16 %v1433, %v1426
        %v1658 = vpack.c.b16 %v1434, %v1427
        %v1659 = vpack.c.b16 %v1435, %v1428
        %v1660 = vpack.c.b16 %v1436, %v1429
        %1885 = vmatprep.subr.bf16.mxu0 %v1438
        %1886 = vmatpush1.bf16.msra.mxu0 %v1437
        %1887 = vmatprep.subr.bf16.mxu0 %v1445
        %1888 = vmatpush1.bf16.msra.mxu0 %v1444
        %1889 = vmatprep.subr.bf16.mxu0 %v1452
        %1890 = vmatpush1.bf16.msra.mxu0 %v1451
        %1891 = vmatprep.subr.bf16.mxu0 %v1459
        %1892 = vmatpush1.bf16.msra.mxu0 %v1458
        %1893 = vmatprep.subr.bf16.mxu0 %v1466
        %1894 = vmatpush1.bf16.msra.mxu0 %v1465
        %1895 = vmatprep.subr.bf16.mxu0 %v1473
        %1896 = vmatpush1.bf16.msra.mxu0 %v1472
        %1897 = vmatprep.subr.bf16.mxu0 %v1480
        %1898 = vmatpush1.bf16.msra.mxu0 %v1479
        %1899 = vmatprep.subr.bf16.mxu0 %v1487
        %1900 = vmatpush1.bf16.msra.mxu0 %v1486
        %1901 = vmatprep.subr.bf16.mxu0 %v1494
        %1902 = vmatpush1.bf16.msra.mxu0 %v1493
        %1903 = vmatprep.subr.bf16.mxu0 %v1501
        %1904 = vmatpush1.bf16.msra.mxu0 %v1500
        %1905 = vmatprep.subr.bf16.mxu0 %v1508
        %1906 = vmatpush1.bf16.msra.mxu0 %v1507
        %1907 = vmatprep.subr.bf16.mxu0 %v1515
        %1908 = vmatpush1.bf16.msra.mxu0 %v1514
        %1909 = vmatprep.subr.bf16.mxu0 %v1522
        %1910 = vmatpush1.bf16.msra.mxu0 %v1521
        %1911 = vmatprep.subr.bf16.mxu0 %v1529
        %1912 = vmatpush1.bf16.msra.mxu0 %v1528
        %1913 = vmatprep.subr.bf16.mxu0 %v1536
        %1914 = vmatpush1.bf16.msra.mxu0 %v1535
        %1915 = vmatprep.subr.bf16.mxu0 %v1543
        %1916 = vmatpush1.bf16.msra.mxu0 %v1542
        %1917 = vmatprep.mubr.bf16.mxu0 %v433
        %1918 = vmatmul.mubr.bf16.gmra.mrb[0].mxu0 %v432
        %v1919 = vpop.f32.mrb[0].mxu0
        %v1920 = vadd.f32 %v701, %v1919
        %v1921 = vpop.f32.mrb[0].mxu0
        %v1922 = vadd.f32 %v705, %v1921
        %v1923 = vpop.f32.mrb[0].mxu0
        %v1924 = vadd.f32 %v701, %v1923
        %v1925 = vpop.f32.mrb[0].mxu0
        %v1926 = vadd.f32 %v705, %v1925
        %1927 = vmatprep.mubr.bf16.mxu0 %v437
        %1928 = vmatmul.mubr.bf16.gmra.mrb[0].mxu0 %v436
        %v1929 = vpop.f32.mrb[0].mxu0
        %v1930 = vadd.f32 %v701, %v1929
        %v1931 = vpop.f32.mrb[0].mxu0
        %v1932 = vadd.f32 %v705, %v1931
        %v1933 = vpop.f32.mrb[0].mxu0
        %v1934 = vadd.f32 %v701, %v1933
        %v1935 = vpop.f32.mrb[0].mxu0
        %v1936 = vadd.f32 %v705, %v1935
        %1937 = vdwg.mxu0
        %1938 = vmatprep.subr.bf16.mxu0 %v1550
        %1939 = vmatpush1.bf16.msra.mxu0 %v1549
        %1940 = vmatprep.subr.bf16.mxu0 %v1557
        %1941 = vmatpush1.bf16.msra.mxu0 %v1556
        %1942 = vmatprep.subr.bf16.mxu0 %v1564
        %1943 = vmatpush1.bf16.msra.mxu0 %v1563
        %1944 = vmatprep.subr.bf16.mxu0 %v1571
        %1945 = vmatpush1.bf16.msra.mxu0 %v1570
        %1946 = vmatprep.subr.bf16.mxu0 %v1578
        %1947 = vmatpush1.bf16.msra.mxu0 %v1577
        %1948 = vmatprep.subr.bf16.mxu0 %v1585
        %1949 = vmatpush1.bf16.msra.mxu0 %v1584
        %1950 = vmatprep.subr.bf16.mxu0 %v1592
        %1951 = vmatpush1.bf16.msra.mxu0 %v1591
        %1952 = vmatprep.subr.bf16.mxu0 %v1599
        %1953 = vmatpush1.bf16.msra.mxu0 %v1598
        %1954 = vmatprep.subr.bf16.mxu0 %v1606
        %1955 = vmatpush1.bf16.msra.mxu0 %v1605
        %1956 = vmatprep.subr.bf16.mxu0 %v1613
        %1957 = vmatpush1.bf16.msra.mxu0 %v1612
        %1958 = vmatprep.subr.bf16.mxu0 %v1620
        %1959 = vmatpush1.bf16.msra.mxu0 %v1619
        %1960 = vmatprep.subr.bf16.mxu0 %v1627
        %1961 = vmatpush1.bf16.msra.mxu0 %v1626
        %1962 = vmatprep.subr.bf16.mxu0 %v1634
        %1963 = vmatpush1.bf16.msra.mxu0 %v1633
        %1964 = vmatprep.subr.bf16.mxu0 %v1641
        %1965 = vmatpush1.bf16.msra.mxu0 %v1640
        %1966 = vmatprep.subr.bf16.mxu0 %v1648
        %1967 = vmatpush1.bf16.msra.mxu0 %v1647
        %1968 = vmatprep.subr.bf16.mxu0 %v1655
        %1969 = vmatpush1.bf16.msra.mxu0 %v1654
        %1970 = vmatprep.mubr.bf16.mxu0 %v435
        %1971 = vmatmul.mubr.bf16.gmra.mrb[0].mxu0 %v434
        %v1972 = vpop.f32.mrb[0].mxu0
        %v1973 = vadd.f32 %v1920, %v1972
        %v1974 = vpop.f32.mrb[0].mxu0
        %v1975 = vadd.f32 %v1922, %v1974
        %v1976 = vpop.f32.mrb[0].mxu0
        %v1977 = vadd.f32 %v1924, %v1976
        %v1978 = vpop.f32.mrb[0].mxu0
        %v1979 = vadd.f32 %v1926, %v1978
        %1980 = vmatprep.mubr.bf16.mxu0 %v439
        %1981 = vmatmul.mubr.bf16.gmra.mrb[0].mxu0 %v438
        %v1982 = vpop.f32.mrb[0].mxu0
        %v1983 = vadd.f32 %v1930, %v1982
        %v1984 = vpop.f32.mrb[0].mxu0
        %v1985 = vadd.f32 %v1932, %v1984
        %v1986 = vpop.f32.mrb[0].mxu0
        %v1987 = vadd.f32 %v1934, %v1986
        %v1988 = vpop.f32.mrb[0].mxu0
        %v1989 = vadd.f32 %v1936, %v1988
        %1990 = vdwg.mxu0
        %1991 = vmatprep.subr.bf16.mxu0 %v1440
        %1992 = vmatpush1.bf16.msra.mxu0 %v1439
        %1993 = vmatprep.subr.bf16.mxu0 %v1447
        %1994 = vmatpush1.bf16.msra.mxu0 %v1446
        %1995 = vmatprep.subr.bf16.mxu0 %v1454
        %1996 = vmatpush1.bf16.msra.mxu0 %v1453
        %1997 = vmatprep.subr.bf16.mxu0 %v1461
        %1998 = vmatpush1.bf16.msra.mxu0 %v1460
        %1999 = vmatprep.subr.bf16.mxu0 %v1468
        %2000 = vmatpush1.bf16.msra.mxu0 %v1467
        %2001 = vmatprep.subr.bf16.mxu0 %v1475
        %2002 = vmatpush1.bf16.msra.mxu0 %v1474
        %2003 = vmatprep.subr.bf16.mxu0 %v1482
        %2004 = vmatpush1.bf16.msra.mxu0 %v1481
        %2005 = vmatprep.subr.bf16.mxu0 %v1489
        %2006 = vmatpush1.bf16.msra.mxu0 %v1488
        %2007 = vmatprep.subr.bf16.mxu0 %v1496
        %2008 = vmatpush1.bf16.msra.mxu0 %v1495
        %2009 = vmatprep.subr.bf16.mxu0 %v1503
        %2010 = vmatpush1.bf16.msra.mxu0 %v1502
        %2011 = vmatprep.subr.bf16.mxu0 %v1510
        %2012 = vmatpush1.bf16.msra.mxu0 %v1509
        %2013 = vmatprep.subr.bf16.mxu0 %v1517
        %2014 = vmatpush1.bf16.msra.mxu0 %v1516
        %2015 = vmatprep.subr.bf16.mxu0 %v1524
        %2016 = vmatpush1.bf16.msra.mxu0 %v1523
        %2017 = vmatprep.subr.bf16.mxu0 %v1531
        %2018 = vmatpush1.bf16.msra.mxu0 %v1530
        %2019 = vmatprep.subr.bf16.mxu0 %v1538
        %2020 = vmatpush1.bf16.msra.mxu0 %v1537
        %2021 = vmatprep.subr.bf16.mxu0 %v1545
        %2022 = vmatpush1.bf16.msra.mxu0 %v1544
        %2023 = vmatprep.mubr.bf16.mxu0 %v433
        %2024 = vmatmul.mubr.bf16.gmra.mrb[0].mxu0 %v432
        %v2025 = vpop.f32.mrb[0].mxu0
        %v2026 = vadd.f32 %v709, %v2025
        %v2027 = vpop.f32.mrb[0].mxu0
        %v2028 = vadd.f32 %v713, %v2027
        %v2029 = vpop.f32.mrb[0].mxu0
        %v2030 = vadd.f32 %v709, %v2029
        %v2031 = vpop.f32.mrb[0].mxu0
        %v2032 = vadd.f32 %v713, %v2031
        %2033 = vmatprep.mubr.bf16.mxu0 %v437
        %2034 = vmatmul.mubr.bf16.gmra.mrb[0].mxu0 %v436
        %v2035 = vpop.f32.mrb[0].mxu0
        %v2036 = vadd.f32 %v709, %v2035
        %v2037 = vpop.f32.mrb[0].mxu0
        %v2038 = vadd.f32 %v713, %v2037
        %v2039 = vpop.f32.mrb[0].mxu0
        %v2040 = vadd.f32 %v709, %v2039
        %v2041 = vpop.f32.mrb[0].mxu0
        %v2042 = vadd.f32 %v713, %v2041
        %2043 = vdwg.mxu0
        %2044 = vmatprep.subr.bf16.mxu0 %v1552
        %2045 = vmatpush1.bf16.msra.mxu0 %v1551
        %2046 = vmatprep.subr.bf16.mxu0 %v1559
        %2047 = vmatpush1.bf16.msra.mxu0 %v1558
        %2048 = vmatprep.subr.bf16.mxu0 %v1566
        %2049 = vmatpush1.bf16.msra.mxu0 %v1565
        %2050 = vmatprep.subr.bf16.mxu0 %v1573
        %2051 = vmatpush1.bf16.msra.mxu0 %v1572
        %2052 = vmatprep.subr.bf16.mxu0 %v1580
        %2053 = vmatpush1.bf16.msra.mxu0 %v1579
        %2054 = vmatprep.subr.bf16.mxu0 %v1587
        %2055 = vmatpush1.bf16.msra.mxu0 %v1586
        %2056 = vmatprep.subr.bf16.mxu0 %v1594
        %2057 = vmatpush1.bf16.msra.mxu0 %v1593
        %2058 = vmatprep.subr.bf16.mxu0 %v1601
        %2059 = vmatpush1.bf16.msra.mxu0 %v1600
        %2060 = vmatprep.subr.bf16.mxu0 %v1608
        %2061 = vmatpush1.bf16.msra.mxu0 %v1607
        %2062 = vmatprep.subr.bf16.mxu0 %v1615
        %2063 = vmatpush1.bf16.msra.mxu0 %v1614
        %2064 = vmatprep.subr.bf16.mxu0 %v1622
        %2065 = vmatpush1.bf16.msra.mxu0 %v1621
        %2066 = vmatprep.subr.bf16.mxu0 %v1629
        %2067 = vmatpush1.bf16.msra.mxu0 %v1628
        %2068 = vmatprep.subr.bf16.mxu0 %v1636
        %2069 = vmatpush1.bf16.msra.mxu0 %v1635
        %2070 = vmatprep.subr.bf16.mxu0 %v1643
        %2071 = vmatpush1.bf16.msra.mxu0 %v1642
        %2072 = vmatprep.subr.bf16.mxu0 %v1650
        %2073 = vmatpush1.bf16.msra.mxu0 %v1649
        %2074 = vmatprep.subr.bf16.mxu0 %v1657
        %2075 = vmatpush1.bf16.msra.mxu0 %v1656
        %2076 = vmatprep.mubr.bf16.mxu0 %v435
        %2077 = vmatmul.mubr.bf16.gmra.mrb[0].mxu0 %v434
        %v2078 = vpop.f32.mrb[0].mxu0
        %v2079 = vadd.f32 %v2026, %v2078
        %v2080 = vpop.f32.mrb[0].mxu0
        %v2081 = vadd.f32 %v2028, %v2080
        %v2082 = vpop.f32.mrb[0].mxu0
        %v2083 = vadd.f32 %v2030, %v2082
        %v2084 = vpop.f32.mrb[0].mxu0
        %v2085 = vadd.f32 %v2032, %v2084
        %2086 = vmatprep.mubr.bf16.mxu0 %v439
        %2087 = vmatmul.mubr.bf16.gmra.mrb[0].mxu0 %v438
        %v2088 = vpop.f32.mrb[0].mxu0
        %v2089 = vadd.f32 %v2036, %v2088
        %v2090 = vpop.f32.mrb[0].mxu0
        %v2091 = vadd.f32 %v2038, %v2090
        %v2092 = vpop.f32.mrb[0].mxu0
        %v2093 = vadd.f32 %v2040, %v2092
        %v2094 = vpop.f32.mrb[0].mxu0
        %v2095 = vadd.f32 %v2042, %v2094
        %2096 = vdwg.mxu0
        %2097 = vmatprep.subr.bf16.mxu0 %v1442
        %2098 = vmatpush1.bf16.msra.mxu0 %v1441
        %2099 = vmatprep.subr.bf16.mxu0 %v1449
        %2100 = vmatpush1.bf16.msra.mxu0 %v1448
        %2101 = vmatprep.subr.bf16.mxu0 %v1456
        %2102 = vmatpush1.bf16.msra.mxu0 %v1455
        %2103 = vmatprep.subr.bf16.mxu0 %v1463
        %2104 = vmatpush1.bf16.msra.mxu0 %v1462
        %2105 = vmatprep.subr.bf16.mxu0 %v1470
        %2106 = vmatpush1.bf16.msra.mxu0 %v1469
        %2107 = vmatprep.subr.bf16.mxu0 %v1477
        %2108 = vmatpush1.bf16.msra.mxu0 %v1476
        %2109 = vmatprep.subr.bf16.mxu0 %v1484
        %2110 = vmatpush1.bf16.msra.mxu0 %v1483
        %2111 = vmatprep.subr.bf16.mxu0 %v1491
        %2112 = vmatpush1.bf16.msra.mxu0 %v1490
        %2113 = vmatprep.subr.bf16.mxu0 %v1498
        %2114 = vmatpush1.bf16.msra.mxu0 %v1497
        %2115 = vmatprep.subr.bf16.mxu0 %v1505
        %2116 = vmatpush1.bf16.msra.mxu0 %v1504
        %2117 = vmatprep.subr.bf16.mxu0 %v1512
        %2118 = vmatpush1.bf16.msra.mxu0 %v1511
        %2119 = vmatprep.subr.bf16.mxu0 %v1519
        %2120 = vmatpush1.bf16.msra.mxu0 %v1518
        %2121 = vmatprep.subr.bf16.mxu0 %v1526
        %2122 = vmatpush1.bf16.msra.mxu0 %v1525
        %2123 = vmatprep.subr.bf16.mxu0 %v1533
        %2124 = vmatpush1.bf16.msra.mxu0 %v1532
        %2125 = vmatprep.subr.bf16.mxu0 %v1540
        %2126 = vmatpush1.bf16.msra.mxu0 %v1539
        %2127 = vmatprep.subr.bf16.mxu0 %v1547
        %2128 = vmatpush1.bf16.msra.mxu0 %v1546
        %2129 = vmatprep.mubr.bf16.mxu0 %v433
        %2130 = vmatmul.mubr.bf16.gmra.mrb[0].mxu0 %v432
        %v2131 = vpop.f32.mrb[0].mxu0
        %v2132 = vadd.f32 %v717, %v2131
        %v2133 = vpop.f32.mrb[0].mxu0
        %v2134 = vadd.f32 %v721, %v2133
        %v2135 = vpop.f32.mrb[0].mxu0
        %v2136 = vadd.f32 %v717, %v2135
        %v2137 = vpop.f32.mrb[0].mxu0
        %v2138 = vadd.f32 %v721, %v2137
        %2139 = vmatprep.mubr.bf16.mxu0 %v437
        %2140 = vmatmul.mubr.bf16.gmra.mrb[0].mxu0 %v436
        %v2141 = vpop.f32.mrb[0].mxu0
        %v2142 = vadd.f32 %v717, %v2141
        %v2143 = vpop.f32.mrb[0].mxu0
        %v2144 = vadd.f32 %v721, %v2143
        %v2145 = vpop.f32.mrb[0].mxu0
        %v2146 = vadd.f32 %v717, %v2145
        %v2147 = vpop.f32.mrb[0].mxu0
        %v2148 = vadd.f32 %v721, %v2147
        %2149 = vdwg.mxu0
        %2150 = vmatprep.subr.bf16.mxu0 %v1554
        %2151 = vmatpush1.bf16.msra.mxu0 %v1553
        %2152 = vmatprep.subr.bf16.mxu0 %v1561
        %2153 = vmatpush1.bf16.msra.mxu0 %v1560
        %2154 = vmatprep.subr.bf16.mxu0 %v1568
        %2155 = vmatpush1.bf16.msra.mxu0 %v1567
        %2156 = vmatprep.subr.bf16.mxu0 %v1575
        %2157 = vmatpush1.bf16.msra.mxu0 %v1574
        %2158 = vmatprep.subr.bf16.mxu0 %v1582
        %2159 = vmatpush1.bf16.msra.mxu0 %v1581
        %2160 = vmatprep.subr.bf16.mxu0 %v1589
        %2161 = vmatpush1.bf16.msra.mxu0 %v1588
        %2162 = vmatprep.subr.bf16.mxu0 %v1596
        %2163 = vmatpush1.bf16.msra.mxu0 %v1595
        %2164 = vmatprep.subr.bf16.mxu0 %v1603
        %2165 = vmatpush1.bf16.msra.mxu0 %v1602
        %2166 = vmatprep.subr.bf16.mxu0 %v1610
        %2167 = vmatpush1.bf16.msra.mxu0 %v1609
        %2168 = vmatprep.subr.bf16.mxu0 %v1617
        %2169 = vmatpush1.bf16.msra.mxu0 %v1616
        %2170 = vmatprep.subr.bf16.mxu0 %v1624
        %2171 = vmatpush1.bf16.msra.mxu0 %v1623
        %2172 = vmatprep.subr.bf16.mxu0 %v1631
        %2173 = vmatpush1.bf16.msra.mxu0 %v1630
        %2174 = vmatprep.subr.bf16.mxu0 %v1638
        %2175 = vmatpush1.bf16.msra.mxu0 %v1637
        %2176 = vmatprep.subr.bf16.mxu0 %v1645
        %2177 = vmatpush1.bf16.msra.mxu0 %v1644
        %2178 = vmatprep.subr.bf16.mxu0 %v1652
        %2179 = vmatpush1.bf16.msra.mxu0 %v1651
        %2180 = vmatprep.subr.bf16.mxu0 %v1659
        %2181 = vmatpush1.bf16.msra.mxu0 %v1658
        %2182 = vmatprep.mubr.bf16.mxu0 %v435
        %2183 = vmatmul.mubr.bf16.gmra.mrb[0].mxu0 %v434
        %v2184 = vpop.f32.mrb[0].mxu0
        %v2185 = vadd.f32 %v2132, %v2184
        %v2186 = vpop.f32.mrb[0].mxu0
        %v2187 = vadd.f32 %v2134, %v2186
        %v2188 = vpop.f32.mrb[0].mxu0
        %v2189 = vadd.f32 %v2136, %v2188
        %v2190 = vpop.f32.mrb[0].mxu0
        %v2191 = vadd.f32 %v2138, %v2190
        %2192 = vmatprep.mubr.bf16.mxu0 %v439
        %2193 = vmatmul.mubr.bf16.gmra.mrb[0].mxu0 %v438
        %v2194 = vpop.f32.mrb[0].mxu0
        %v2195 = vadd.f32 %v2142, %v2194
        %v2196 = vpop.f32.mrb[0].mxu0
        %v2197 = vadd.f32 %v2144, %v2196
        %v2198 = vpop.f32.mrb[0].mxu0
        %v2199 = vadd.f32 %v2146, %v2198
        %v2200 = vpop.f32.mrb[0].mxu0
        %v2201 = vadd.f32 %v2148, %v2200
        %2202 = vdwg.mxu0
        %2203 = vmatprep.subr.bf16.mxu0 0
        %2204 = vmatpush1.bf16.msra.mxu0 %v1443
        %2205 = vmatprep.subr.bf16.mxu0 0
        %2206 = vmatpush1.bf16.msra.mxu0 %v1450
        %2207 = vmatprep.subr.bf16.mxu0 0
        %2208 = vmatpush1.bf16.msra.mxu0 %v1457
        %2209 = vmatprep.subr.bf16.mxu0 0
        %2210 = vmatpush1.bf16.msra.mxu0 %v1464
        %2211 = vmatprep.subr.bf16.mxu0 0
        %2212 = vmatpush1.bf16.msra.mxu0 %v1471
        %2213 = vmatprep.subr.bf16.mxu0 0
        %2214 = vmatpush1.bf16.msra.mxu0 %v1478
        %2215 = vmatprep.subr.bf16.mxu0 0
        %2216 = vmatpush1.bf16.msra.mxu0 %v1485
        %2217 = vmatprep.subr.bf16.mxu0 0
        %2218 = vmatpush1.bf16.msra.mxu0 %v1492
        %2219 = vmatprep.subr.bf16.mxu0 0
        %2220 = vmatpush1.bf16.msra.mxu0 %v1499
        %2221 = vmatprep.subr.bf16.mxu0 0
        %2222 = vmatpush1.bf16.msra.mxu0 %v1506
        %2223 = vmatprep.subr.bf16.mxu0 0
        %2224 = vmatpush1.bf16.msra.mxu0 %v1513
        %2225 = vmatprep.subr.bf16.mxu0 0
        %2226 = vmatpush1.bf16.msra.mxu0 %v1520
        %2227 = vmatprep.subr.bf16.mxu0 0
        %2228 = vmatpush1.bf16.msra.mxu0 %v1527
        %2229 = vmatprep.subr.bf16.mxu0 0
        %2230 = vmatpush1.bf16.msra.mxu0 %v1534
        %2231 = vmatprep.subr.bf16.mxu0 0
        %2232 = vmatpush1.bf16.msra.mxu0 %v1541
        %2233 = vmatprep.subr.bf16.mxu0 0
        %2234 = vmatpush1.bf16.msra.mxu0 %v1548
        %2235 = vmatprep.mubr.bf16.mxu0 %v433
        %2236 = vmatmul.mubr.bf16.gmra.mrb[0].mxu0 %v432
        %v2237 = vpop.f32.mrb[0].mxu0
        %v2238 = vadd.f32 %v725, %v2237
        %v2239 = vpop.f32.mrb[0].mxu0
        %v2240 = vpop.f32.mrb[0].mxu0
        %v2241 = vadd.f32 %v725, %v2240
        %v2242 = vpop.f32.mrb[0].mxu0
        %2243 = vmatprep.mubr.bf16.mxu0 %v437
        %2244 = vmatmul.mubr.bf16.gmra.mrb[0].mxu0 %v436
        %v2245 = vpop.f32.mrb[0].mxu0
        %v2246 = vadd.f32 %v725, %v2245
        %v2247 = vpop.f32.mrb[0].mxu0
        %v2248 = vpop.f32.mrb[0].mxu0
        %v2249 = vadd.f32 %v725, %v2248
        %v2250 = vpop.f32.mrb[0].mxu0
        %2251 = vdwg.mxu0
        %2252 = vmatprep.subr.bf16.mxu0 0
        %2253 = vmatpush1.bf16.msra.mxu0 %v1555
        %2254 = vmatprep.subr.bf16.mxu0 0
        %2255 = vmatpush1.bf16.msra.mxu0 %v1562
        %2256 = vmatprep.subr.bf16.mxu0 0
        %2257 = vmatpush1.bf16.msra.mxu0 %v1569
        %2258 = vmatprep.subr.bf16.mxu0 0
        %2259 = vmatpush1.bf16.msra.mxu0 %v1576
        %2260 = vmatprep.subr.bf16.mxu0 0
        %2261 = vmatpush1.bf16.msra.mxu0 %v1583
        %2262 = vmatprep.subr.bf16.mxu0 0
        %2263 = vmatpush1.bf16.msra.mxu0 %v1590
        %2264 = vmatprep.subr.bf16.mxu0 0
        %2265 = vmatpush1.bf16.msra.mxu0 %v1597
        %2266 = vmatprep.subr.bf16.mxu0 0
        %2267 = vmatpush1.bf16.msra.mxu0 %v1604
        %2268 = vmatprep.subr.bf16.mxu0 0
        %2269 = vmatpush1.bf16.msra.mxu0 %v1611
        %2270 = vmatprep.subr.bf16.mxu0 0
        %2271 = vmatpush1.bf16.msra.mxu0 %v1618
        %2272 = vmatprep.subr.bf16.mxu0 0
        %2273 = vmatpush1.bf16.msra.mxu0 %v1625
        %2274 = vmatprep.subr.bf16.mxu0 0
        %2275 = vmatpush1.bf16.msra.mxu0 %v1632
        %2276 = vmatprep.subr.bf16.mxu0 0
        %2277 = vmatpush1.bf16.msra.mxu0 %v1639
        %2278 = vmatprep.subr.bf16.mxu0 0
        %2279 = vmatpush1.bf16.msra.mxu0 %v1646
        %2280 = vmatprep.subr.bf16.mxu0 0
        %2281 = vmatpush1.bf16.msra.mxu0 %v1653
        %2282 = vmatprep.subr.bf16.mxu0 0
        %2283 = vmatpush1.bf16.msra.mxu0 %v1660
        %2284 = vmatprep.mubr.bf16.mxu0 %v435
        %2285 = vmatmul.mubr.bf16.gmra.mrb[0].mxu0 %v434
        %v2286 = vpop.f32.mrb[0].mxu0
        %v2287 = vadd.f32 %v2238, %v2286
        %v2288 = vpop.f32.mrb[0].mxu0
        %v2289 = vpop.f32.mrb[0].mxu0
        %v2290 = vadd.f32 %v2241, %v2289
        %v2291 = vpop.f32.mrb[0].mxu0
        %2292 = vmatprep.mubr.bf16.mxu0 %v439
        %2293 = vmatmul.mubr.bf16.gmra.mrb[0].mxu0 %v438
        %v2294 = vpop.f32.mrb[0].mxu0
        %v2295 = vadd.f32 %v2246, %v2294
        %v2296 = vpop.f32.mrb[0].mxu0
        %v2297 = vpop.f32.mrb[0].mxu0
        %v2298 = vadd.f32 %v2249, %v2297
        %v2299 = vpop.f32.mrb[0].mxu0
        %2300 = vdwg.mxu0
        %v2301 = vsub.f32 0.0, %v1973
        %v2302 = vsub.f32 0.0, %v1975
        %v2303 = vsub.f32 0.0, %v2079
        %v2304 = vsub.f32 0.0, %v2081
        %v2305 = vsub.f32 0.0, %v2185
        %v2306 = vsub.f32 0.0, %v2187
        %v2307 = vsub.f32 0.0, %v2287
        %v2308 = vsub.f32 0.0, %v1977
        %v2309 = vsub.f32 0.0, %v1979
        %v2310 = vsub.f32 0.0, %v2083
        %v2311 = vsub.f32 0.0, %v2085
        %v2312 = vsub.f32 0.0, %v2189
        %v2313 = vsub.f32 0.0, %v2191
        %v2314 = vsub.f32 0.0, %v2290
        %v2315 = vsub.f32 0.0, %v1983
        %v2316 = vsub.f32 0.0, %v1985
        %v2317 = vsub.f32 0.0, %v2089
        %v2318 = vsub.f32 0.0, %v2091
        %v2319 = vsub.f32 0.0, %v2195
        %v2320 = vsub.f32 0.0, %v2197
        %v2321 = vsub.f32 0.0, %v2295
        %v2322 = vsub.f32 0.0, %v1987
        %v2323 = vsub.f32 0.0, %v1989
        %v2324 = vsub.f32 0.0, %v2093
        %v2325 = vsub.f32 0.0, %v2095
        %v2326 = vsub.f32 0.0, %v2199
        %v2327 = vsub.f32 0.0, %v2201
        %v2328 = vsub.f32 0.0, %v2298
        %v2329 = vmul.f32 %v2301, 1.442695
        %v2330 = vpow.pop %v2329
        %v2331 = vmul.f32 %v2302, 1.442695
        %v2332 = vpow.pop %v2331
        %v2333 = vmul.f32 %v2303, 1.442695
        %v2334 = vpow.pop %v2333
        %v2335 = vmul.f32 %v2304, 1.442695
        %v2336 = vpow.pop %v2335
        %v2337 = vmul.f32 %v2305, 1.442695
        %v2338 = vpow.pop %v2337
        %v2339 = vmul.f32 %v2306, 1.442695
        %v2340 = vpow.pop %v2339
        %v2341 = vmul.f32 %v2307, 1.442695
        %v2342 = vpow.pop %v2341
        %v2343 = vmul.f32 %v2308, 1.442695
        %v2344 = vpow.pop %v2343
        %v2345 = vmul.f32 %v2309, 1.442695
        %v2346 = vpow.pop %v2345
        %v2347 = vmul.f32 %v2310, 1.442695
        %v2348 = vpow.pop %v2347
        %v2349 = vmul.f32 %v2311, 1.442695
        %v2350 = vpow.pop %v2349
        %v2351 = vmul.f32 %v2312, 1.442695
        %v2352 = vpow.pop %v2351
        %v2353 = vmul.f32 %v2313, 1.442695
        %v2354 = vpow.pop %v2353
        %v2355 = vmul.f32 %v2314, 1.442695
        %v2356 = vpow.pop %v2355
        %v2357 = vmul.f32 %v2315, 1.442695
        %v2358 = vpow.pop %v2357
        %v2359 = vmul.f32 %v2316, 1.442695
        %v2360 = vpow.pop %v2359
        %v2361 = vmul.f32 %v2317, 1.442695
        %v2362 = vpow.pop %v2361
        %v2363 = vmul.f32 %v2318, 1.442695
        %v2364 = vpow.pop %v2363
        %v2365 = vmul.f32 %v2319, 1.442695
        %v2366 = vpow.pop %v2365
        %v2367 = vmul.f32 %v2320, 1.442695
        %v2368 = vpow.pop %v2367
        %v2369 = vmul.f32 %v2321, 1.442695
        %v2370 = vpow.pop %v2369
        %v2371 = vmul.f32 %v2322, 1.442695
        %v2372 = vpow.pop %v2371
        %v2373 = vmul.f32 %v2323, 1.442695
        %v2374 = vpow.pop %v2373
        %v2375 = vmul.f32 %v2324, 1.442695
        %v2376 = vpow.pop %v2375
        %v2377 = vmul.f32 %v2325, 1.442695
        %v2378 = vpow.pop %v2377
        %v2379 = vmul.f32 %v2326, 1.442695
        %v2380 = vpow.pop %v2379
        %v2381 = vmul.f32 %v2327, 1.442695
        %v2382 = vpow.pop %v2381
        %v2383 = vmul.f32 %v2328, 1.442695
        %v2384 = vpow.pop %v2383
        %v2385 = vadd.f32 %v2330, 1.0
        %v2386 = vadd.f32 %v2332, 1.0
        %v2387 = vadd.f32 %v2334, 1.0
        %v2388 = vadd.f32 %v2336, 1.0
        %v2389 = vadd.f32 %v2338, 1.0
        %v2390 = vadd.f32 %v2340, 1.0
        %v2391 = vadd.f32 %v2342, 1.0
        %v2392 = vadd.f32 %v2344, 1.0
        %v2393 = vadd.f32 %v2346, 1.0
        %v2394 = vadd.f32 %v2348, 1.0
        %v2395 = vadd.f32 %v2350, 1.0
        %v2396 = vadd.f32 %v2352, 1.0
        %v2397 = vadd.f32 %v2354, 1.0
        %v2398 = vadd.f32 %v2356, 1.0
        %v2399 = vadd.f32 %v2358, 1.0
        %v2400 = vadd.f32 %v2360, 1.0
        %v2401 = vadd.f32 %v2362, 1.0
        %v2402 = vadd.f32 %v2364, 1.0
        %v2403 = vadd.f32 %v2366, 1.0
        %v2404 = vadd.f32 %v2368, 1.0
        %v2405 = vadd.f32 %v2370, 1.0
        %v2406 = vadd.f32 %v2372, 1.0
        %v2407 = vadd.f32 %v2374, 1.0
        %v2408 = vadd.f32 %v2376, 1.0
        %v2409 = vadd.f32 %v2378, 1.0
        %v2410 = vadd.f32 %v2380, 1.0
        %v2411 = vadd.f32 %v2382, 1.0
        %v2412 = vadd.f32 %v2384, 1.0
        %v2413 = vrcp.pop %v2385
        %v2414 = vrcp.pop %v2386
        %v2415 = vrcp.pop %v2387
        %v2416 = vrcp.pop %v2388
        %v2417 = vrcp.pop %v2389
        %v2418 = vrcp.pop %v2390
        %v2419 = vrcp.pop %v2391
        %v2420 = vrcp.pop %v2392
        %v2421 = vrcp.pop %v2393
        %v2422 = vrcp.pop %v2394
        %v2423 = vrcp.pop %v2395
        %v2424 = vrcp.pop %v2396
        %v2425 = vrcp.pop %v2397
        %v2426 = vrcp.pop %v2398
        %v2427 = vrcp.pop %v2399
        %v2428 = vrcp.pop %v2400
        %v2429 = vrcp.pop %v2401
        %v2430 = vrcp.pop %v2402
        %v2431 = vrcp.pop %v2403
        %v2432 = vrcp.pop %v2404
        %v2433 = vrcp.pop %v2405
        %v2434 = vrcp.pop %v2406
        %v2435 = vrcp.pop %v2407
        %v2436 = vrcp.pop %v2408
        %v2437 = vrcp.pop %v2409
        %v2438 = vrcp.pop %v2410
        %v2439 = vrcp.pop %v2411
        %v2440 = vrcp.pop %v2412
        %v2441 = vpack.c.bf16 %v2420, %v2413
        %v2442 = vpack.c.bf16 %v2421, %v2414
        %v2443 = vpack.c.bf16 %v2422, %v2415
        %v2444 = vpack.c.bf16 %v2423, %v2416
        %v2445 = vpack.c.bf16 %v2424, %v2417
        %v2446 = vpack.c.bf16 %v2425, %v2418
        %v2447 = vpack.c.bf16 %v2426, %v2419
        %v2448 = vpack.c.bf16 %v2434, %v2427
        %v2449 = vpack.c.bf16 %v2435, %v2428
        %v2450 = vpack.c.bf16 %v2436, %v2429
        %v2451 = vpack.c.bf16 %v2437, %v2430
        %v2452 = vpack.c.bf16 %v2438, %v2431
        %v2453 = vpack.c.bf16 %v2439, %v2432
        %v2454 = vpack.c.bf16 %v2440, %v2433
        %v2469 = vunpack.c.l.b16 %v2441
        %v2470 = vunpack.c.l.b16 %v2442
        %v2471 = vunpack.c.l.b16 %v2443
        %v2472 = vunpack.c.l.b16 %v2444
        %v2473 = vunpack.c.l.b16 %v2445
        %v2474 = vunpack.c.l.b16 %v2446
        %v2475 = vunpack.c.l.b16 %v2447
        %v2476 = vunpack.c.h.b16 %v2441
        %v2477 = vunpack.c.h.b16 %v2442
        %v2478 = vunpack.c.h.b16 %v2443
        %v2479 = vunpack.c.h.b16 %v2444
        %v2480 = vunpack.c.h.b16 %v2445
        %v2481 = vunpack.c.h.b16 %v2446
        %v2482 = vunpack.c.h.b16 %v2447
        %v2483 = vunpack.c.l.b16 %v2448
        %v2484 = vunpack.c.l.b16 %v2449
        %v2485 = vunpack.c.l.b16 %v2450
        %v2486 = vunpack.c.l.b16 %v2451
        %v2487 = vunpack.c.l.b16 %v2452
        %v2488 = vunpack.c.l.b16 %v2453
        %v2489 = vunpack.c.l.b16 %v2454
        %v2490 = vunpack.c.h.b16 %v2448
        %v2491 = vunpack.c.h.b16 %v2449
        %v2492 = vunpack.c.h.b16 %v2450
        %v2493 = vunpack.c.h.b16 %v2451
        %v2494 = vunpack.c.h.b16 %v2452
        %v2495 = vunpack.c.h.b16 %v2453
        %v2496 = vunpack.c.h.b16 %v2454
        %v2497 = vpack.c.b16 %v2470, %v2469
        %v2498 = vpack.c.b16 %v2472, %v2471
        %v2499 = vpack.c.b16 %v2474, %v2473
        %v2500 = vpack.c.b16 %v2475, %v2475
        %v2501 = vpack.c.b16 %v2477, %v2476
        %v2502 = vpack.c.b16 %v2479, %v2478
        %v2503 = vpack.c.b16 %v2481, %v2480
        %v2504 = vpack.c.b16 %v2482, %v2482
        %v2505 = vpack.c.b16 %v2484, %v2483
        %v2506 = vpack.c.b16 %v2486, %v2485
        %v2507 = vpack.c.b16 %v2488, %v2487
        %v2508 = vpack.c.b16 %v2489, %v2489
        %v2509 = vpack.c.b16 %v2491, %v2490
        %v2510 = vpack.c.b16 %v2493, %v2492
        %v2511 = vpack.c.b16 %v2495, %v2494
        %v2512 = vpack.c.b16 %v2496, %v2496
        %2529 = vst [vmem:[%s218] sm:$0xff] %v2497
        %2530 = vst [vmem:[%s218 + $0x8] sm:$0xff] %v2498
        %2531 = vst [vmem:[%s218 + $0x10] sm:$0xff] %v2499
        %vm2532 = vcmask 125952
        %2533 = vst.msk [vmem:[%s218 + $0x18] sm:$0xf] %vm2532, %v2500
        %2534 = vst [vmem:[%s218 + $0x1c] sm:$0xff] %v2501
        %2535 = vst [vmem:[%s218 + $0x24] sm:$0xff] %v2502
        %2536 = vst [vmem:[%s218 + $0x2c] sm:$0xff] %v2503
        %2537 = vst.msk [vmem:[%s218 + $0x34] sm:$0xf] %vm2532, %v2504
        %2538 = vst [vmem:[%s218 + $0x38] sm:$0xff] %v2505
        %2539 = vst [vmem:[%s218 + $0x40] sm:$0xff] %v2506
        %2540 = vst [vmem:[%s218 + $0x48] sm:$0xff] %v2507
        %2541 = vst.msk [vmem:[%s218 + $0x50] sm:$0xf] %vm2532, %v2508
        %2542 = vst [vmem:[%s218 + $0x54] sm:$0xff] %v2509
        %2543 = vst [vmem:[%s218 + $0x5c] sm:$0xff] %v2510
        %2544 = vst [vmem:[%s218 + $0x64] sm:$0xff] %v2511
        %2545 = vst.msk [vmem:[%s218 + $0x6c] sm:$0xf] %vm2532, %v2512
        %s2546 = sand.u32 %s137, 1
        %s2547 = scalar_lea.sflag [#allocation3], %s2546
        %s2548 = sand.u32 %s137, 1
        %s2549 = smul.addr %s2548, 112
        %s2550 = scalar_lea.vmem [#allocation2], %s2549
        // Predicated region
        $region41: #{tpu_custom_call.1} parent=39 // pred_check
          %p2551 = pneg %p147
        $region42: #{tpu_custom_call.1} parent=39 // pred_check_branch
          %2553 = sbr.rel (%p2551) target = $region44
        $region43: #{tpu_custom_call.1} parent=39 // pred_region
          %s2554 = smul.u32 4, %s19
          %s2556 = ssub.s32 1792, 1792
          %2557 = vsyncadd %s2547, %s2556
          %s2558 = smul.addr %s2554, 7
          %s2559 = smul.addr %s2558, 64
          %s2560 = scalar_lea.hbm %s5, %s2559
          %s2561 = sshll.u32 %s2550, 4
          %s2562 = int_to_ptr.vmem [resolvable:$true] %s2561
          %2567 = dma.vmem_to_hbm [thread:$0]  %s2562, 1792, %s2560, %s2547, 448, 448, 28
        $region44: #{tpu_custom_call.1} parent=39 // pred_fallthru
          _
      $region40: #{tpu_custom_call.1} parent=5 // pred_fallthru
        _
      %p2568 = scmp.le.s32.totalorder 2, %s14
      // Predicated region
      $region45: #{tpu_custom_call.1} parent=5 // pred_check
        %p2569 = pneg %p2568
      $region46: #{tpu_custom_call.1} parent=5 // pred_check_branch
        %2571 = sbr.rel (%p2569) target = $region48
      $region47: #{tpu_custom_call.1} parent=5 // pred_region
        %s2572 = ssub.s32 %s14, 2
        // Predicated region
        $region49: #{tpu_custom_call.1} parent=47 // pred_check
          %p2573 = pneg %p153
        $region50: #{tpu_custom_call.1} parent=47 // pred_check_branch
          %2575 = sbr.rel (%p2573) target = $region52
        $region51: #{tpu_custom_call.1} parent=47 // pred_region
          %s2576 = sand.u32 %s138, 1
          %s2577 = scalar_lea.sflag [#allocation3], %s2576
          %s2578 = sand.u32 %s138, 1
          %s2579 = smul.addr %s2578, 112
          %s2580 = scalar_lea.vmem [#allocation2], %s2579
          %2581 = dma.done %s2577, 1792
        $region52: #{tpu_custom_call.1} parent=47 // pred_fallthru
          _
      $region48: #{tpu_custom_call.1} parent=5 // pred_fallthru
        _
    $region6: #{tpu_custom_call.1} parent=1 // loop_footer
      %s18 = sadd.s32 1, %s14
    $region7: #{tpu_custom_call.1} parent=1 // loop_footer_branch
      %13 = sbr.rel target = $region3
    $region8: #{tpu_custom_call.1} parent=1 // loop_exit
      _
    %2582 = vsyncpa [#allocation3], 1
    %s2583 = scalar_lea.sflag [#allocation3], 1
    %2584 = vsyncpa %s2583, 1

</llo_original>
